<compile_context>
chip_gen: v7x
topology: tpu7x:2x2x1
jax: 0.10.0
libtpu: 0.0.40
codegen_flags: <defaults>
</compile_context>

<pallas_src>
import functools
import math

import jax
import jax.numpy as jnp
from jax import lax
from jax.experimental import pallas as pl
from jax.experimental.pallas import tpu as pltpu

# ----- synthetic, deterministic hyper-parameters -----------------------------
NUM_ACTIONS = 12          # AlfredSubgoal.get_action_type_space_dim()
NUM_OBJECTS = 20          # segdef.get_num_objects()
DMODEL = 32
N_HEAD = 8
HEAD_DIM = DMODEL // N_HEAD      # 4
DIM_FF = DMODEL                  # dim_ff == d_model in the module

S_PAD = 16                       # padded sequence length: SOS + up to 15 tokens
T_MAX = S_PAD - 1
HS = N_HEAD * S_PAD              # 128 head-major score rows (full sublane height)

# embedding-slab row layout (columns of the multi-hot selection matrix)
TYPE_PAD = 16                    # rows  0..15 : type embedding (12 used)
ARG_PAD = 24                     # rows 16..39 : arg embedding (21 used)
BIAS_ROW = TYPE_PAD + ARG_PAD    # row 40      : bt + ba (always summed together)
SOS_ROW = BIAS_ROW + 1           # row 41      : SOS token embedding
PE_BASE = 48                     # rows 48..63 : sinusoidal positional-encoding table
EMB_ROWS = PE_BASE + S_PAD       # 64

# packed parameter slab (everything the kernel reads besides per-call metadata)
SLAB_COLS = 3 * DMODEL           # 96
OFF_EMB = 0                      # (64, 96)  emb block, weights in lanes 0:32
OFF_WA = 64                      # (64, 96)  layer A weights
OFF_VA = 128                     # (8, 96)   layer A biases / LN params (4 used)
OFF_WB = 136                     # (64, 96)  layer B weights
OFF_VB = 200                     # (8, 96)   layer B biases / LN params
OFF_CONST = 208                  # (128, 96) constants: head_sel lanes 0:32, G lanes 32:48
SLAB_ROWS = OFF_CONST + HS       # 336

META_COLS = 8                    # [sel_type, sel_arg, sel_bias, batch_id, is_real, 0, 0, 0]

LN_EPS = 1e-5
NEG_INF = -1e9


# =============================== Pallas kernel ===============================

def _encoder_kernel(meta_ref, slab_ref, out_ref, *, no_acthist=False,
                    no_posemb=False):
    f32 = jnp.float32
    d = DMODEL

    # ---- constants packed in the slab (no in-kernel iota div/shift needed) ----
    head_sel = slab_ref[OFF_CONST:OFF_CONST + HS, 0:d]            # (128, 32)
    G = slab_ref[OFF_CONST:OFF_CONST + HS, d:d + S_PAD]           # (128, 16) row replicator

    # ---- per-call integer metadata (one tiny int32 block) ---------------------
    sel_type = meta_ref[:, 0:1]     # (16,1) int32, -1 on SOS / pad rows
    sel_arg = meta_ref[:, 1:2]
    sel_bias = meta_ref[:, 2:3]     # SOS_ROW on row 0, BIAS_ROW on real rows, -1 on pads
    bid = meta_ref[:, 3:4]          # batch id (only meaningful where real > 0)
    real = meta_ref[:, 4:5]         # 1 on real token rows (rows 1..T), 0 otherwise

    # ---- same-batch matrix, positions, additive attention mask (in-kernel) ----
    # batch ids are assumed to lie in [0, S_PAD); one tiny 0/1 matmul gives the
    # pairwise same-batch matrix without any transpose.
    b_iota = lax.broadcasted_iota(jnp.int32, (S_PAD, S_PAD), 1)
    b_oh = jnp.where((b_iota == bid) & (real > 0), 1.0, 0.0).astype(f32)
    same = lax.dot_general(b_oh, b_oh, (((1,), (1,)), ((), ())),
                           preferred_element_type=f32)            # (16,16)
    ii = lax.broadcasted_iota(jnp.int32, (S_PAD, S_PAD), 0)
    jj = lax.broadcasted_iota(jnp.int32, (S_PAD, S_PAD), 1)
    same_b = same > 0.5
    pos = jnp.sum(jnp.where(same_b & (jj < ii), 1.0, 0.0),
                  axis=1, keepdims=True).astype(jnp.int32)        # (16,1) pos within batch
    # allowed: SOS key for everyone; causal-within-batch (incl. self) among real tokens
    allowed = (jj == 0) | (same_b & (ii >= jj))
    mask = jnp.where(allowed, 0.0, NEG_INF).astype(f32)           # (16,16)
    maskb = jnp.dot(G, mask, preferred_element_type=f32)          # (128,16) head-major tiles

    # ---- embedding: ONE multi-hot gather matmul -------------------------------
    # x[r] = wt[type] + wa[arg+1] + (bt+ba) + PE[pos]   (SOS row: just sos; pads: 0)
    cols = lax.broadcasted_iota(jnp.int32, (S_PAD, EMB_ROWS), 1)
    hot = cols == sel_bias
    if not no_acthist:
        hot = hot | (cols == sel_type) | (cols == sel_arg)
    if not no_posemb:
        pe_col = jnp.where(real > 0, PE_BASE + pos, -1)
        hot = hot | (cols == pe_col)
    sel_f = hot.astype(f32)                                        # (16, 64)
    x = jnp.dot(sel_f, slab_ref[OFF_EMB:OFF_EMB + EMB_ROWS, 0:d],
                preferred_element_type=f32)                        # (16, 32)

    def layer(x, w, v):
        # w (64,96): rows 0:32 = [Wq*scale | Wk | Wv], rows 32:64 = [Wo | W1 | W2]
        # v (4,96):  row0 [bq*scale|bk|bv]; row1 [bo|b1|b2]; row2 [g1|be1|g2]; row3 [be2|..]
        qkv = jnp.dot(x, w[0:d, :], preferred_element_type=f32) + v[0:1, :]   # (16,96)
        q = qkv[:, 0:d]
        k = qkv[:, d:2 * d]
        vv = qkv[:, 2 * d:3 * d]

        # head-major scores: replicate q to 128 rows (one MXU push), zero the
        # lanes outside each row's head, then ONE QK^T matmul covers all heads.
        qbig = jnp.dot(G, q, preferred_element_type=f32) * head_sel           # (128,32)
        s = lax.dot_general(qbig, k, (((1,), (1,)), ((), ())),
                            preferred_element_type=f32) + maskb               # (128,16)
        s = s - jnp.max(s, axis=-1, keepdims=True)
        e = jnp.exp(s)
        p = e * pl.reciprocal(jnp.sum(e, axis=-1, keepdims=True), approx=True)

        # ONE PV matmul for all heads; head_sel keeps each head's 4 lanes, the
        # 8 aligned 16-row blocks sum back into the lane-concatenated output.
        tmp = jnp.dot(p, vv, preferred_element_type=f32) * head_sel           # (128,32)
        attn = ((tmp[0:16] + tmp[16:32]) + (tmp[32:48] + tmp[48:64])
                + ((tmp[64:80] + tmp[80:96]) + (tmp[96:112] + tmp[112:128])))  # (16,32)

        wo = w[d:2 * d, 0:d]
        w1 = w[d:2 * d, d:2 * d]
        w2 = w[d:2 * d, 2 * d:3 * d]
        bo = v[1:2, 0:d]
        b1 = v[1:2, d:2 * d]
        b2 = v[1:2, 2 * d:3 * d]
        g1 = v[2:3, 0:d]
        be1 = v[2:3, d:2 * d]
        g2 = v[2:3, 2 * d:3 * d]
        be2 = v[3:4, 0:d]

        # residual + post-LN 1 (single pass: var = E[y^2] - mu^2)
        y = x + jnp.dot(attn, wo, preferred_element_type=f32) + bo
        mu = jnp.mean(y, axis=-1, keepdims=True)
        ms = jnp.mean(y * y, axis=-1, keepdims=True)
        y = (y - mu) * lax.rsqrt(ms - mu * mu + LN_EPS) * g1 + be1

        # feed-forward (ReLU) + residual + post-LN 2
        h1 = jnp.maximum(jnp.dot(y, w1, preferred_element_type=f32) + b1, 0.0)
        z = y + jnp.dot(h1, w2, preferred_element_type=f32) + b2
        mu2 = jnp.mean(z, axis=-1, keepdims=True)
        ms2 = jnp.mean(z * z, axis=-1, keepdims=True)
        return (z - mu2) * lax.rsqrt(ms2 - mu2 * mu2 + LN_EPS) * g2 + be2

    # TODO(synk): for very large per-call batches on v6e, the QKV/Wo/FF matmuls
    # of several sequences could additionally be stacked along the row axis
    # (toward the 256-wide MXU); kept per-sequence here for simplicity.
    wa = slab_ref[OFF_WA:OFF_WA + 64, :]
    va = slab_ref[OFF_VA:OFF_VA + 4, :]
    wb = slab_ref[OFF_WB:OFF_WB + 64, :]
    vb = slab_ref[OFF_VB:OFF_VB + 4, :]
    x = layer(x, wa, va)
    x = layer(x, wb, vb)
    out_ref[...] = x


# ============================== kernel wrappers ==============================

def subgoal_history_encoder_forward_batched(params, metas,
                                             ablate_no_acthist=False,
                                             ablate_no_posemb=False):
    """metas: (N, 16, 8) int32.  Returns (N, 16, 32); rows beyond T+1 are padding."""
    n = metas.shape[0]
    kern = functools.partial(_encoder_kernel,
                             no_acthist=ablate_no_acthist,
                             no_posemb=ablate_no_posemb)
    return pl.pallas_call(
        kern,
        out_shape=jax.ShapeDtypeStruct((n, S_PAD, DMODEL), jnp.float32),
        grid=(n,),
        in_specs=[
            pl.BlockSpec((None, S_PAD, META_COLS), lambda i: (i, 0, 0)),
            # constant index_map -> the packed weight slab stays resident in VMEM
            pl.BlockSpec((SLAB_ROWS, SLAB_COLS), lambda i: (0, 0)),
        ],
        out_specs=pl.BlockSpec((None, S_PAD, DMODEL), lambda i: (i, 0, 0)),
        compiler_params=pltpu.CompilerParams(
            dimension_semantics=("parallel",)),
    )(metas, params["slab"])


def subgoal_history_encoder_forward(params, action_seq, batch_id,
                                    ablate_no_acthist=False,
                                    ablate_no_posemb=False):
    """Single flat sequence, mirrors the PyTorch module's forward(action_seq, batch_id)."""
    T = action_seq.shape[0]
    meta = build_meta(action_seq, batch_id)
    out = subgoal_history_encoder_forward_batched(
        params, meta[None], ablate_no_acthist, ablate_no_posemb)
    return out[0, :T + 1, :]


def build_meta(action_seq, batch_id):
    """Tiny int32 prep: packs everything the kernel needs about the inputs
    into one (16, 8) block (single input DMA)."""
    T = action_seq.shape[0]
    assert T <= T_MAX, f"T={T} exceeds padded capacity {T_MAX}"
    a = action_seq.astype(jnp.int32)
    b = batch_id.astype(jnp.int32)
    sel_type = jnp.full((S_PAD,), -1, jnp.int32).at[1:T + 1].set(a[:, 0])
    sel_arg = jnp.full((S_PAD,), -1, jnp.int32).at[1:T + 1].set(TYPE_PAD + a[:, 1] + 1)
    sel_bias = (jnp.full((S_PAD,), -1, jnp.int32)
                .at[0].set(SOS_ROW).at[1:T + 1].set(BIAS_ROW))
    bid = jnp.zeros((S_PAD,), jnp.int32).at[1:T + 1].set(b)
    real = jnp.zeros((S_PAD,), jnp.int32).at[1:T + 1].set(1)
    pad = jnp.zeros((S_PAD,), jnp.int32)
    return jnp.stack([sel_type, sel_arg, sel_bias, bid, real, pad, pad, pad],
                     axis=1)                                       # (16, 8)


# ============================== parameter packing ============================

def _lin_init(key, din, dout, scale=0.05):
    kw, kb = jax.random.split(key)
    w = jax.random.normal(kw, (din, dout), jnp.float32) * scale
    b = jax.random.normal(kb, (1, dout), jnp.float32) * scale
    return w, b


def _pe_table():
    """Sinusoidal PE rows for integer positions 0..S_PAD-1 (precomputed once)."""
    pos = jnp.arange(S_PAD, dtype=jnp.float32)[:, None]
    idx = jnp.arange(0, DMODEL, 2, dtype=jnp.float32)
    div = jnp.exp(-math.log(10000.0) * idx / DMODEL)
    ang = pos * div[None, :]
    pe = jnp.zeros((S_PAD, DMODEL), jnp.float32)
    pe = pe.at[:, 0::2].set(jnp.sin(ang))
    pe = pe.at[:, 1::2].set(jnp.cos(ang))
    return pe


def _pack_layer(key):
    """One transformer layer -> (64,96) weight block + (8,96) vector block."""
    ks = jax.random.split(key, 6)
    wq, bq = _lin_init(ks[0], DMODEL, DMODEL)
    wk, bk = _lin_init(ks[1], DMODEL, DMODEL)
    wv, bv = _lin_init(ks[2], DMODEL, DMODEL)
    wo, bo = _lin_init(ks[3], DMODEL, DMODEL)
    w1, b1 = _lin_init(ks[4], DMODEL, DIM_FF)
    w2, b2 = _lin_init(ks[5], DIM_FF, DMODEL)
    scale = 1.0 / math.sqrt(HEAD_DIM)
    wq = wq * scale                       # fold 1/sqrt(d_head) into the Q projection
    bq = bq * scale
    g1 = jnp.ones((1, DMODEL), jnp.float32)
    be1 = jnp.zeros((1, DMODEL), jnp.float32)
    g2 = jnp.ones((1, DMODEL), jnp.float32)
    be2 = jnp.zeros((1, DMODEL), jnp.float32)

    W = jnp.concatenate(
        [jnp.concatenate([wq, wk, wv], axis=1),        # rows  0:32  = W_qkv
         jnp.concatenate([wo, w1, w2], axis=1)],       # rows 32:64  = [wo|w1|w2]
        axis=0)                                        # (64, 96)
    V = jnp.concatenate(
        [jnp.concatenate([bq, bk, bv], axis=1),
         jnp.concatenate([bo, b1, b2], axis=1),
         jnp.concatenate([g1, be1, g2], axis=1),
         jnp.concatenate([be2, jnp.zeros((1, 2 * DMODEL), jnp.float32)], axis=1),
         jnp.zeros((4, SLAB_COLS), jnp.float32)],      # pad to 8 rows (alignment)
        axis=0)                                        # (8, 96)
    return W.astype(jnp.float32), V.astype(jnp.float32)


def init_params(key):
    k_t, k_a, k_la, k_lb = jax.random.split(key, 4)
    wt, bt = _lin_init(k_t, NUM_ACTIONS, DMODEL)
    wa_, ba = _lin_init(k_a, NUM_OBJECTS + 1, DMODEL)
    sos = jnp.zeros((DMODEL,), jnp.float32)            # nn.Parameter(torch.zeros(dim))

    emb = jnp.zeros((EMB_ROWS, DMODEL), jnp.float32)
    emb = emb.at[0:NUM_ACTIONS].set(wt)
    emb = emb.at[TYPE_PAD:TYPE_PAD + NUM_OBJECTS + 1].set(wa_)
    emb = emb.at[BIAS_ROW].set((bt + ba)[0])
    emb = emb.at[SOS_ROW].set(sos)
    emb = emb.at[PE_BASE:PE_BASE + S_PAD].set(_pe_table())
    emb96 = jnp.concatenate(
        [emb, jnp.zeros((EMB_ROWS, SLAB_COLS - DMODEL), jnp.float32)], axis=1)

    Wa, Va = _pack_layer(k_la)
    Wb, Vb = _pack_layer(k_lb)

    # constant block: head selector (128x32, lanes 0:32) and 8x row-replicator G
    # (128x16, lanes 32:48) — precomputed so the kernel needs no iota div/shift.
    rows = jnp.arange(HS)[:, None]
    cols = jnp.arange(DMODEL)[None, :]
    head_sel = ((rows // S_PAD) == (cols // HEAD_DIM)).astype(jnp.float32)
    gcols = jnp.arange(S_PAD)[None, :]
    G = ((rows % S_PAD) == gcols).astype(jnp.float32)
    const = jnp.zeros((HS, SLAB_COLS), jnp.float32)
    const = const.at[:, 0:DMODEL].set(head_sel)
    const = const.at[:, DMODEL:DMODEL + S_PAD].set(G)

    slab = jnp.concatenate([emb96, Wa, Va, Wb, Vb, const], axis=0)
    assert slab.shape == (SLAB_ROWS, SLAB_COLS), slab.shape
    return {"slab": slab}


# =================================== main ====================================

if __name__ == "__main__":
    key = jax.random.PRNGKey(0)
    k_params, k_t1, k_a1, k_t2, k_a2 = jax.random.split(key, 5)

    params = init_params(k_params)

    T = 8
    batch_id = jnp.array([0, 0, 0, 0, 1, 1, 1, 1], dtype=jnp.int32)
    act_type = jax.random.randint(k_t1, (T, 1), 0, NUM_ACTIONS)
    act_arg = jax.random.randint(k_a1, (T, 1), -1, NUM_OBJECTS)    # -1 = no arg
    action_seq = jnp.concatenate([act_type, act_arg], axis=1).astype(jnp.int32)

    # single-sequence forward (module semantics): (T+1, D)
    out = subgoal_history_encoder_forward(params, action_seq, batch_id)
    out = jax.block_until_ready(out)
    assert out.shape == (T + 1, DMODEL), out.shape
    assert bool(jnp.all(jnp.isfinite(out)))

    # batched forward: 4 sequences through one pallas_call (parallel grid axis,
    # weight slab resident across grid steps)
    act_type2 = jax.random.randint(k_t2, (T, 1), 0, NUM_ACTIONS)
    act_arg2 = jax.random.randint(k_a2, (T, 1), -1, NUM_OBJECTS)
    action_seq2 = jnp.concatenate([act_type2, act_arg2], axis=1).astype(jnp.int32)
    batch_id2 = jnp.array([0, 0, 1, 1, 1, 2, 2, 2], dtype=jnp.int32)
    metas = jnp.stack([build_meta(action_seq, batch_id),
                       build_meta(action_seq2, batch_id2),
                       build_meta(action_seq, batch_id2),
                       build_meta(action_seq2, batch_id)], axis=0)
    out_b = subgoal_history_encoder_forward_batched(params, metas)
    out_b = jax.block_until_ready(out_b)
    assert out_b.shape == (4, S_PAD, DMODEL), out_b.shape
    assert bool(jnp.all(jnp.isfinite(out_b)))
    assert bool(jnp.allclose(out_b[0, :T + 1], out, rtol=1e-4, atol=1e-4))

    print("KERNEL_OK")
</pallas_src>

<mosaic_0001>
module attributes {stable_mosaic.version = 11 : i64} {
  func.func @_encoder_kernel(%arg0: i32, %arg1: memref<1x16x8xi32, #tpu.memory_space<vmem>>, %arg2: memref<336x96xf32, #tpu.memory_space<vmem>>, %arg3: memref<1x16x32xf32, #tpu.memory_space<vmem>>) attributes {dimension_semantics = [#tpu.dimension_semantics<parallel>], iteration_bounds = array<i64: 1>, scalar_prefetch = 0 : i64, scratch_operands = 0 : i64, tpu.core_type = #tpu.core_type<tc>, window_params = [{transform_indices = @transform_0, window_bounds = array<i64: 1, 16, 8>}, {pipeline_mode = #tpu.pipeline_mode<synchronous>, transform_indices = @transform_1, window_bounds = array<i64: 336, 96>}, {transform_indices = @transform_2, window_bounds = array<i64: 1, 16, 32>}]} {
    %c208 = arith.constant 208 : index
    %c0 = arith.constant 0 : index
    %0 = vector.load %arg2[%c208, %c0] : memref<336x96xf32, #tpu.memory_space<vmem>>, vector<128x32xf32>
    %c208_0 = arith.constant 208 : index
    %c32 = arith.constant 32 : index
    %1 = vector.load %arg2[%c208_0, %c32] : memref<336x96xf32, #tpu.memory_space<vmem>>, vector<128x16xf32>
    %c0_1 = arith.constant 0 : index
    %c0_2 = arith.constant 0 : index
    %c0_3 = arith.constant 0 : index
    %2 = vector.load %arg1[%c0_1, %c0_2, %c0_3] : memref<1x16x8xi32, #tpu.memory_space<vmem>>, vector<1x16x1xi32>
    %3 = vector.shape_cast %2 : vector<1x16x1xi32> to vector<16x1xi32>
    %c0_4 = arith.constant 0 : index
    %c0_5 = arith.constant 0 : index
    %c1 = arith.constant 1 : index
    %4 = vector.load %arg1[%c0_4, %c0_5, %c1] : memref<1x16x8xi32, #tpu.memory_space<vmem>>, vector<1x16x1xi32>
    %5 = vector.shape_cast %4 : vector<1x16x1xi32> to vector<16x1xi32>
    %c0_6 = arith.constant 0 : index
    %c0_7 = arith.constant 0 : index
    %c2 = arith.constant 2 : index
    %6 = vector.load %arg1[%c0_6, %c0_7, %c2] : memref<1x16x8xi32, #tpu.memory_space<vmem>>, vector<1x16x1xi32>
    %7 = vector.shape_cast %6 : vector<1x16x1xi32> to vector<16x1xi32>
    %c0_8 = arith.constant 0 : index
    %c0_9 = arith.constant 0 : index
    %c3 = arith.constant 3 : index
    %8 = vector.load %arg1[%c0_8, %c0_9, %c3] : memref<1x16x8xi32, #tpu.memory_space<vmem>>, vector<1x16x1xi32>
    %9 = vector.shape_cast %8 : vector<1x16x1xi32> to vector<16x1xi32>
    %c0_10 = arith.constant 0 : index
    %c0_11 = arith.constant 0 : index
    %c4 = arith.constant 4 : index
    %10 = vector.load %arg1[%c0_10, %c0_11, %c4] : memref<1x16x8xi32, #tpu.memory_space<vmem>>, vector<1x16x1xi32>
    %11 = vector.shape_cast %10 : vector<1x16x1xi32> to vector<16x1xi32>
    %12 = tpu.iota {dimensions = array<i32: 1>} : vector<16x16xi32>
    %13 = vector.broadcast %9 : vector<16x1xi32> to vector<16x16xi32>
    %14 = arith.cmpi eq, %12, %13 : vector<16x16xi32>
    %c0_i32 = arith.constant 0 : i32
    %15 = vector.broadcast %c0_i32 : i32 to vector<16x1xi32>
    %16 = arith.cmpi sgt, %11, %15 : vector<16x1xi32>
    %17 = vector.broadcast %16 : vector<16x1xi1> to vector<16x16xi1>
    %18 = arith.andi %14, %17 : vector<16x16xi1>
    %cst = arith.constant 1.000000e+00 : f32
    %cst_12 = arith.constant 0.000000e+00 : f32
    %19 = vector.broadcast %cst : f32 to vector<16x16xf32>
    %20 = vector.broadcast %cst_12 : f32 to vector<16x16xf32>
    %21 = arith.select %18, %19, %20 : vector<16x16xi1>, vector<16x16xf32>
    %cst_13 = arith.constant dense<0.000000e+00> : vector<16x16xf32>
    %22 = tpu.matmul %21, %21, %cst_13 {dimension_numbers = #tpu.dot_dimension_numbers<[1], [1], [0], [0], [0, 0, 1, 0], [], []>} : vector<16x16xf32>, vector<16x16xf32>, vector<16x16xf32> -> vector<16x16xf32>
    %23 = tpu.iota {dimensions = array<i32: 0>} : vector<16x16xi32>
    %24 = tpu.iota {dimensions = array<i32: 1>} : vector<16x16xi32>
    %cst_14 = arith.constant 5.000000e-01 : f32
    %25 = vector.broadcast %cst_14 : f32 to vector<16x16xf32>
    %26 = arith.cmpf ogt, %22, %25 : vector<16x16xf32>
    %27 = arith.cmpi slt, %24, %23 : vector<16x16xi32>
    %28 = arith.andi %26, %27 : vector<16x16xi1>
    %cst_15 = arith.constant 1.000000e+00 : f32
    %cst_16 = arith.constant 0.000000e+00 : f32
    %29 = vector.broadcast %cst_15 : f32 to vector<16x16xf32>
    %30 = vector.broadcast %cst_16 : f32 to vector<16x16xf32>
    %31 = arith.select %28, %29, %30 : vector<16x16xi1>, vector<16x16xf32>
    %cst_17 = arith.constant dense<0.000000e+00> : vector<16xf32>
    %32 = vector.multi_reduction <add>, %31, %cst_17 [1] : vector<16x16xf32> to vector<16xf32>
    %33 = vector.shape_cast %32 : vector<16xf32> to vector<16x1xf32>
    %34 = arith.fptosi %33 : vector<16x1xf32> to vector<16x1xi32>
    %c0_i32_18 = arith.constant 0 : i32
    %35 = vector.broadcast %c0_i32_18 : i32 to vector<16x16xi32>
    %36 = arith.cmpi eq, %24, %35 : vector<16x16xi32>
    %37 = arith.cmpi sge, %23, %24 : vector<16x16xi32>
    %38 = arith.andi %26, %37 : vector<16x16xi1>
    %39 = arith.ori %36, %38 : vector<16x16xi1>
    %cst_19 = arith.constant 0.000000e+00 : f32
    %cst_20 = arith.constant -1.000000e+09 : f32
    %40 = vector.broadcast %cst_19 : f32 to vector<16x16xf32>
    %41 = vector.broadcast %cst_20 : f32 to vector<16x16xf32>
    %42 = arith.select %39, %40, %41 : vector<16x16xi1>, vector<16x16xf32>
    %cst_21 = arith.constant dense<0.000000e+00> : vector<128x16xf32>
    %43 = tpu.matmul %1, %42, %cst_21 {dimension_numbers = #tpu.dot_dimension_numbers<[1], [0], [0], [1], [0, 0, 1, 1], [], []>} : vector<128x16xf32>, vector<16x16xf32>, vector<128x16xf32> -> vector<128x16xf32>
    %44 = tpu.iota {dimensions = array<i32: 1>} : vector<16x64xi32>
    %45 = vector.broadcast %7 : vector<16x1xi32> to vector<16x64xi32>
    %46 = arith.cmpi eq, %44, %45 : vector<16x64xi32>
    %47 = vector.broadcast %3 : vector<16x1xi32> to vector<16x64xi32>
    %48 = arith.cmpi eq, %44, %47 : vector<16x64xi32>
    %49 = arith.ori %46, %48 : vector<16x64xi1>
    %50 = vector.broadcast %5 : vector<16x1xi32> to vector<16x64xi32>
    %51 = arith.cmpi eq, %44, %50 : vector<16x64xi32>
    %52 = arith.ori %49, %51 : vector<16x64xi1>
    %c0_i32_22 = arith.constant 0 : i32
    %53 = vector.broadcast %c0_i32_22 : i32 to vector<16x1xi32>
    %54 = arith.cmpi sgt, %11, %53 : vector<16x1xi32>
    %c48_i32 = arith.constant 48 : i32
    %55 = vector.broadcast %c48_i32 : i32 to vector<16x1xi32>
    %56 = arith.addi %55, %34 : vector<16x1xi32>
    %c-1_i32 = arith.constant -1 : i32
    %57 = vector.broadcast %c-1_i32 : i32 to vector<16x1xi32>
    %58 = arith.select %54, %56, %57 : vector<16x1xi1>, vector<16x1xi32>
    %59 = vector.broadcast %58 : vector<16x1xi32> to vector<16x64xi32>
    %60 = arith.cmpi eq, %44, %59 : vector<16x64xi32>
    %61 = arith.ori %52, %60 : vector<16x64xi1>
    %62 = arith.extui %61 : vector<16x64xi1> to vector<16x64xi32>
    %63 = arith.sitofp %62 : vector<16x64xi32> to vector<16x64xf32>
    %c0_23 = arith.constant 0 : index
    %c0_24 = arith.constant 0 : index
    %64 = vector.load %arg2[%c0_23, %c0_24] : memref<336x96xf32, #tpu.memory_space<vmem>>, vector<64x32xf32>
    %cst_25 = arith.constant dense<0.000000e+00> : vector<16x32xf32>
    %65 = tpu.matmul %63, %64, %cst_25 {dimension_numbers = #tpu.dot_dimension_numbers<[1], [0], [0], [1], [0, 0, 1, 1], [], []>} : vector<16x64xf32>, vector<64x32xf32>, vector<16x32xf32> -> vector<16x32xf32>
    %c64 = arith.constant 64 : index
    %c0_26 = arith.constant 0 : index
    %66 = vector.load %arg2[%c64, %c0_26] : memref<336x96xf32, #tpu.memory_space<vmem>>, vector<64x96xf32>
    %c128 = arith.constant 128 : index
    %c0_27 = arith.constant 0 : index
    %67 = vector.load %arg2[%c128, %c0_27] : memref<336x96xf32, #tpu.memory_space<vmem>>, vector<4x96xf32>
    %c136 = arith.constant 136 : index
    %c0_28 = arith.constant 0 : index
    %68 = vector.load %arg2[%c136, %c0_28] : memref<336x96xf32, #tpu.memory_space<vmem>>, vector<64x96xf32>
    %c200 = arith.constant 200 : index
    %c0_29 = arith.constant 0 : index
    %69 = vector.load %arg2[%c200, %c0_29] : memref<336x96xf32, #tpu.memory_space<vmem>>, vector<4x96xf32>
    %70 = vector.extract_strided_slice %66 {offsets = [0, 0], sizes = [32, 96], strides = [1, 1]} : vector<64x96xf32> to vector<32x96xf32>
    %cst_30 = arith.constant dense<0.000000e+00> : vector<16x96xf32>
    %71 = tpu.matmul %65, %70, %cst_30 {dimension_numbers = #tpu.dot_dimension_numbers<[1], [0], [0], [1], [0, 0, 1, 1], [], []>} : vector<16x32xf32>, vector<32x96xf32>, vector<16x96xf32> -> vector<16x96xf32>
    %72 = vector.extract_strided_slice %67 {offsets = [0, 0], sizes = [1, 96], strides = [1, 1]} : vector<4x96xf32> to vector<1x96xf32>
    %73 = vector.broadcast %72 : vector<1x96xf32> to vector<16x96xf32>
    %74 = arith.addf %71, %73 : vector<16x96xf32>
    %75 = vector.extract_strided_slice %74 {offsets = [0, 0], sizes = [16, 32], strides = [1, 1]} : vector<16x96xf32> to vector<16x32xf32>
    %76 = vector.extract_strided_slice %74 {offsets = [0, 32], sizes = [16, 32], strides = [1, 1]} : vector<16x96xf32> to vector<16x32xf32>
    %77 = vector.extract_strided_slice %74 {offsets = [0, 64], sizes = [16, 32], strides = [1, 1]} : vector<16x96xf32> to vector<16x32xf32>
    %cst_31 = arith.constant dense<0.000000e+00> : vector<128x32xf32>
    %78 = tpu.matmul %1, %75, %cst_31 {dimension_numbers = #tpu.dot_dimension_numbers<[1], [0], [0], [1], [0, 0, 1, 1], [], []>} : vector<128x16xf32>, vector<16x32xf32>, vector<128x32xf32> -> vector<128x32xf32>
    %79 = arith.mulf %78, %0 : vector<128x32xf32>
    %cst_32 = arith.constant dense<0.000000e+00> : vector<128x16xf32>
    %80 = tpu.matmul %79, %76, %cst_32 {dimension_numbers = #tpu.dot_dimension_numbers<[1], [1], [0], [0], [0, 0, 1, 0], [], []>} : vector<128x32xf32>, vector<16x32xf32>, vector<128x16xf32> -> vector<128x16xf32>
    %81 = arith.addf %80, %43 : vector<128x16xf32>
    %cst_33 = arith.constant dense<0xFF800000> : vector<128xf32>
    %82 = vector.multi_reduction <maximumf>, %81, %cst_33 [1] : vector<128x16xf32> to vector<128xf32>
    %83 = vector.shape_cast %82 : vector<128xf32> to vector<128x1xf32>
    %84 = vector.broadcast %83 : vector<128x1xf32> to vector<128x16xf32>
    %85 = arith.subf %81, %84 : vector<128x16xf32>
    %86 = math.exp %85 : vector<128x16xf32>
    %cst_34 = arith.constant dense<0.000000e+00> : vector<128xf32>
    %87 = vector.multi_reduction <add>, %86, %cst_34 [1] : vector<128x16xf32> to vector<128xf32>
    %88 = vector.shape_cast %87 : vector<128xf32> to vector<128x1xf32>
    %89 = tpu.reciprocal %88 {approx = true} : vector<128x1xf32> -> vector<128x1xf32>
    %90 = vector.broadcast %89 : vector<128x1xf32> to vector<128x16xf32>
    %91 = arith.mulf %86, %90 : vector<128x16xf32>
    %cst_35 = arith.constant dense<0.000000e+00> : vector<128x32xf32>
    %92 = tpu.matmul %91, %77, %cst_35 {dimension_numbers = #tpu.dot_dimension_numbers<[1], [0], [0], [1], [0, 0, 1, 1], [], []>} : vector<128x16xf32>, vector<16x32xf32>, vector<128x32xf32> -> vector<128x32xf32>
    %93 = arith.mulf %92, %0 : vector<128x32xf32>
    %94 = vector.extract_strided_slice %93 {offsets = [0, 0], sizes = [16, 32], strides = [1, 1]} : vector<128x32xf32> to vector<16x32xf32>
    %95 = vector.extract_strided_slice %93 {offsets = [16, 0], sizes = [16, 32], strides = [1, 1]} : vector<128x32xf32> to vector<16x32xf32>
    %96 = arith.addf %94, %95 : vector<16x32xf32>
    %97 = vector.extract_strided_slice %93 {offsets = [32, 0], sizes = [16, 32], strides = [1, 1]} : vector<128x32xf32> to vector<16x32xf32>
    %98 = vector.extract_strided_slice %93 {offsets = [48, 0], sizes = [16, 32], strides = [1, 1]} : vector<128x32xf32> to vector<16x32xf32>
    %99 = arith.addf %97, %98 : vector<16x32xf32>
    %100 = arith.addf %96, %99 : vector<16x32xf32>
    %101 = vector.extract_strided_slice %93 {offsets = [64, 0], sizes = [16, 32], strides = [1, 1]} : vector<128x32xf32> to vector<16x32xf32>
    %102 = vector.extract_strided_slice %93 {offsets = [80, 0], sizes = [16, 32], strides = [1, 1]} : vector<128x32xf32> to vector<16x32xf32>
    %103 = arith.addf %101, %102 : vector<16x32xf32>
    %104 = vector.extract_strided_slice %93 {offsets = [96, 0], sizes = [16, 32], strides = [1, 1]} : vector<128x32xf32> to vector<16x32xf32>
    %105 = vector.extract_strided_slice %93 {offsets = [112, 0], sizes = [16, 32], strides = [1, 1]} : vector<128x32xf32> to vector<16x32xf32>
    %106 = arith.addf %104, %105 : vector<16x32xf32>
    %107 = arith.addf %103, %106 : vector<16x32xf32>
    %108 = arith.addf %100, %107 : vector<16x32xf32>
    %109 = vector.extract_strided_slice %66 {offsets = [32, 0], sizes = [32, 32], strides = [1, 1]} : vector<64x96xf32> to vector<32x32xf32>
    %110 = vector.extract_strided_slice %66 {offsets = [32, 32], sizes = [32, 32], strides = [1, 1]} : vector<64x96xf32> to vector<32x32xf32>
    %111 = vector.extract_strided_slice %66 {offsets = [32, 64], sizes = [32, 32], strides = [1, 1]} : vector<64x96xf32> to vector<32x32xf32>
    %112 = vector.extract_strided_slice %67 {offsets = [1, 0], sizes = [1, 32], strides = [1, 1]} : vector<4x96xf32> to vector<1x32xf32>
    %113 = vector.extract_strided_slice %67 {offsets = [1, 32], sizes = [1, 32], strides = [1, 1]} : vector<4x96xf32> to vector<1x32xf32>
    %114 = vector.extract_strided_slice %67 {offsets = [1, 64], sizes = [1, 32], strides = [1, 1]} : vector<4x96xf32> to vector<1x32xf32>
    %115 = vector.extract_strided_slice %67 {offsets = [2, 0], sizes = [1, 32], strides = [1, 1]} : vector<4x96xf32> to vector<1x32xf32>
    %116 = vector.extract_strided_slice %67 {offsets = [2, 32], sizes = [1, 32], strides = [1, 1]} : vector<4x96xf32> to vector<1x32xf32>
    %117 = vector.extract_strided_slice %67 {offsets = [2, 64], sizes = [1, 32], strides = [1, 1]} : vector<4x96xf32> to vector<1x32xf32>
    %118 = vector.extract_strided_slice %67 {offsets = [3, 0], sizes = [1, 32], strides = [1, 1]} : vector<4x96xf32> to vector<1x32xf32>
    %cst_36 = arith.constant dense<0.000000e+00> : vector<16x32xf32>
    %119 = tpu.matmul %108, %109, %cst_36 {dimension_numbers = #tpu.dot_dimension_numbers<[1], [0], [0], [1], [0, 0, 1, 1], [], []>} : vector<16x32xf32>, vector<32x32xf32>, vector<16x32xf32> -> vector<16x32xf32>
    %120 = arith.addf %65, %119 : vector<16x32xf32>
    %121 = vector.broadcast %112 : vector<1x32xf32> to vector<16x32xf32>
    %122 = arith.addf %120, %121 : vector<16x32xf32>
    %cst_37 = arith.constant dense<0.000000e+00> : vector<16xf32>
    %123 = vector.multi_reduction <add>, %122, %cst_37 [1] : vector<16x32xf32> to vector<16xf32>
    %124 = vector.shape_cast %123 : vector<16xf32> to vector<16x1xf32>
    %cst_38 = arith.constant 3.200000e+01 : f32
    %125 = vector.broadcast %cst_38 : f32 to vector<16x1xf32>
    %126 = arith.divf %124, %125 : vector<16x1xf32>
    %127 = arith.mulf %122, %122 : vector<16x32xf32>
    %cst_39 = arith.constant dense<0.000000e+00> : vector<16xf32>
    %128 = vector.multi_reduction <add>, %127, %cst_39 [1] : vector<16x32xf32> to vector<16xf32>
    %129 = vector.shape_cast %128 : vector<16xf32> to vector<16x1xf32>
    %cst_40 = arith.constant 3.200000e+01 : f32
    %130 = vector.broadcast %cst_40 : f32 to vector<16x1xf32>
    %131 = arith.divf %129, %130 : vector<16x1xf32>
    %132 = vector.broadcast %126 : vector<16x1xf32> to vector<16x32xf32>
    %133 = arith.subf %122, %132 : vector<16x32xf32>
    %134 = arith.mulf %126, %126 : vector<16x1xf32>
    %135 = arith.subf %131, %134 : vector<16x1xf32>
    %cst_41 = arith.constant 9.99999974E-6 : f32
    %136 = vector.broadcast %cst_41 : f32 to vector<16x1xf32>
    %137 = arith.addf %135, %136 : vector<16x1xf32>
    %138 = math.rsqrt %137 : vector<16x1xf32>
    %139 = vector.broadcast %138 : vector<16x1xf32> to vector<16x32xf32>
    %140 = arith.mulf %133, %139 : vector<16x32xf32>
    %141 = vector.broadcast %115 : vector<1x32xf32> to vector<16x32xf32>
    %142 = arith.mulf %140, %141 : vector<16x32xf32>
    %143 = vector.broadcast %116 : vector<1x32xf32> to vector<16x32xf32>
    %144 = arith.addf %142, %143 : vector<16x32xf32>
    %cst_42 = arith.constant dense<0.000000e+00> : vector<16x32xf32>
    %145 = tpu.matmul %144, %110, %cst_42 {dimension_numbers = #tpu.dot_dimension_numbers<[1], [0], [0], [1], [0, 0, 1, 1], [], []>} : vector<16x32xf32>, vector<32x32xf32>, vector<16x32xf32> -> vector<16x32xf32>
    %146 = vector.broadcast %113 : vector<1x32xf32> to vector<16x32xf32>
    %147 = arith.addf %145, %146 : vector<16x32xf32>
    %cst_43 = arith.constant 0.000000e+00 : f32
    %148 = vector.broadcast %cst_43 : f32 to vector<16x32xf32>
    %149 = arith.maximumf %147, %148 : vector<16x32xf32>
    %cst_44 = arith.constant dense<0.000000e+00> : vector<16x32xf32>
    %150 = tpu.matmul %149, %111, %cst_44 {dimension_numbers = #tpu.dot_dimension_numbers<[1], [0], [0], [1], [0, 0, 1, 1], [], []>} : vector<16x32xf32>, vector<32x32xf32>, vector<16x32xf32> -> vector<16x32xf32>
    %151 = arith.addf %144, %150 : vector<16x32xf32>
    %152 = vector.broadcast %114 : vector<1x32xf32> to vector<16x32xf32>
    %153 = arith.addf %151, %152 : vector<16x32xf32>
    %cst_45 = arith.constant dense<0.000000e+00> : vector<16xf32>
    %154 = vector.multi_reduction <add>, %153, %cst_45 [1] : vector<16x32xf32> to vector<16xf32>
    %155 = vector.shape_cast %154 : vector<16xf32> to vector<16x1xf32>
    %cst_46 = arith.constant 3.200000e+01 : f32
    %156 = vector.broadcast %cst_46 : f32 to vector<16x1xf32>
    %157 = arith.divf %155, %156 : vector<16x1xf32>
    %158 = arith.mulf %153, %153 : vector<16x32xf32>
    %cst_47 = arith.constant dense<0.000000e+00> : vector<16xf32>
    %159 = vector.multi_reduction <add>, %158, %cst_47 [1] : vector<16x32xf32> to vector<16xf32>
    %160 = vector.shape_cast %159 : vector<16xf32> to vector<16x1xf32>
    %cst_48 = arith.constant 3.200000e+01 : f32
    %161 = vector.broadcast %cst_48 : f32 to vector<16x1xf32>
    %162 = arith.divf %160, %161 : vector<16x1xf32>
    %163 = vector.broadcast %157 : vector<16x1xf32> to vector<16x32xf32>
    %164 = arith.subf %153, %163 : vector<16x32xf32>
    %165 = arith.mulf %157, %157 : vector<16x1xf32>
    %166 = arith.subf %162, %165 : vector<16x1xf32>
    %cst_49 = arith.constant 9.99999974E-6 : f32
    %167 = vector.broadcast %cst_49 : f32 to vector<16x1xf32>
    %168 = arith.addf %166, %167 : vector<16x1xf32>
    %169 = math.rsqrt %168 : vector<16x1xf32>
    %170 = vector.broadcast %169 : vector<16x1xf32> to vector<16x32xf32>
    %171 = arith.mulf %164, %170 : vector<16x32xf32>
    %172 = vector.broadcast %117 : vector<1x32xf32> to vector<16x32xf32>
    %173 = arith.mulf %171, %172 : vector<16x32xf32>
    %174 = vector.broadcast %118 : vector<1x32xf32> to vector<16x32xf32>
    %175 = arith.addf %173, %174 : vector<16x32xf32>
    %176 = vector.extract_strided_slice %68 {offsets = [0, 0], sizes = [32, 96], strides = [1, 1]} : vector<64x96xf32> to vector<32x96xf32>
    %cst_50 = arith.constant dense<0.000000e+00> : vector<16x96xf32>
    %177 = tpu.matmul %175, %176, %cst_50 {dimension_numbers = #tpu.dot_dimension_numbers<[1], [0], [0], [1], [0, 0, 1, 1], [], []>} : vector<16x32xf32>, vector<32x96xf32>, vector<16x96xf32> -> vector<16x96xf32>
    %178 = vector.extract_strided_slice %69 {offsets = [0, 0], sizes = [1, 96], strides = [1, 1]} : vector<4x96xf32> to vector<1x96xf32>
    %179 = vector.broadcast %178 : vector<1x96xf32> to vector<16x96xf32>
    %180 = arith.addf %177, %179 : vector<16x96xf32>
    %181 = vector.extract_strided_slice %180 {offsets = [0, 0], sizes = [16, 32], strides = [1, 1]} : vector<16x96xf32> to vector<16x32xf32>
    %182 = vector.extract_strided_slice %180 {offsets = [0, 32], sizes = [16, 32], strides = [1, 1]} : vector<16x96xf32> to vector<16x32xf32>
    %183 = vector.extract_strided_slice %180 {offsets = [0, 64], sizes = [16, 32], strides = [1, 1]} : vector<16x96xf32> to vector<16x32xf32>
    %cst_51 = arith.constant dense<0.000000e+00> : vector<128x32xf32>
    %184 = tpu.matmul %1, %181, %cst_51 {dimension_numbers = #tpu.dot_dimension_numbers<[1], [0], [0], [1], [0, 0, 1, 1], [], []>} : vector<128x16xf32>, vector<16x32xf32>, vector<128x32xf32> -> vector<128x32xf32>
    %185 = arith.mulf %184, %0 : vector<128x32xf32>
    %cst_52 = arith.constant dense<0.000000e+00> : vector<128x16xf32>
    %186 = tpu.matmul %185, %182, %cst_52 {dimension_numbers = #tpu.dot_dimension_numbers<[1], [1], [0], [0], [0, 0, 1, 0], [], []>} : vector<128x32xf32>, vector<16x32xf32>, vector<128x16xf32> -> vector<128x16xf32>
    %187 = arith.addf %186, %43 : vector<128x16xf32>
    %cst_53 = arith.constant dense<0xFF800000> : vector<128xf32>
    %188 = vector.multi_reduction <maximumf>, %187, %cst_53 [1] : vector<128x16xf32> to vector<128xf32>
    %189 = vector.shape_cast %188 : vector<128xf32> to vector<128x1xf32>
    %190 = vector.broadcast %189 : vector<128x1xf32> to vector<128x16xf32>
    %191 = arith.subf %187, %190 : vector<128x16xf32>
    %192 = math.exp %191 : vector<128x16xf32>
    %cst_54 = arith.constant dense<0.000000e+00> : vector<128xf32>
    %193 = vector.multi_reduction <add>, %192, %cst_54 [1] : vector<128x16xf32> to vector<128xf32>
    %194 = vector.shape_cast %193 : vector<128xf32> to vector<128x1xf32>
    %195 = tpu.reciprocal %194 {approx = true} : vector<128x1xf32> -> vector<128x1xf32>
    %196 = vector.broadcast %195 : vector<128x1xf32> to vector<128x16xf32>
    %197 = arith.mulf %192, %196 : vector<128x16xf32>
    %cst_55 = arith.constant dense<0.000000e+00> : vector<128x32xf32>
    %198 = tpu.matmul %197, %183, %cst_55 {dimension_numbers = #tpu.dot_dimension_numbers<[1], [0], [0], [1], [0, 0, 1, 1], [], []>} : vector<128x16xf32>, vector<16x32xf32>, vector<128x32xf32> -> vector<128x32xf32>
    %199 = arith.mulf %198, %0 : vector<128x32xf32>
    %200 = vector.extract_strided_slice %199 {offsets = [0, 0], sizes = [16, 32], strides = [1, 1]} : vector<128x32xf32> to vector<16x32xf32>
    %201 = vector.extract_strided_slice %199 {offsets = [16, 0], sizes = [16, 32], strides = [1, 1]} : vector<128x32xf32> to vector<16x32xf32>
    %202 = arith.addf %200, %201 : vector<16x32xf32>
    %203 = vector.extract_strided_slice %199 {offsets = [32, 0], sizes = [16, 32], strides = [1, 1]} : vector<128x32xf32> to vector<16x32xf32>
    %204 = vector.extract_strided_slice %199 {offsets = [48, 0], sizes = [16, 32], strides = [1, 1]} : vector<128x32xf32> to vector<16x32xf32>
    %205 = arith.addf %203, %204 : vector<16x32xf32>
    %206 = arith.addf %202, %205 : vector<16x32xf32>
    %207 = vector.extract_strided_slice %199 {offsets = [64, 0], sizes = [16, 32], strides = [1, 1]} : vector<128x32xf32> to vector<16x32xf32>
    %208 = vector.extract_strided_slice %199 {offsets = [80, 0], sizes = [16, 32], strides = [1, 1]} : vector<128x32xf32> to vector<16x32xf32>
    %209 = arith.addf %207, %208 : vector<16x32xf32>
    %210 = vector.extract_strided_slice %199 {offsets = [96, 0], sizes = [16, 32], strides = [1, 1]} : vector<128x32xf32> to vector<16x32xf32>
    %211 = vector.extract_strided_slice %199 {offsets = [112, 0], sizes = [16, 32], strides = [1, 1]} : vector<128x32xf32> to vector<16x32xf32>
    %212 = arith.addf %210, %211 : vector<16x32xf32>
    %213 = arith.addf %209, %212 : vector<16x32xf32>
    %214 = arith.addf %206, %213 : vector<16x32xf32>
    %215 = vector.extract_strided_slice %68 {offsets = [32, 0], sizes = [32, 32], strides = [1, 1]} : vector<64x96xf32> to vector<32x32xf32>
    %216 = vector.extract_strided_slice %68 {offsets = [32, 32], sizes = [32, 32], strides = [1, 1]} : vector<64x96xf32> to vector<32x32xf32>
    %217 = vector.extract_strided_slice %68 {offsets = [32, 64], sizes = [32, 32], strides = [1, 1]} : vector<64x96xf32> to vector<32x32xf32>
    %218 = vector.extract_strided_slice %69 {offsets = [1, 0], sizes = [1, 32], strides = [1, 1]} : vector<4x96xf32> to vector<1x32xf32>
    %219 = vector.extract_strided_slice %69 {offsets = [1, 32], sizes = [1, 32], strides = [1, 1]} : vector<4x96xf32> to vector<1x32xf32>
    %220 = vector.extract_strided_slice %69 {offsets = [1, 64], sizes = [1, 32], strides = [1, 1]} : vector<4x96xf32> to vector<1x32xf32>
    %221 = vector.extract_strided_slice %69 {offsets = [2, 0], sizes = [1, 32], strides = [1, 1]} : vector<4x96xf32> to vector<1x32xf32>
    %222 = vector.extract_strided_slice %69 {offsets = [2, 32], sizes = [1, 32], strides = [1, 1]} : vector<4x96xf32> to vector<1x32xf32>
    %223 = vector.extract_strided_slice %69 {offsets = [2, 64], sizes = [1, 32], strides = [1, 1]} : vector<4x96xf32> to vector<1x32xf32>
    %224 = vector.extract_strided_slice %69 {offsets = [3, 0], sizes = [1, 32], strides = [1, 1]} : vector<4x96xf32> to vector<1x32xf32>
    %cst_56 = arith.constant dense<0.000000e+00> : vector<16x32xf32>
    %225 = tpu.matmul %214, %215, %cst_56 {dimension_numbers = #tpu.dot_dimension_numbers<[1], [0], [0], [1], [0, 0, 1, 1], [], []>} : vector<16x32xf32>, vector<32x32xf32>, vector<16x32xf32> -> vector<16x32xf32>
    %226 = arith.addf %175, %225 : vector<16x32xf32>
    %227 = vector.broadcast %218 : vector<1x32xf32> to vector<16x32xf32>
    %228 = arith.addf %226, %227 : vector<16x32xf32>
    %cst_57 = arith.constant dense<0.000000e+00> : vector<16xf32>
    %229 = vector.multi_reduction <add>, %228, %cst_57 [1] : vector<16x32xf32> to vector<16xf32>
    %230 = vector.shape_cast %229 : vector<16xf32> to vector<16x1xf32>
    %cst_58 = arith.constant 3.200000e+01 : f32
    %231 = vector.broadcast %cst_58 : f32 to vector<16x1xf32>
    %232 = arith.divf %230, %231 : vector<16x1xf32>
    %233 = arith.mulf %228, %228 : vector<16x32xf32>
    %cst_59 = arith.constant dense<0.000000e+00> : vector<16xf32>
    %234 = vector.multi_reduction <add>, %233, %cst_59 [1] : vector<16x32xf32> to vector<16xf32>
    %235 = vector.shape_cast %234 : vector<16xf32> to vector<16x1xf32>
    %cst_60 = arith.constant 3.200000e+01 : f32
    %236 = vector.broadcast %cst_60 : f32 to vector<16x1xf32>
    %237 = arith.divf %235, %236 : vector<16x1xf32>
    %238 = vector.broadcast %232 : vector<16x1xf32> to vector<16x32xf32>
    %239 = arith.subf %228, %238 : vector<16x32xf32>
    %240 = arith.mulf %232, %232 : vector<16x1xf32>
    %241 = arith.subf %237, %240 : vector<16x1xf32>
    %cst_61 = arith.constant 9.99999974E-6 : f32
    %242 = vector.broadcast %cst_61 : f32 to vector<16x1xf32>
    %243 = arith.addf %241, %242 : vector<16x1xf32>
    %244 = math.rsqrt %243 : vector<16x1xf32>
    %245 = vector.broadcast %244 : vector<16x1xf32> to vector<16x32xf32>
    %246 = arith.mulf %239, %245 : vector<16x32xf32>
    %247 = vector.broadcast %221 : vector<1x32xf32> to vector<16x32xf32>
    %248 = arith.mulf %246, %247 : vector<16x32xf32>
    %249 = vector.broadcast %222 : vector<1x32xf32> to vector<16x32xf32>
    %250 = arith.addf %248, %249 : vector<16x32xf32>
    %cst_62 = arith.constant dense<0.000000e+00> : vector<16x32xf32>
    %251 = tpu.matmul %250, %216, %cst_62 {dimension_numbers = #tpu.dot_dimension_numbers<[1], [0], [0], [1], [0, 0, 1, 1], [], []>} : vector<16x32xf32>, vector<32x32xf32>, vector<16x32xf32> -> vector<16x32xf32>
    %252 = vector.broadcast %219 : vector<1x32xf32> to vector<16x32xf32>
    %253 = arith.addf %251, %252 : vector<16x32xf32>
    %cst_63 = arith.constant 0.000000e+00 : f32
    %254 = vector.broadcast %cst_63 : f32 to vector<16x32xf32>
    %255 = arith.maximumf %253, %254 : vector<16x32xf32>
    %cst_64 = arith.constant dense<0.000000e+00> : vector<16x32xf32>
    %256 = tpu.matmul %255, %217, %cst_64 {dimension_numbers = #tpu.dot_dimension_numbers<[1], [0], [0], [1], [0, 0, 1, 1], [], []>} : vector<16x32xf32>, vector<32x32xf32>, vector<16x32xf32> -> vector<16x32xf32>
    %257 = arith.addf %250, %256 : vector<16x32xf32>
    %258 = vector.broadcast %220 : vector<1x32xf32> to vector<16x32xf32>
    %259 = arith.addf %257, %258 : vector<16x32xf32>
    %cst_65 = arith.constant dense<0.000000e+00> : vector<16xf32>
    %260 = vector.multi_reduction <add>, %259, %cst_65 [1] : vector<16x32xf32> to vector<16xf32>
    %261 = vector.shape_cast %260 : vector<16xf32> to vector<16x1xf32>
    %cst_66 = arith.constant 3.200000e+01 : f32
    %262 = vector.broadcast %cst_66 : f32 to vector<16x1xf32>
    %263 = arith.divf %261, %262 : vector<16x1xf32>
    %264 = arith.mulf %259, %259 : vector<16x32xf32>
    %cst_67 = arith.constant dense<0.000000e+00> : vector<16xf32>
    %265 = vector.multi_reduction <add>, %264, %cst_67 [1] : vector<16x32xf32> to vector<16xf32>
    %266 = vector.shape_cast %265 : vector<16xf32> to vector<16x1xf32>
    %cst_68 = arith.constant 3.200000e+01 : f32
    %267 = vector.broadcast %cst_68 : f32 to vector<16x1xf32>
    %268 = arith.divf %266, %267 : vector<16x1xf32>
    %269 = vector.broadcast %263 : vector<16x1xf32> to vector<16x32xf32>
    %270 = arith.subf %259, %269 : vector<16x32xf32>
    %271 = arith.mulf %263, %263 : vector<16x1xf32>
    %272 = arith.subf %268, %271 : vector<16x1xf32>
    %cst_69 = arith.constant 9.99999974E-6 : f32
    %273 = vector.broadcast %cst_69 : f32 to vector<16x1xf32>
    %274 = arith.addf %272, %273 : vector<16x1xf32>
    %275 = math.rsqrt %274 : vector<16x1xf32>
    %276 = vector.broadcast %275 : vector<16x1xf32> to vector<16x32xf32>
    %277 = arith.mulf %270, %276 : vector<16x32xf32>
    %278 = vector.broadcast %223 : vector<1x32xf32> to vector<16x32xf32>
    %279 = arith.mulf %277, %278 : vector<16x32xf32>
    %280 = vector.broadcast %224 : vector<1x32xf32> to vector<16x32xf32>
    %281 = arith.addf %279, %280 : vector<16x32xf32>
    %c0_70 = arith.constant 0 : index
    %c0_71 = arith.constant 0 : index
    %c0_72 = arith.constant 0 : index
    %282 = vector.load %arg3[%c0_70, %c0_71, %c0_72] : memref<1x16x32xf32, #tpu.memory_space<vmem>>, vector<1x16x32xf32>
    %283 = vector.shape_cast %282 : vector<1x16x32xf32> to vector<16x32xf32>
    %284 = vector.shape_cast %281 : vector<16x32xf32> to vector<1x16x32xf32>
    tpu.vector_store %arg3[%c0_70, %c0_71, %c0_72], %284 {strides = array<i32>} : memref<1x16x32xf32, #tpu.memory_space<vmem>>, vector<1x16x32xf32>,
    return
  }
  func.func @transform_0(%arg0: i32) -> (i32, i32, i32) {
    %c0_i32 = arith.constant 0 : i32
    %c0_i32_0 = arith.constant 0 : i32
    %c0_i32_1 = arith.constant 0 : i32
    return %arg0, %c0_i32, %c0_i32_0 : i32, i32, i32
  }
  func.func @transform_1(%arg0: i32) -> (i32, i32) {
    %c0_i32 = arith.constant 0 : i32
    %c0_i32_0 = arith.constant 0 : i32
    %c0_i32_1 = arith.constant 0 : i32
    return %c0_i32, %c0_i32_0 : i32, i32
  }
  func.func @transform_2(%arg0: i32) -> (i32, i32, i32) {
    %c0_i32 = arith.constant 0 : i32
    %c0_i32_0 = arith.constant 0 : i32
    %c0_i32_1 = arith.constant 0 : i32
    return %arg0, %c0_i32, %c0_i32_0 : i32, i32, i32
  }
}

</mosaic_0001>

<llo_original>
// kernel: tpu_custom_call.1
$region0: #{tpu_custom_call.1}
  #allocation0 [shape = 'u32[]', space=smem, size = 0x4, offset = 0x4, fixed_abs, tag = 'smem constant byte address 0x4 - core index']
  #allocation1 [shape = 'u32[144,128]{1,0:T(1,128)}', space=vmem, size = 0x12000, scoped, tag = 'internal scratch']
  %s0 = inlined_call_operand.vmem [shape: s32[1,16,8], index: 0, kind: input, shape index: {}]
  %s1 = inlined_call_operand.vmem [shape: f32[336,96], index: 1, kind: input, shape index: {}]
  %s2 = inlined_call_operand.hbm [shape: f32[1,16,32], index: 2, kind: output, shape index: {}]
  %s3 = sld [smem:[#allocation0]]
  $region18: #{tpu_custom_call.1} parent=0
    _
  %s5 = ssub.s32 1, %s3
  %s6 = scalar_select 0, %s5, %s3
  $region1: #{tpu_custom_call.1} parent=0
    #allocation2 [shape = 'u8[8192]{0}', space=vmem, size = 0x2000, scoped, tag = 'output window, operand 0, single buffered']
    #allocation3 [shape = 's32[1]{0}', space=sflag, size = 0x4, scoped, tag = 'scoped memory for tpu_custom_call.1']
    %7 = vsyncpa [#allocation3], 0
    // Predicated region
    $region2: #{tpu_custom_call.1} parent=1 // pred_check
      _
    $region3: #{tpu_custom_call.1} parent=1 // pred_check_branch
      %9 = sbr.rel (0) target = $region5
    $region4: #{tpu_custom_call.1} parent=1 // pred_region
      _
    $region5: #{tpu_custom_call.1} parent=1 // pred_fallthru
      _
    // Predicated region
    $region6: #{tpu_custom_call.1} parent=1 // pred_check
      _
    $region7: #{tpu_custom_call.1} parent=1 // pred_check_branch
      %11 = sbr.rel (0) target = $region9
    $region8: #{tpu_custom_call.1} parent=1 // pred_region
      _
    $region9: #{tpu_custom_call.1} parent=1 // pred_fallthru
      _
    %v12 = vld [vmem:[%s1 + $0xd0] sm:$0xff]
    %v13 = vld [vmem:[%s1 + $0xd8] sm:$0xff]
    %v14 = vld [vmem:[%s1 + $0xe0] sm:$0xff]
    %v15 = vld [vmem:[%s1 + $0xe8] sm:$0xff]
    %v16 = vld [vmem:[%s1 + $0xf0] sm:$0xff]
    %v17 = vld [vmem:[%s1 + $0xf8] sm:$0xff]
    %v18 = vld [vmem:[%s1 + $0x100] sm:$0xff]
    %v19 = vld [vmem:[%s1 + $0x108] sm:$0xff]
    %v20 = vld [vmem:[%s1 + $0x110] sm:$0xff]
    %v21 = vld [vmem:[%s1 + $0x118] sm:$0xff]
    %v22 = vld [vmem:[%s1 + $0x120] sm:$0xff]
    %v23 = vld [vmem:[%s1 + $0x128] sm:$0xff]
    %v24 = vld [vmem:[%s1 + $0x130] sm:$0xff]
    %v25 = vld [vmem:[%s1 + $0x138] sm:$0xff]
    %v26 = vld [vmem:[%s1 + $0x140] sm:$0xff]
    %v27 = vld [vmem:[%s1 + $0x148] sm:$0xff]
    %v28 = vld [vmem:[%s0] sm:$0xff]
    %v29 = vld [vmem:[%s0 + $0x8] sm:$0xff]
    %v30 = vlaneseq
    %v31 = vand.u32 %v30, 127
    %32 = vset.pattern.permute.xlu0 3
    %33 = vperm.xlu0 %32, %v28
    %v34 = vpop.permute.xlu0 %33
    %35 = vset.pattern.permute.xlu0 3
    %36 = vperm.xlu0 %35, %v29
    %v37 = vpop.permute.xlu0 %36
    %vm38 = vcmp.eq.s32.totalorder %v31, %v34
    %vm39 = vcmp.eq.s32.totalorder %v31, %v37
    %vm40 = vcmp.gt.s32.totalorder %v28, 0
    %vm41 = vcmp.gt.s32.totalorder %v29, 0
    %v42 = vsel %vm40, 1, 0
    %v43 = vsel %vm41, 1, 0
    %44 = vset.pattern.permute.xlu0 4
    %45 = vperm.xlu0 %44, %v42
    %v46 = vpop.permute.xlu0 %45
    %47 = vset.pattern.permute.xlu0 4
    %48 = vperm.xlu0 %47, %v43
    %v49 = vpop.permute.xlu0 %48
    %vm50 = vcmp.eq.s32.totalorder %v46, 1
    %vm51 = vcmp.eq.s32.totalorder %v49, 1
    %vm52 = vmand %vm38, %vm50
    %vm53 = vmand %vm39, %vm51
    %v54 = vsel %vm52, 1.0, 0.0
    %v55 = vsel %vm53, 1.0, 0.0
    %vm56 = vcmask 130048
    %v58 = vsel %vm56, %v54, 0
    %v61 = vsel %vm56, %v55, 0
    %63 = vmatprep.subr.mxu0 0.0
    %64 = vmatpush1.xpose.msra.mxu0 %v58
    %65 = vmatprep.subr.mxu0 0.0
    %66 = vmatpush1.xpose.msra.mxu0 %v61
    %67 = vmatprep.subr.mxu0 0.0
    %68 = vmatpush1.xpose.msra.mxu0 0.0
    %69 = vmatprep.subr.mxu0 0.0
    %70 = vmatpush1.xpose.msra.mxu0 0.0
    %71 = vmatprep.subr.mxu0 0.0
    %72 = vmatpush1.xpose.msra.mxu0 0.0
    %73 = vmatprep.subr.mxu0 0.0
    %74 = vmatpush1.xpose.msra.mxu0 0.0
    %75 = vmatprep.subr.mxu0 0.0
    %76 = vmatpush1.xpose.msra.mxu0 0.0
    %77 = vmatprep.subr.mxu0 0.0
    %78 = vmatpush1.xpose.msra.mxu0 0.0
    %79 = vmatprep.subr.mxu0 0.0
    %80 = vmatpush1.xpose.msra.mxu0 0.0
    %81 = vmatprep.subr.mxu0 0.0
    %82 = vmatpush1.xpose.msra.mxu0 0.0
    %83 = vmatprep.subr.mxu0 0.0
    %84 = vmatpush1.xpose.msra.mxu0 0.0
    %85 = vmatprep.subr.mxu0 0.0
    %86 = vmatpush1.xpose.msra.mxu0 0.0
    %87 = vmatprep.subr.mxu0 0.0
    %88 = vmatpush1.xpose.msra.mxu0 0.0
    %89 = vmatprep.subr.mxu0 0.0
    %90 = vmatpush1.xpose.msra.mxu0 0.0
    %91 = vmatprep.subr.mxu0 0.0
    %92 = vmatpush1.xpose.msra.mxu0 0.0
    %93 = vmatprep.subr.mxu0 0.0
    %94 = vmatpush1.xpose.msra.mxu0 0.0
    %95 = vmatprep.subr.mxu0 0.0
    %96 = vmatpush1.xpose.msra.mxu0 0.0
    %97 = vmatprep.subr.mxu0 0.0
    %98 = vmatpush1.xpose.msra.mxu0 0.0
    %99 = vmatprep.subr.mxu0 0.0
    %100 = vmatpush1.xpose.msra.mxu0 0.0
    %101 = vmatprep.subr.mxu0 0.0
    %102 = vmatpush1.xpose.msra.mxu0 0.0
    %103 = vmatprep.subr.mxu0 0.0
    %104 = vmatpush1.xpose.msra.mxu0 0.0
    %105 = vmatprep.subr.mxu0 0.0
    %106 = vmatpush1.xpose.msra.mxu0 0.0
    %107 = vmatprep.subr.mxu0 0.0
    %108 = vmatpush1.xpose.msra.mxu0 0.0
    %109 = vmatprep.subr.mxu0 0.0
    %110 = vmatpush1.xpose.msra.mxu0 0.0
    %111 = vmatprep.subr.mxu0 0.0
    %112 = vmatpush1.xpose.msra.mxu0 0.0
    %113 = vmatprep.subr.mxu0 0.0
    %114 = vmatpush1.xpose.msra.mxu0 0.0
    %115 = vmatprep.subr.mxu0 0.0
    %116 = vmatpush1.xpose.msra.mxu0 0.0
    %117 = vmatprep.subr.mxu0 0.0
    %118 = vmatpush1.xpose.msra.mxu0 0.0
    %119 = vmatprep.subr.mxu0 0.0
    %120 = vmatpush1.xpose.msra.mxu0 0.0
    %121 = vmatprep.subr.mxu0 0.0
    %122 = vmatpush1.xpose.msra.mxu0 0.0
    %123 = vmatprep.subr.mxu0 0.0
    %124 = vmatpush1.xpose.msra.mxu0 0.0
    %125 = vmatprep.subr.mxu0 0.0
    %126 = vmatpush1.xpose.msra.mxu0 0.0
    %127 = vmatprep.mubr.f32.mxu0 0.0
    %128 = vmatmul.mubr.f32.gmra.mrb[0].mxu0 %v58
    %v129 = vpop.f32.mrb[0].mxu0
    %v130 = vadd.f32 0.0, %v129
    %v131 = vpop.f32.mrb[0].mxu0
    %132 = vmatprep.mubr.f32.mxu0 0.0
    %133 = vmatmul.mubr.f32.gmra.mrb[0].mxu0 %v61
    %v134 = vpop.f32.mrb[0].mxu0
    %v135 = vadd.f32 0.0, %v134
    %v136 = vpop.f32.mrb[0].mxu0
    %137 = vdwg.mxu0
    %v138 = vlaneseq
    %v139 = vshrl.u32 %v138, 7
    %v140 = vadd.s32 %v139, 8
    %vm141 = vcmp.gt.f32.partialorder %v130, 0.5
    %vm142 = vcmp.gt.f32.partialorder %v135, 0.5
    %vm143 = vcmp.lt.s32.totalorder %v31, %v139
    %vm144 = vcmp.lt.s32.totalorder %v31, %v140
    %vm145 = vmand %vm141, %vm143
    %vm146 = vmand %vm142, %vm144
    %v147 = vsel %vm145, 1.0, 0.0
    %v148 = vsel %vm146, 1.0, 0.0
    %v149 = vsel %vm56, %v147, 0.0
    %150 = vadd.xlane.f32.xlu0 %v149
    %v151 = vpop.xlane.xlu0 %150
    %v152 = vsel %vm56, %v148, 0.0
    %153 = vadd.xlane.f32.xlu0 %v152
    %v154 = vpop.xlane.xlu0 %153
    %v155 = vcvt.f32.s32.to.zero.pseudo %v151
    %v156 = vcvt.f32.s32.to.zero.pseudo %v154
    %vm157 = vcmp.eq.s32.totalorder %v31, 0
    %vm158 = vcmp.ge.s32.totalorder %v139, %v31
    %vm159 = vcmp.ge.s32.totalorder %v140, %v31
    %vm160 = vmand %vm141, %vm158
    %vm161 = vmand %vm142, %vm159
    %vm162 = vmor %vm157, %vm160
    %vm163 = vmor %vm157, %vm161
    %v164 = vsel %vm162, 0.0, -1e+09
    %v165 = vsel %vm163, 0.0, -1e+09
    %182 = vrot.lane.b32.xlu0 %v12, 96
    %v183 = vpop.permute.xlu0 %182
    %184 = vrot.lane.b32.xlu0 %v13, 96
    %v185 = vpop.permute.xlu0 %184
    %186 = vrot.lane.b32.xlu0 %v14, 96
    %v187 = vpop.permute.xlu0 %186
    %188 = vrot.lane.b32.xlu0 %v15, 96
    %v189 = vpop.permute.xlu0 %188
    %190 = vrot.lane.b32.xlu0 %v16, 96
    %v191 = vpop.permute.xlu0 %190
    %192 = vrot.lane.b32.xlu0 %v17, 96
    %v193 = vpop.permute.xlu0 %192
    %194 = vrot.lane.b32.xlu0 %v18, 96
    %v195 = vpop.permute.xlu0 %194
    %196 = vrot.lane.b32.xlu0 %v19, 96
    %v197 = vpop.permute.xlu0 %196
    %198 = vrot.lane.b32.xlu0 %v20, 96
    %v199 = vpop.permute.xlu0 %198
    %200 = vrot.lane.b32.xlu0 %v21, 96
    %v201 = vpop.permute.xlu0 %200
    %202 = vrot.lane.b32.xlu0 %v22, 96
    %v203 = vpop.permute.xlu0 %202
    %204 = vrot.lane.b32.xlu0 %v23, 96
    %v205 = vpop.permute.xlu0 %204
    %206 = vrot.lane.b32.xlu0 %v24, 96
    %v207 = vpop.permute.xlu0 %206
    %208 = vrot.lane.b32.xlu0 %v25, 96
    %v209 = vpop.permute.xlu0 %208
    %210 = vrot.lane.b32.xlu0 %v26, 96
    %v211 = vpop.permute.xlu0 %210
    %212 = vrot.lane.b32.xlu0 %v27, 96
    %v213 = vpop.permute.xlu0 %212
    %v214 = vsel %vm56, %v183, 0
    %v216 = vsel %vm56, %v185, 0
    %v218 = vsel %vm56, %v187, 0
    %v220 = vsel %vm56, %v189, 0
    %v222 = vsel %vm56, %v191, 0
    %v224 = vsel %vm56, %v193, 0
    %v226 = vsel %vm56, %v195, 0
    %v228 = vsel %vm56, %v197, 0
    %v230 = vsel %vm56, %v199, 0
    %v232 = vsel %vm56, %v201, 0
    %v234 = vsel %vm56, %v203, 0
    %v236 = vsel %vm56, %v205, 0
    %v238 = vsel %vm56, %v207, 0
    %v240 = vsel %vm56, %v209, 0
    %v242 = vsel %vm56, %v211, 0
    %v244 = vsel %vm56, %v213, 0
    %246 = vmatprep.subr.mxu0 0.0
    %247 = vmatpush1.msra.mxu0 %v164
    %248 = vmatprep.subr.mxu0 0.0
    %249 = vmatpush1.msra.mxu0 %v165
    %250 = vmatprep.subr.mxu0 0.0
    %251 = vmatpush1.msra.mxu0 0.0
    %252 = vmatprep.subr.mxu0 0.0
    %253 = vmatpush1.msra.mxu0 0.0
    %254 = vmatprep.subr.mxu0 0.0
    %255 = vmatpush1.msra.mxu0 0.0
    %256 = vmatprep.subr.mxu0 0.0
    %257 = vmatpush1.msra.mxu0 0.0
    %258 = vmatprep.subr.mxu0 0.0
    %259 = vmatpush1.msra.mxu0 0.0
    %260 = vmatprep.subr.mxu0 0.0
    %261 = vmatpush1.msra.mxu0 0.0
    %262 = vmatprep.subr.mxu0 0.0
    %263 = vmatpush1.msra.mxu0 0.0
    %264 = vmatprep.subr.mxu0 0.0
    %265 = vmatpush1.msra.mxu0 0.0
    %266 = vmatprep.subr.mxu0 0.0
    %267 = vmatpush1.msra.mxu0 0.0
    %268 = vmatprep.subr.mxu0 0.0
    %269 = vmatpush1.msra.mxu0 0.0
    %270 = vmatprep.subr.mxu0 0.0
    %271 = vmatpush1.msra.mxu0 0.0
    %272 = vmatprep.subr.mxu0 0.0
    %273 = vmatpush1.msra.mxu0 0.0
    %274 = vmatprep.subr.mxu0 0.0
    %275 = vmatpush1.msra.mxu0 0.0
    %276 = vmatprep.subr.mxu0 0.0
    %277 = vmatpush1.msra.mxu0 0.0
    %278 = vmatprep.subr.mxu0 0.0
    %279 = vmatpush1.msra.mxu0 0.0
    %280 = vmatprep.subr.mxu0 0.0
    %281 = vmatpush1.msra.mxu0 0.0
    %282 = vmatprep.subr.mxu0 0.0
    %283 = vmatpush1.msra.mxu0 0.0
    %284 = vmatprep.subr.mxu0 0.0
    %285 = vmatpush1.msra.mxu0 0.0
    %286 = vmatprep.subr.mxu0 0.0
    %287 = vmatpush1.msra.mxu0 0.0
    %288 = vmatprep.subr.mxu0 0.0
    %289 = vmatpush1.msra.mxu0 0.0
    %290 = vmatprep.subr.mxu0 0.0
    %291 = vmatpush1.msra.mxu0 0.0
    %292 = vmatprep.subr.mxu0 0.0
    %293 = vmatpush1.msra.mxu0 0.0
    %294 = vmatprep.subr.mxu0 0.0
    %295 = vmatpush1.msra.mxu0 0.0
    %296 = vmatprep.subr.mxu0 0.0
    %297 = vmatpush1.msra.mxu0 0.0
    %298 = vmatprep.subr.mxu0 0.0
    %299 = vmatpush1.msra.mxu0 0.0
    %300 = vmatprep.subr.mxu0 0.0
    %301 = vmatpush1.msra.mxu0 0.0
    %302 = vmatprep.subr.mxu0 0.0
    %303 = vmatpush1.msra.mxu0 0.0
    %304 = vmatprep.subr.mxu0 0.0
    %305 = vmatpush1.msra.mxu0 0.0
    %306 = vmatprep.subr.mxu0 0.0
    %307 = vmatpush1.msra.mxu0 0.0
    %308 = vmatprep.subr.mxu0 0.0
    %309 = vmatpush1.msra.mxu0 0.0
    %310 = vmatprep.mubr.f32.mxu0 0.0
    %311 = vmatmul.mubr.f32.gmra.mrb[0].mxu0 %v214
    %v312 = vpop.f32.mrb[0].mxu0
    %v313 = vadd.f32 0.0, %v312
    %v314 = vpop.f32.mrb[0].mxu0
    %315 = vmatprep.mubr.f32.mxu0 0.0
    %316 = vmatmul.mubr.f32.gmra.mrb[0].mxu0 %v216
    %v317 = vpop.f32.mrb[0].mxu0
    %v318 = vadd.f32 0.0, %v317
    %v319 = vpop.f32.mrb[0].mxu0
    %320 = vmatprep.mubr.f32.mxu0 0.0
    %321 = vmatmul.mubr.f32.gmra.mrb[0].mxu0 %v218
    %v322 = vpop.f32.mrb[0].mxu0
    %v323 = vadd.f32 0.0, %v322
    %v324 = vpop.f32.mrb[0].mxu0
    %325 = vmatprep.mubr.f32.mxu0 0.0
    %326 = vmatmul.mubr.f32.gmra.mrb[0].mxu0 %v220
    %v327 = vpop.f32.mrb[0].mxu0
    %v328 = vadd.f32 0.0, %v327
    %v329 = vpop.f32.mrb[0].mxu0
    %330 = vmatprep.mubr.f32.mxu0 0.0
    %331 = vmatmul.mubr.f32.gmra.mrb[0].mxu0 %v222
    %v332 = vpop.f32.mrb[0].mxu0
    %v333 = vadd.f32 0.0, %v332
    %v334 = vpop.f32.mrb[0].mxu0
    %335 = vmatprep.mubr.f32.mxu0 0.0
    %336 = vmatmul.mubr.f32.gmra.mrb[0].mxu0 %v224
    %v337 = vpop.f32.mrb[0].mxu0
    %v338 = vadd.f32 0.0, %v337
    %v339 = vpop.f32.mrb[0].mxu0
    %340 = vmatprep.mubr.f32.mxu0 0.0
    %341 = vmatmul.mubr.f32.gmra.mrb[0].mxu0 %v226
    %v342 = vpop.f32.mrb[0].mxu0
    %v343 = vadd.f32 0.0, %v342
    %v344 = vpop.f32.mrb[0].mxu0
    %345 = vmatprep.mubr.f32.mxu0 0.0
    %346 = vmatmul.mubr.f32.gmra.mrb[0].mxu0 %v228
    %v347 = vpop.f32.mrb[0].mxu0
    %v348 = vadd.f32 0.0, %v347
    %v349 = vpop.f32.mrb[0].mxu0
    %350 = vmatprep.mubr.f32.mxu0 0.0
    %351 = vmatmul.mubr.f32.gmra.mrb[0].mxu0 %v230
    %v352 = vpop.f32.mrb[0].mxu0
    %v353 = vadd.f32 0.0, %v352
    %v354 = vpop.f32.mrb[0].mxu0
    %355 = vmatprep.mubr.f32.mxu0 0.0
    %356 = vmatmul.mubr.f32.gmra.mrb[0].mxu0 %v232
    %v357 = vpop.f32.mrb[0].mxu0
    %v358 = vadd.f32 0.0, %v357
    %v359 = vpop.f32.mrb[0].mxu0
    %360 = vmatprep.mubr.f32.mxu0 0.0
    %361 = vmatmul.mubr.f32.gmra.mrb[0].mxu0 %v234
    %v362 = vpop.f32.mrb[0].mxu0
    %v363 = vadd.f32 0.0, %v362
    %v364 = vpop.f32.mrb[0].mxu0
    %365 = vmatprep.mubr.f32.mxu0 0.0
    %366 = vmatmul.mubr.f32.gmra.mrb[0].mxu0 %v236
    %v367 = vpop.f32.mrb[0].mxu0
    %v368 = vadd.f32 0.0, %v367
    %v369 = vpop.f32.mrb[0].mxu0
    %370 = vmatprep.mubr.f32.mxu0 0.0
    %371 = vmatmul.mubr.f32.gmra.mrb[0].mxu0 %v238
    %v372 = vpop.f32.mrb[0].mxu0
    %v373 = vadd.f32 0.0, %v372
    %v374 = vpop.f32.mrb[0].mxu0
    %375 = vmatprep.mubr.f32.mxu0 0.0
    %376 = vmatmul.mubr.f32.gmra.mrb[0].mxu0 %v240
    %v377 = vpop.f32.mrb[0].mxu0
    %v378 = vadd.f32 0.0, %v377
    %v379 = vpop.f32.mrb[0].mxu0
    %380 = vmatprep.mubr.f32.mxu0 0.0
    %381 = vmatmul.mubr.f32.gmra.mrb[0].mxu0 %v242
    %v382 = vpop.f32.mrb[0].mxu0
    %v383 = vadd.f32 0.0, %v382
    %v384 = vpop.f32.mrb[0].mxu0
    %385 = vmatprep.mubr.f32.mxu0 0.0
    %386 = vmatmul.mubr.f32.gmra.mrb[0].mxu0 %v244
    %v387 = vpop.f32.mrb[0].mxu0
    %v388 = vadd.f32 0.0, %v387
    %v389 = vpop.f32.mrb[0].mxu0
    %390 = vdwg.mxu0
    %391 = vset.pattern.permute.xlu0 2
    %392 = vperm.xlu0 %391, %v28
    %v393 = vpop.permute.xlu0 %392
    %394 = vset.pattern.permute.xlu0 2
    %395 = vperm.xlu0 %394, %v29
    %v396 = vpop.permute.xlu0 %395
    %vm397 = vcmp.eq.s32.totalorder %v31, %v393
    %vm398 = vcmp.eq.s32.totalorder %v31, %v396
    %399 = vset.pattern.permute.xlu0 0
    %400 = vperm.xlu0 %399, %v28
    %v401 = vpop.permute.xlu0 %400
    %402 = vset.pattern.permute.xlu0 0
    %403 = vperm.xlu0 %402, %v29
    %v404 = vpop.permute.xlu0 %403
    %vm405 = vcmp.eq.s32.totalorder %v31, %v401
    %vm406 = vcmp.eq.s32.totalorder %v31, %v404
    %vm407 = vmor %vm397, %vm405
    %vm408 = vmor %vm398, %vm406
    %409 = vset.pattern.permute.xlu0 1
    %410 = vperm.xlu0 %409, %v28
    %v411 = vpop.permute.xlu0 %410
    %412 = vset.pattern.permute.xlu0 1
    %413 = vperm.xlu0 %412, %v29
    %v414 = vpop.permute.xlu0 %413
    %vm415 = vcmp.eq.s32.totalorder %v31, %v411
    %vm416 = vcmp.eq.s32.totalorder %v31, %v414
    %vm417 = vmor %vm407, %vm415
    %vm418 = vmor %vm408, %vm416
    %v419 = vadd.s32 %v155, 48
    %v420 = vadd.s32 %v156, 48
    %v421 = vsel %vm40, %v419, 4294967295
    %v422 = vsel %vm41, %v420, 4294967295
    %423 = vset.pattern.permute.xlu0 4
    %424 = vperm.xlu0 %423, %v421
    %v425 = vpop.permute.xlu0 %424
    %426 = vset.pattern.permute.xlu0 4
    %427 = vperm.xlu0 %426, %v422
    %v428 = vpop.permute.xlu0 %427
    %vm429 = vcmp.eq.s32.totalorder %v31, %v425
    %vm430 = vcmp.eq.s32.totalorder %v31, %v428
    %vm431 = vmor %vm417, %vm429
    %vm432 = vmor %vm418, %vm430
    %v433 = vsel %vm431, 1, 0
    %v434 = vsel %vm432, 1, 0
    %v435 = vcvt.s32.f32 %v433
    %v436 = vcvt.s32.f32 %v434
    %v437 = vld [vmem:[%s1] sm:$0xff]
    %v438 = vld [vmem:[%s1 + $0x8] sm:$0xff]
    %v439 = vld [vmem:[%s1 + $0x10] sm:$0xff]
    %v440 = vld [vmem:[%s1 + $0x18] sm:$0xff]
    %v441 = vld [vmem:[%s1 + $0x20] sm:$0xff]
    %v442 = vld [vmem:[%s1 + $0x28] sm:$0xff]
    %v443 = vld [vmem:[%s1 + $0x30] sm:$0xff]
    %v444 = vld [vmem:[%s1 + $0x38] sm:$0xff]
    %vm445 = vcmask 523264
    %v447 = vsel %vm445, %v435, 0
    %v450 = vsel %vm445, %v436, 0
    %452 = vmatprep.subr.mxu0 0.0
    %453 = vmatpush1.msra.mxu0 %v437
    %454 = vmatprep.subr.mxu0 0.0
    %455 = vmatpush1.msra.mxu0 %v438
    %456 = vmatprep.subr.mxu0 0.0
    %457 = vmatpush1.msra.mxu0 %v439
    %458 = vmatprep.subr.mxu0 0.0
    %459 = vmatpush1.msra.mxu0 %v440
    %460 = vmatprep.subr.mxu0 0.0
    %461 = vmatpush1.msra.mxu0 %v441
    %462 = vmatprep.subr.mxu0 0.0
    %463 = vmatpush1.msra.mxu0 %v442
    %464 = vmatprep.subr.mxu0 0.0
    %465 = vmatpush1.msra.mxu0 %v443
    %466 = vmatprep.subr.mxu0 0.0
    %467 = vmatpush1.msra.mxu0 %v444
    %468 = vmatprep.subr.mxu0 0.0
    %469 = vmatpush1.msra.mxu0 0.0
    %470 = vmatprep.subr.mxu0 0.0
    %471 = vmatpush1.msra.mxu0 0.0
    %472 = vmatprep.subr.mxu0 0.0
    %473 = vmatpush1.msra.mxu0 0.0
    %474 = vmatprep.subr.mxu0 0.0
    %475 = vmatpush1.msra.mxu0 0.0
    %476 = vmatprep.subr.mxu0 0.0
    %477 = vmatpush1.msra.mxu0 0.0
    %478 = vmatprep.subr.mxu0 0.0
    %479 = vmatpush1.msra.mxu0 0.0
    %480 = vmatprep.subr.mxu0 0.0
    %481 = vmatpush1.msra.mxu0 0.0
    %482 = vmatprep.subr.mxu0 0.0
    %483 = vmatpush1.msra.mxu0 0.0
    %484 = vmatprep.subr.mxu0 0.0
    %485 = vmatpush1.msra.mxu0 0.0
    %486 = vmatprep.subr.mxu0 0.0
    %487 = vmatpush1.msra.mxu0 0.0
    %488 = vmatprep.subr.mxu0 0.0
    %489 = vmatpush1.msra.mxu0 0.0
    %490 = vmatprep.subr.mxu0 0.0
    %491 = vmatpush1.msra.mxu0 0.0
    %492 = vmatprep.subr.mxu0 0.0
    %493 = vmatpush1.msra.mxu0 0.0
    %494 = vmatprep.subr.mxu0 0.0
    %495 = vmatpush1.msra.mxu0 0.0
    %496 = vmatprep.subr.mxu0 0.0
    %497 = vmatpush1.msra.mxu0 0.0
    %498 = vmatprep.subr.mxu0 0.0
    %499 = vmatpush1.msra.mxu0 0.0
    %500 = vmatprep.subr.mxu0 0.0
    %501 = vmatpush1.msra.mxu0 0.0
    %502 = vmatprep.subr.mxu0 0.0
    %503 = vmatpush1.msra.mxu0 0.0
    %504 = vmatprep.subr.mxu0 0.0
    %505 = vmatpush1.msra.mxu0 0.0
    %506 = vmatprep.subr.mxu0 0.0
    %507 = vmatpush1.msra.mxu0 0.0
    %508 = vmatprep.subr.mxu0 0.0
    %509 = vmatpush1.msra.mxu0 0.0
    %510 = vmatprep.subr.mxu0 0.0
    %511 = vmatpush1.msra.mxu0 0.0
    %512 = vmatprep.subr.mxu0 0.0
    %513 = vmatpush1.msra.mxu0 0.0
    %514 = vmatprep.subr.mxu0 0.0
    %515 = vmatpush1.msra.mxu0 0.0
    %516 = vmatprep.mubr.f32.mxu0 0.0
    %517 = vmatmul.mubr.f32.gmra.mrb[0].mxu0 %v447
    %v518 = vpop.f32.mrb[0].mxu0
    %v519 = vadd.f32 0.0, %v518
    %v520 = vpop.f32.mrb[0].mxu0
    %521 = vmatprep.mubr.f32.mxu0 0.0
    %522 = vmatmul.mubr.f32.gmra.mrb[0].mxu0 %v450
    %v523 = vpop.f32.mrb[0].mxu0
    %v524 = vadd.f32 0.0, %v523
    %v525 = vpop.f32.mrb[0].mxu0
    %526 = vdwg.mxu0
    %v527 = vld [vmem:[%s1 + $0x40] sm:$0xff]
    %v528 = vld [vmem:[%s1 + $0x48] sm:$0xff]
    %v529 = vld [vmem:[%s1 + $0x50] sm:$0xff]
    %v530 = vld [vmem:[%s1 + $0x58] sm:$0xff]
    %v531 = vld [vmem:[%s1 + $0x60] sm:$0xff]
    %v532 = vld [vmem:[%s1 + $0x68] sm:$0xff]
    %v533 = vld [vmem:[%s1 + $0x70] sm:$0xff]
    %v534 = vld [vmem:[%s1 + $0x78] sm:$0xff]
    %v535 = vld [vmem:[%s1 + $0x80] sm:$0xf]
    %v536 = vld [vmem:[%s1 + $0x88] sm:$0xff]
    %v537 = vld [vmem:[%s1 + $0x90] sm:$0xff]
    %v538 = vld [vmem:[%s1 + $0x98] sm:$0xff]
    %v539 = vld [vmem:[%s1 + $0xa0] sm:$0xff]
    %v540 = vld [vmem:[%s1 + $0xa8] sm:$0xff]
    %v541 = vld [vmem:[%s1 + $0xb0] sm:$0xff]
    %v542 = vld [vmem:[%s1 + $0xb8] sm:$0xff]
    %v543 = vld [vmem:[%s1 + $0xc0] sm:$0xff]
    %v544 = vld [vmem:[%s1 + $0xc8] sm:$0xf]
    %v545 = vlaneseq
    %v546 = vshrl.u32 %v545, 7
    %v547 = vsub.s32 0, %v546
    %v548 = vrot.slane %v535, %v547
    %vm549 = vcmask 261120
    %v551 = vsel %vm549, %v519, 0
    %v554 = vsel %vm549, %v524, 0
    %556 = vmatprep.subr.mxu0 0.0
    %557 = vmatpush1.msra.mxu0 %v527
    %558 = vmatprep.subr.mxu0 0.0
    %559 = vmatpush1.msra.mxu0 %v528
    %560 = vmatprep.subr.mxu0 0.0
    %561 = vmatpush1.msra.mxu0 %v529
    %562 = vmatprep.subr.mxu0 0.0
    %563 = vmatpush1.msra.mxu0 %v530
    %564 = vmatprep.subr.mxu0 0.0
    %565 = vmatpush1.msra.mxu0 0.0
    %566 = vmatprep.subr.mxu0 0.0
    %567 = vmatpush1.msra.mxu0 0.0
    %568 = vmatprep.subr.mxu0 0.0
    %569 = vmatpush1.msra.mxu0 0.0
    %570 = vmatprep.subr.mxu0 0.0
    %571 = vmatpush1.msra.mxu0 0.0
    %572 = vmatprep.subr.mxu0 0.0
    %573 = vmatpush1.msra.mxu0 0.0
    %574 = vmatprep.subr.mxu0 0.0
    %575 = vmatpush1.msra.mxu0 0.0
    %576 = vmatprep.subr.mxu0 0.0
    %577 = vmatpush1.msra.mxu0 0.0
    %578 = vmatprep.subr.mxu0 0.0
    %579 = vmatpush1.msra.mxu0 0.0
    %580 = vmatprep.subr.mxu0 0.0
    %581 = vmatpush1.msra.mxu0 0.0
    %582 = vmatprep.subr.mxu0 0.0
    %583 = vmatpush1.msra.mxu0 0.0
    %584 = vmatprep.subr.mxu0 0.0
    %585 = vmatpush1.msra.mxu0 0.0
    %586 = vmatprep.subr.mxu0 0.0
    %587 = vmatpush1.msra.mxu0 0.0
    %588 = vmatprep.subr.mxu0 0.0
    %589 = vmatpush1.msra.mxu0 0.0
    %590 = vmatprep.subr.mxu0 0.0
    %591 = vmatpush1.msra.mxu0 0.0
    %592 = vmatprep.subr.mxu0 0.0
    %593 = vmatpush1.msra.mxu0 0.0
    %594 = vmatprep.subr.mxu0 0.0
    %595 = vmatpush1.msra.mxu0 0.0
    %596 = vmatprep.subr.mxu0 0.0
    %597 = vmatpush1.msra.mxu0 0.0
    %598 = vmatprep.subr.mxu0 0.0
    %599 = vmatpush1.msra.mxu0 0.0
    %600 = vmatprep.subr.mxu0 0.0
    %601 = vmatpush1.msra.mxu0 0.0
    %602 = vmatprep.subr.mxu0 0.0
    %603 = vmatpush1.msra.mxu0 0.0
    %604 = vmatprep.subr.mxu0 0.0
    %605 = vmatpush1.msra.mxu0 0.0
    %606 = vmatprep.subr.mxu0 0.0
    %607 = vmatpush1.msra.mxu0 0.0
    %608 = vmatprep.subr.mxu0 0.0
    %609 = vmatpush1.msra.mxu0 0.0
    %610 = vmatprep.subr.mxu0 0.0
    %611 = vmatpush1.msra.mxu0 0.0
    %612 = vmatprep.subr.mxu0 0.0
    %613 = vmatpush1.msra.mxu0 0.0
    %614 = vmatprep.subr.mxu0 0.0
    %615 = vmatpush1.msra.mxu0 0.0
    %616 = vmatprep.subr.mxu0 0.0
    %617 = vmatpush1.msra.mxu0 0.0
    %618 = vmatprep.subr.mxu0 0.0
    %619 = vmatpush1.msra.mxu0 0.0
    %620 = vmatprep.mubr.f32.mxu0 0.0
    %621 = vmatmul.mubr.f32.gmra.mrb[0].mxu0 %v551
    %v622 = vpop.f32.mrb[0].mxu0
    %v623 = vadd.f32 %v548, %v622
    %v624 = vpop.f32.mrb[0].mxu0
    %625 = vmatprep.mubr.f32.mxu0 0.0
    %626 = vmatmul.mubr.f32.gmra.mrb[0].mxu0 %v554
    %v627 = vpop.f32.mrb[0].mxu0
    %v628 = vadd.f32 %v548, %v627
    %v629 = vpop.f32.mrb[0].mxu0
    %630 = vdwg.mxu0
    %631 = vmatprep.subr.mxu0 0.0
    %632 = vmatpush1.msra.mxu0 %v623
    %633 = vmatprep.subr.mxu0 0.0
    %634 = vmatpush1.msra.mxu0 %v628
    %635 = vmatprep.subr.mxu0 0.0
    %636 = vmatpush1.msra.mxu0 0.0
    %637 = vmatprep.subr.mxu0 0.0
    %638 = vmatpush1.msra.mxu0 0.0
    %639 = vmatprep.subr.mxu0 0.0
    %640 = vmatpush1.msra.mxu0 0.0
    %641 = vmatprep.subr.mxu0 0.0
    %642 = vmatpush1.msra.mxu0 0.0
    %643 = vmatprep.subr.mxu0 0.0
    %644 = vmatpush1.msra.mxu0 0.0
    %645 = vmatprep.subr.mxu0 0.0
    %646 = vmatpush1.msra.mxu0 0.0
    %647 = vmatprep.subr.mxu0 0.0
    %648 = vmatpush1.msra.mxu0 0.0
    %649 = vmatprep.subr.mxu0 0.0
    %650 = vmatpush1.msra.mxu0 0.0
    %651 = vmatprep.subr.mxu0 0.0
    %652 = vmatpush1.msra.mxu0 0.0
    %653 = vmatprep.subr.mxu0 0.0
    %654 = vmatpush1.msra.mxu0 0.0
    %655 = vmatprep.subr.mxu0 0.0
    %656 = vmatpush1.msra.mxu0 0.0
    %657 = vmatprep.subr.mxu0 0.0
    %658 = vmatpush1.msra.mxu0 0.0
    %659 = vmatprep.subr.mxu0 0.0
    %660 = vmatpush1.msra.mxu0 0.0
    %661 = vmatprep.subr.mxu0 0.0
    %662 = vmatpush1.msra.mxu0 0.0
    %663 = vmatprep.subr.mxu0 0.0
    %664 = vmatpush1.msra.mxu0 0.0
    %665 = vmatprep.subr.mxu0 0.0
    %666 = vmatpush1.msra.mxu0 0.0
    %667 = vmatprep.subr.mxu0 0.0
    %668 = vmatpush1.msra.mxu0 0.0
    %669 = vmatprep.subr.mxu0 0.0
    %670 = vmatpush1.msra.mxu0 0.0
    %671 = vmatprep.subr.mxu0 0.0
    %672 = vmatpush1.msra.mxu0 0.0
    %673 = vmatprep.subr.mxu0 0.0
    %674 = vmatpush1.msra.mxu0 0.0
    %675 = vmatprep.subr.mxu0 0.0
    %676 = vmatpush1.msra.mxu0 0.0
    %677 = vmatprep.subr.mxu0 0.0
    %678 = vmatpush1.msra.mxu0 0.0
    %679 = vmatprep.subr.mxu0 0.0
    %680 = vmatpush1.msra.mxu0 0.0
    %681 = vmatprep.subr.mxu0 0.0
    %682 = vmatpush1.msra.mxu0 0.0
    %683 = vmatprep.subr.mxu0 0.0
    %684 = vmatpush1.msra.mxu0 0.0
    %685 = vmatprep.subr.mxu0 0.0
    %686 = vmatpush1.msra.mxu0 0.0
    %687 = vmatprep.subr.mxu0 0.0
    %688 = vmatpush1.msra.mxu0 0.0
    %689 = vmatprep.subr.mxu0 0.0
    %690 = vmatpush1.msra.mxu0 0.0
    %691 = vmatprep.subr.mxu0 0.0
    %692 = vmatpush1.msra.mxu0 0.0
    %693 = vmatprep.subr.mxu0 0.0
    %694 = vmatpush1.msra.mxu0 0.0
    %695 = vmatprep.mubr.f32.mxu0 0.0
    %696 = vmatmul.mubr.f32.gmra.mrb[0].mxu0 %v214
    %v697 = vpop.f32.mrb[0].mxu0
    %v698 = vadd.f32 0.0, %v697
    %v699 = vpop.f32.mrb[0].mxu0
    %700 = vmatprep.mubr.f32.mxu0 0.0
    %701 = vmatmul.mubr.f32.gmra.mrb[0].mxu0 %v216
    %v702 = vpop.f32.mrb[0].mxu0
    %v703 = vadd.f32 0.0, %v702
    %v704 = vpop.f32.mrb[0].mxu0
    %705 = vmatprep.mubr.f32.mxu0 0.0
    %706 = vmatmul.mubr.f32.gmra.mrb[0].mxu0 %v218
    %v707 = vpop.f32.mrb[0].mxu0
    %v708 = vadd.f32 0.0, %v707
    %v709 = vpop.f32.mrb[0].mxu0
    %710 = vmatprep.mubr.f32.mxu0 0.0
    %711 = vmatmul.mubr.f32.gmra.mrb[0].mxu0 %v220
    %v712 = vpop.f32.mrb[0].mxu0
    %v713 = vadd.f32 0.0, %v712
    %v714 = vpop.f32.mrb[0].mxu0
    %715 = vmatprep.mubr.f32.mxu0 0.0
    %716 = vmatmul.mubr.f32.gmra.mrb[0].mxu0 %v222
    %v717 = vpop.f32.mrb[0].mxu0
    %v718 = vadd.f32 0.0, %v717
    %v719 = vpop.f32.mrb[0].mxu0
    %720 = vmatprep.mubr.f32.mxu0 0.0
    %721 = vmatmul.mubr.f32.gmra.mrb[0].mxu0 %v224
    %v722 = vpop.f32.mrb[0].mxu0
    %v723 = vadd.f32 0.0, %v722
    %v724 = vpop.f32.mrb[0].mxu0
    %725 = vmatprep.mubr.f32.mxu0 0.0
    %726 = vmatmul.mubr.f32.gmra.mrb[0].mxu0 %v226
    %v727 = vpop.f32.mrb[0].mxu0
    %v728 = vadd.f32 0.0, %v727
    %v729 = vpop.f32.mrb[0].mxu0
    %730 = vmatprep.mubr.f32.mxu0 0.0
    %731 = vmatmul.mubr.f32.gmra.mrb[0].mxu0 %v228
    %v732 = vpop.f32.mrb[0].mxu0
    %v733 = vadd.f32 0.0, %v732
    %v734 = vpop.f32.mrb[0].mxu0
    %735 = vmatprep.mubr.f32.mxu0 0.0
    %736 = vmatmul.mubr.f32.gmra.mrb[0].mxu0 %v230
    %v737 = vpop.f32.mrb[0].mxu0
    %v738 = vadd.f32 0.0, %v737
    %v739 = vpop.f32.mrb[0].mxu0
    %740 = vmatprep.mubr.f32.mxu0 0.0
    %741 = vmatmul.mubr.f32.gmra.mrb[0].mxu0 %v232
    %v742 = vpop.f32.mrb[0].mxu0
    %v743 = vadd.f32 0.0, %v742
    %v744 = vpop.f32.mrb[0].mxu0
    %745 = vmatprep.mubr.f32.mxu0 0.0
    %746 = vmatmul.mubr.f32.gmra.mrb[0].mxu0 %v234
    %v747 = vpop.f32.mrb[0].mxu0
    %v748 = vadd.f32 0.0, %v747
    %v749 = vpop.f32.mrb[0].mxu0
    %750 = vmatprep.mubr.f32.mxu0 0.0
    %751 = vmatmul.mubr.f32.gmra.mrb[0].mxu0 %v236
    %v752 = vpop.f32.mrb[0].mxu0
    %v753 = vadd.f32 0.0, %v752
    %v754 = vpop.f32.mrb[0].mxu0
    %755 = vmatprep.mubr.f32.mxu0 0.0
    %756 = vmatmul.mubr.f32.gmra.mrb[0].mxu0 %v238
    %v757 = vpop.f32.mrb[0].mxu0
    %v758 = vadd.f32 0.0, %v757
    %v759 = vpop.f32.mrb[0].mxu0
    %760 = vmatprep.mubr.f32.mxu0 0.0
    %761 = vmatmul.mubr.f32.gmra.mrb[0].mxu0 %v240
    %v762 = vpop.f32.mrb[0].mxu0
    %v763 = vadd.f32 0.0, %v762
    %v764 = vpop.f32.mrb[0].mxu0
    %765 = vmatprep.mubr.f32.mxu0 0.0
    %766 = vmatmul.mubr.f32.gmra.mrb[0].mxu0 %v242
    %v767 = vpop.f32.mrb[0].mxu0
    %v768 = vadd.f32 0.0, %v767
    %v769 = vpop.f32.mrb[0].mxu0
    %770 = vmatprep.mubr.f32.mxu0 0.0
    %771 = vmatmul.mubr.f32.gmra.mrb[0].mxu0 %v244
    %v772 = vpop.f32.mrb[0].mxu0
    %v773 = vadd.f32 0.0, %v772
    %v774 = vpop.f32.mrb[0].mxu0
    %775 = vdwg.mxu0
    %v776 = vmul.f32 %v698, %v12
    %v777 = vmul.f32 %v703, %v13
    %v778 = vmul.f32 %v708, %v14
    %v779 = vmul.f32 %v713, %v15
    %v780 = vmul.f32 %v718, %v16
    %v781 = vmul.f32 %v723, %v17
    %v782 = vmul.f32 %v728, %v18
    %v783 = vmul.f32 %v733, %v19
    %v784 = vmul.f32 %v738, %v20
    %v785 = vmul.f32 %v743, %v21
    %v786 = vmul.f32 %v748, %v22
    %v787 = vmul.f32 %v753, %v23
    %v788 = vmul.f32 %v758, %v24
    %v789 = vmul.f32 %v763, %v25
    %v790 = vmul.f32 %v768, %v26
    %v791 = vmul.f32 %v773, %v27
    %794 = vrot.lane.b32.xlu0 %v623, 96
    %v795 = vpop.permute.xlu0 %794
    %796 = vrot.lane.b32.xlu0 %v628, 96
    %v797 = vpop.permute.xlu0 %796
    %v799 = vsel %vm549, %v776, 0
    %v802 = vsel %vm549, %v777, 0
    %v805 = vsel %vm549, %v778, 0
    %v808 = vsel %vm549, %v779, 0
    %v811 = vsel %vm549, %v780, 0
    %v814 = vsel %vm549, %v781, 0
    %v817 = vsel %vm549, %v782, 0
    %v820 = vsel %vm549, %v783, 0
    %v823 = vsel %vm549, %v784, 0
    %v826 = vsel %vm549, %v785, 0
    %v829 = vsel %vm549, %v786, 0
    %v832 = vsel %vm549, %v787, 0
    %v835 = vsel %vm549, %v788, 0
    %v838 = vsel %vm549, %v789, 0
    %v841 = vsel %vm549, %v790, 0
    %v844 = vsel %vm549, %v791, 0
    %v846 = vsel %vm549, %v795, 0
    %v848 = vsel %vm549, %v797, 0
    %850 = vmatprep.subr.mxu0 0.0
    %851 = vmatpush1.xpose.msra.mxu0 %v846
    %852 = vmatprep.subr.mxu0 0.0
    %853 = vmatpush1.xpose.msra.mxu0 %v848
    %854 = vmatprep.subr.mxu0 0.0
    %855 = vmatpush1.xpose.msra.mxu0 0.0
    %856 = vmatprep.subr.mxu0 0.0
    %857 = vmatpush1.xpose.msra.mxu0 0.0
    %858 = vmatprep.subr.mxu0 0.0
    %859 = vmatpush1.xpose.msra.mxu0 0.0
    %860 = vmatprep.subr.mxu0 0.0
    %861 = vmatpush1.xpose.msra.mxu0 0.0
    %862 = vmatprep.subr.mxu0 0.0
    %863 = vmatpush1.xpose.msra.mxu0 0.0
    %864 = vmatprep.subr.mxu0 0.0
    %865 = vmatpush1.xpose.msra.mxu0 0.0
    %866 = vmatprep.subr.mxu0 0.0
    %867 = vmatpush1.xpose.msra.mxu0 0.0
    %868 = vmatprep.subr.mxu0 0.0
    %869 = vmatpush1.xpose.msra.mxu0 0.0
    %870 = vmatprep.subr.mxu0 0.0
    %871 = vmatpush1.xpose.msra.mxu0 0.0
    %872 = vmatprep.subr.mxu0 0.0
    %873 = vmatpush1.xpose.msra.mxu0 0.0
    %874 = vmatprep.subr.mxu0 0.0
    %875 = vmatpush1.xpose.msra.mxu0 0.0
    %876 = vmatprep.subr.mxu0 0.0
    %877 = vmatpush1.xpose.msra.mxu0 0.0
    %878 = vmatprep.subr.mxu0 0.0
    %879 = vmatpush1.xpose.msra.mxu0 0.0
    %880 = vmatprep.subr.mxu0 0.0
    %881 = vmatpush1.xpose.msra.mxu0 0.0
    %882 = vmatprep.subr.mxu0 0.0
    %883 = vmatpush1.xpose.msra.mxu0 0.0
    %884 = vmatprep.subr.mxu0 0.0
    %885 = vmatpush1.xpose.msra.mxu0 0.0
    %886 = vmatprep.subr.mxu0 0.0
    %887 = vmatpush1.xpose.msra.mxu0 0.0
    %888 = vmatprep.subr.mxu0 0.0
    %889 = vmatpush1.xpose.msra.mxu0 0.0
    %890 = vmatprep.subr.mxu0 0.0
    %891 = vmatpush1.xpose.msra.mxu0 0.0
    %892 = vmatprep.subr.mxu0 0.0
    %893 = vmatpush1.xpose.msra.mxu0 0.0
    %894 = vmatprep.subr.mxu0 0.0
    %895 = vmatpush1.xpose.msra.mxu0 0.0
    %896 = vmatprep.subr.mxu0 0.0
    %897 = vmatpush1.xpose.msra.mxu0 0.0
    %898 = vmatprep.subr.mxu0 0.0
    %899 = vmatpush1.xpose.msra.mxu0 0.0
    %900 = vmatprep.subr.mxu0 0.0
    %901 = vmatpush1.xpose.msra.mxu0 0.0
    %902 = vmatprep.subr.mxu0 0.0
    %903 = vmatpush1.xpose.msra.mxu0 0.0
    %904 = vmatprep.subr.mxu0 0.0
    %905 = vmatpush1.xpose.msra.mxu0 0.0
    %906 = vmatprep.subr.mxu0 0.0
    %907 = vmatpush1.xpose.msra.mxu0 0.0
    %908 = vmatprep.subr.mxu0 0.0
    %909 = vmatpush1.xpose.msra.mxu0 0.0
    %910 = vmatprep.subr.mxu0 0.0
    %911 = vmatpush1.xpose.msra.mxu0 0.0
    %912 = vmatprep.subr.mxu0 0.0
    %913 = vmatpush1.xpose.msra.mxu0 0.0
    %914 = vmatprep.mubr.f32.mxu0 0.0
    %915 = vmatmul.mubr.f32.gmra.mrb[0].mxu0 %v799
    %v916 = vpop.f32.mrb[0].mxu0
    %v917 = vadd.f32 %v313, %v916
    %v918 = vpop.f32.mrb[0].mxu0
    %919 = vmatprep.mubr.f32.mxu0 0.0
    %920 = vmatmul.mubr.f32.gmra.mrb[0].mxu0 %v802
    %v921 = vpop.f32.mrb[0].mxu0
    %v922 = vadd.f32 %v318, %v921
    %v923 = vpop.f32.mrb[0].mxu0
    %924 = vmatprep.mubr.f32.mxu0 0.0
    %925 = vmatmul.mubr.f32.gmra.mrb[0].mxu0 %v805
    %v926 = vpop.f32.mrb[0].mxu0
    %v927 = vadd.f32 %v323, %v926
    %v928 = vpop.f32.mrb[0].mxu0
    %929 = vmatprep.mubr.f32.mxu0 0.0
    %930 = vmatmul.mubr.f32.gmra.mrb[0].mxu0 %v808
    %v931 = vpop.f32.mrb[0].mxu0
    %v932 = vadd.f32 %v328, %v931
    %v933 = vpop.f32.mrb[0].mxu0
    %934 = vmatprep.mubr.f32.mxu0 0.0
    %935 = vmatmul.mubr.f32.gmra.mrb[0].mxu0 %v811
    %v936 = vpop.f32.mrb[0].mxu0
    %v937 = vadd.f32 %v333, %v936
    %v938 = vpop.f32.mrb[0].mxu0
    %939 = vmatprep.mubr.f32.mxu0 0.0
    %940 = vmatmul.mubr.f32.gmra.mrb[0].mxu0 %v814
    %v941 = vpop.f32.mrb[0].mxu0
    %v942 = vadd.f32 %v338, %v941
    %v943 = vpop.f32.mrb[0].mxu0
    %944 = vmatprep.mubr.f32.mxu0 0.0
    %945 = vmatmul.mubr.f32.gmra.mrb[0].mxu0 %v817
    %v946 = vpop.f32.mrb[0].mxu0
    %v947 = vadd.f32 %v343, %v946
    %v948 = vpop.f32.mrb[0].mxu0
    %949 = vmatprep.mubr.f32.mxu0 0.0
    %950 = vmatmul.mubr.f32.gmra.mrb[0].mxu0 %v820
    %v951 = vpop.f32.mrb[0].mxu0
    %v952 = vadd.f32 %v348, %v951
    %v953 = vpop.f32.mrb[0].mxu0
    %954 = vmatprep.mubr.f32.mxu0 0.0
    %955 = vmatmul.mubr.f32.gmra.mrb[0].mxu0 %v823
    %v956 = vpop.f32.mrb[0].mxu0
    %v957 = vadd.f32 %v353, %v956
    %v958 = vpop.f32.mrb[0].mxu0
    %959 = vmatprep.mubr.f32.mxu0 0.0
    %960 = vmatmul.mubr.f32.gmra.mrb[0].mxu0 %v826
    %v961 = vpop.f32.mrb[0].mxu0
    %v962 = vadd.f32 %v358, %v961
    %v963 = vpop.f32.mrb[0].mxu0
    %964 = vmatprep.mubr.f32.mxu0 0.0
    %965 = vmatmul.mubr.f32.gmra.mrb[0].mxu0 %v829
    %v966 = vpop.f32.mrb[0].mxu0
    %v967 = vadd.f32 %v363, %v966
    %v968 = vpop.f32.mrb[0].mxu0
    %969 = vmatprep.mubr.f32.mxu0 0.0
    %970 = vmatmul.mubr.f32.gmra.mrb[0].mxu0 %v832
    %v971 = vpop.f32.mrb[0].mxu0
    %v972 = vadd.f32 %v368, %v971
    %v973 = vpop.f32.mrb[0].mxu0
    %974 = vmatprep.mubr.f32.mxu0 0.0
    %975 = vmatmul.mubr.f32.gmra.mrb[0].mxu0 %v835
    %v976 = vpop.f32.mrb[0].mxu0
    %v977 = vadd.f32 %v373, %v976
    %v978 = vpop.f32.mrb[0].mxu0
    %979 = vmatprep.mubr.f32.mxu0 0.0
    %980 = vmatmul.mubr.f32.gmra.mrb[0].mxu0 %v838
    %v981 = vpop.f32.mrb[0].mxu0
    %v982 = vadd.f32 %v378, %v981
    %v983 = vpop.f32.mrb[0].mxu0
    %984 = vmatprep.mubr.f32.mxu0 0.0
    %985 = vmatmul.mubr.f32.gmra.mrb[0].mxu0 %v841
    %v986 = vpop.f32.mrb[0].mxu0
    %v987 = vadd.f32 %v383, %v986
    %v988 = vpop.f32.mrb[0].mxu0
    %989 = vmatprep.mubr.f32.mxu0 0.0
    %990 = vmatmul.mubr.f32.gmra.mrb[0].mxu0 %v844
    %v991 = vpop.f32.mrb[0].mxu0
    %v992 = vadd.f32 %v388, %v991
    %v993 = vpop.f32.mrb[0].mxu0
    %994 = vdwg.mxu0
    %v995 = vsel %vm56, %v917, -inf
    %996 = vmax.xlane.f32.xlu0 %v995
    %v997 = vpop.xlane.xlu0 %996
    %v998 = vsel %vm56, %v922, -inf
    %999 = vmax.xlane.f32.xlu0 %v998
    %v1000 = vpop.xlane.xlu0 %999
    %v1001 = vsel %vm56, %v927, -inf
    %1002 = vmax.xlane.f32.xlu0 %v1001
    %v1003 = vpop.xlane.xlu0 %1002
    %v1004 = vsel %vm56, %v932, -inf
    %1005 = vmax.xlane.f32.xlu0 %v1004
    %v1006 = vpop.xlane.xlu0 %1005
    %v1007 = vsel %vm56, %v937, -inf
    %1008 = vmax.xlane.f32.xlu0 %v1007
    %v1009 = vpop.xlane.xlu0 %1008
    %v1010 = vsel %vm56, %v942, -inf
    %1011 = vmax.xlane.f32.xlu0 %v1010
    %v1012 = vpop.xlane.xlu0 %1011
    %v1013 = vsel %vm56, %v947, -inf
    %1014 = vmax.xlane.f32.xlu0 %v1013
    %v1015 = vpop.xlane.xlu0 %1014
    %v1016 = vsel %vm56, %v952, -inf
    %1017 = vmax.xlane.f32.xlu0 %v1016
    %v1018 = vpop.xlane.xlu0 %1017
    %v1019 = vsel %vm56, %v957, -inf
    %1020 = vmax.xlane.f32.xlu0 %v1019
    %v1021 = vpop.xlane.xlu0 %1020
    %v1022 = vsel %vm56, %v962, -inf
    %1023 = vmax.xlane.f32.xlu0 %v1022
    %v1024 = vpop.xlane.xlu0 %1023
    %v1025 = vsel %vm56, %v967, -inf
    %1026 = vmax.xlane.f32.xlu0 %v1025
    %v1027 = vpop.xlane.xlu0 %1026
    %v1028 = vsel %vm56, %v972, -inf
    %1029 = vmax.xlane.f32.xlu0 %v1028
    %v1030 = vpop.xlane.xlu0 %1029
    %v1031 = vsel %vm56, %v977, -inf
    %1032 = vmax.xlane.f32.xlu0 %v1031
    %v1033 = vpop.xlane.xlu0 %1032
    %v1034 = vsel %vm56, %v982, -inf
    %1035 = vmax.xlane.f32.xlu0 %v1034
    %v1036 = vpop.xlane.xlu0 %1035
    %v1037 = vsel %vm56, %v987, -inf
    %1038 = vmax.xlane.f32.xlu0 %v1037
    %v1039 = vpop.xlane.xlu0 %1038
    %v1040 = vsel %vm56, %v992, -inf
    %1041 = vmax.xlane.f32.xlu0 %v1040
    %v1042 = vpop.xlane.xlu0 %1041
    %v1043 = vsub.f32 %v917, %v997
    %v1044 = vsub.f32 %v922, %v1000
    %v1045 = vsub.f32 %v927, %v1003
    %v1046 = vsub.f32 %v932, %v1006
    %v1047 = vsub.f32 %v937, %v1009
    %v1048 = vsub.f32 %v942, %v1012
    %v1049 = vsub.f32 %v947, %v1015
    %v1050 = vsub.f32 %v952, %v1018
    %v1051 = vsub.f32 %v957, %v1021
    %v1052 = vsub.f32 %v962, %v1024
    %v1053 = vsub.f32 %v967, %v1027
    %v1054 = vsub.f32 %v972, %v1030
    %v1055 = vsub.f32 %v977, %v1033
    %v1056 = vsub.f32 %v982, %v1036
    %v1057 = vsub.f32 %v987, %v1039
    %v1058 = vsub.f32 %v992, %v1042
    %v1059 = vmul.f32 %v1043, 1.442695
    %v1060 = vpow.pop %v1059
    %v1061 = vmul.f32 %v1044, 1.442695
    %v1062 = vpow.pop %v1061
    %v1063 = vmul.f32 %v1045, 1.442695
    %v1064 = vpow.pop %v1063
    %v1065 = vmul.f32 %v1046, 1.442695
    %v1066 = vpow.pop %v1065
    %v1067 = vmul.f32 %v1047, 1.442695
    %v1068 = vpow.pop %v1067
    %v1069 = vmul.f32 %v1048, 1.442695
    %v1070 = vpow.pop %v1069
    %v1071 = vmul.f32 %v1049, 1.442695
    %v1072 = vpow.pop %v1071
    %v1073 = vmul.f32 %v1050, 1.442695
    %v1074 = vpow.pop %v1073
    %v1075 = vmul.f32 %v1051, 1.442695
    %v1076 = vpow.pop %v1075
    %v1077 = vmul.f32 %v1052, 1.442695
    %v1078 = vpow.pop %v1077
    %v1079 = vmul.f32 %v1053, 1.442695
    %v1080 = vpow.pop %v1079
    %v1081 = vmul.f32 %v1054, 1.442695
    %v1082 = vpow.pop %v1081
    %v1083 = vmul.f32 %v1055, 1.442695
    %v1084 = vpow.pop %v1083
    %v1085 = vmul.f32 %v1056, 1.442695
    %v1086 = vpow.pop %v1085
    %v1087 = vmul.f32 %v1057, 1.442695
    %v1088 = vpow.pop %v1087
    %v1089 = vmul.f32 %v1058, 1.442695
    %v1090 = vpow.pop %v1089
    %v1091 = vsel %vm56, %v1060, 0.0
    %1092 = vadd.xlane.f32.xlu0 %v1091
    %v1093 = vpop.xlane.xlu0 %1092
    %v1094 = vsel %vm56, %v1062, 0.0
    %1095 = vadd.xlane.f32.xlu0 %v1094
    %v1096 = vpop.xlane.xlu0 %1095
    %v1097 = vsel %vm56, %v1064, 0.0
    %1098 = vadd.xlane.f32.xlu0 %v1097
    %v1099 = vpop.xlane.xlu0 %1098
    %v1100 = vsel %vm56, %v1066, 0.0
    %1101 = vadd.xlane.f32.xlu0 %v1100
    %v1102 = vpop.xlane.xlu0 %1101
    %v1103 = vsel %vm56, %v1068, 0.0
    %1104 = vadd.xlane.f32.xlu0 %v1103
    %v1105 = vpop.xlane.xlu0 %1104
    %v1106 = vsel %vm56, %v1070, 0.0
    %1107 = vadd.xlane.f32.xlu0 %v1106
    %v1108 = vpop.xlane.xlu0 %1107
    %v1109 = vsel %vm56, %v1072, 0.0
    %1110 = vadd.xlane.f32.xlu0 %v1109
    %v1111 = vpop.xlane.xlu0 %1110
    %v1112 = vsel %vm56, %v1074, 0.0
    %1113 = vadd.xlane.f32.xlu0 %v1112
    %v1114 = vpop.xlane.xlu0 %1113
    %v1115 = vsel %vm56, %v1076, 0.0
    %1116 = vadd.xlane.f32.xlu0 %v1115
    %v1117 = vpop.xlane.xlu0 %1116
    %v1118 = vsel %vm56, %v1078, 0.0
    %1119 = vadd.xlane.f32.xlu0 %v1118
    %v1120 = vpop.xlane.xlu0 %1119
    %v1121 = vsel %vm56, %v1080, 0.0
    %1122 = vadd.xlane.f32.xlu0 %v1121
    %v1123 = vpop.xlane.xlu0 %1122
    %v1124 = vsel %vm56, %v1082, 0.0
    %1125 = vadd.xlane.f32.xlu0 %v1124
    %v1126 = vpop.xlane.xlu0 %1125
    %v1127 = vsel %vm56, %v1084, 0.0
    %1128 = vadd.xlane.f32.xlu0 %v1127
    %v1129 = vpop.xlane.xlu0 %1128
    %v1130 = vsel %vm56, %v1086, 0.0
    %1131 = vadd.xlane.f32.xlu0 %v1130
    %v1132 = vpop.xlane.xlu0 %1131
    %v1133 = vsel %vm56, %v1088, 0.0
    %1134 = vadd.xlane.f32.xlu0 %v1133
    %v1135 = vpop.xlane.xlu0 %1134
    %v1136 = vsel %vm56, %v1090, 0.0
    %1137 = vadd.xlane.f32.xlu0 %v1136
    %v1138 = vpop.xlane.xlu0 %1137
    %v1139 = vrcp.pop %v1093
    %v1140 = vrcp.pop %v1096
    %v1141 = vrcp.pop %v1099
    %v1142 = vrcp.pop %v1102
    %v1143 = vrcp.pop %v1105
    %v1144 = vrcp.pop %v1108
    %v1145 = vrcp.pop %v1111
    %v1146 = vrcp.pop %v1114
    %v1147 = vrcp.pop %v1117
    %v1148 = vrcp.pop %v1120
    %v1149 = vrcp.pop %v1123
    %v1150 = vrcp.pop %v1126
    %v1151 = vrcp.pop %v1129
    %v1152 = vrcp.pop %v1132
    %v1153 = vrcp.pop %v1135
    %v1154 = vrcp.pop %v1138
    %v1155 = vmul.f32 %v1060, %v1139
    %v1156 = vmul.f32 %v1062, %v1140
    %v1157 = vmul.f32 %v1064, %v1141
    %v1158 = vmul.f32 %v1066, %v1142
    %v1159 = vmul.f32 %v1068, %v1143
    %v1160 = vmul.f32 %v1070, %v1144
    %v1161 = vmul.f32 %v1072, %v1145
    %v1162 = vmul.f32 %v1074, %v1146
    %v1163 = vmul.f32 %v1076, %v1147
    %v1164 = vmul.f32 %v1078, %v1148
    %v1165 = vmul.f32 %v1080, %v1149
    %v1166 = vmul.f32 %v1082, %v1150
    %v1167 = vmul.f32 %v1084, %v1151
    %v1168 = vmul.f32 %v1086, %v1152
    %v1169 = vmul.f32 %v1088, %v1153
    %v1170 = vmul.f32 %v1090, %v1154
    %1171 = vrot.lane.b32.xlu0 %v623, 64
    %v1172 = vpop.permute.xlu0 %1171
    %1173 = vrot.lane.b32.xlu0 %v628, 64
    %v1174 = vpop.permute.xlu0 %1173
    %v1178 = vsel %vm56, %v1155, 0
    %v1181 = vsel %vm56, %v1156, 0
    %v1184 = vsel %vm56, %v1157, 0
    %v1187 = vsel %vm56, %v1158, 0
    %v1190 = vsel %vm56, %v1159, 0
    %v1193 = vsel %vm56, %v1160, 0
    %v1196 = vsel %vm56, %v1161, 0
    %v1199 = vsel %vm56, %v1162, 0
    %v1202 = vsel %vm56, %v1163, 0
    %v1205 = vsel %vm56, %v1164, 0
    %v1208 = vsel %vm56, %v1165, 0
    %v1211 = vsel %vm56, %v1166, 0
    %v1214 = vsel %vm56, %v1167, 0
    %v1217 = vsel %vm56, %v1168, 0
    %v1220 = vsel %vm56, %v1169, 0
    %v1223 = vsel %vm56, %v1170, 0
    %1225 = vmatprep.subr.mxu0 0.0
    %1226 = vmatpush1.msra.mxu0 %v1172
    %1227 = vmatprep.subr.mxu0 0.0
    %1228 = vmatpush1.msra.mxu0 %v1174
    %1229 = vmatprep.subr.mxu0 0.0
    %1230 = vmatpush1.msra.mxu0 0.0
    %1231 = vmatprep.subr.mxu0 0.0
    %1232 = vmatpush1.msra.mxu0 0.0
    %1233 = vmatprep.subr.mxu0 0.0
    %1234 = vmatpush1.msra.mxu0 0.0
    %1235 = vmatprep.subr.mxu0 0.0
    %1236 = vmatpush1.msra.mxu0 0.0
    %1237 = vmatprep.subr.mxu0 0.0
    %1238 = vmatpush1.msra.mxu0 0.0
    %1239 = vmatprep.subr.mxu0 0.0
    %1240 = vmatpush1.msra.mxu0 0.0
    %1241 = vmatprep.subr.mxu0 0.0
    %1242 = vmatpush1.msra.mxu0 0.0
    %1243 = vmatprep.subr.mxu0 0.0
    %1244 = vmatpush1.msra.mxu0 0.0
    %1245 = vmatprep.subr.mxu0 0.0
    %1246 = vmatpush1.msra.mxu0 0.0
    %1247 = vmatprep.subr.mxu0 0.0
    %1248 = vmatpush1.msra.mxu0 0.0
    %1249 = vmatprep.subr.mxu0 0.0
    %1250 = vmatpush1.msra.mxu0 0.0
    %1251 = vmatprep.subr.mxu0 0.0
    %1252 = vmatpush1.msra.mxu0 0.0
    %1253 = vmatprep.subr.mxu0 0.0
    %1254 = vmatpush1.msra.mxu0 0.0
    %1255 = vmatprep.subr.mxu0 0.0
    %1256 = vmatpush1.msra.mxu0 0.0
    %1257 = vmatprep.subr.mxu0 0.0
    %1258 = vmatpush1.msra.mxu0 0.0
    %1259 = vmatprep.subr.mxu0 0.0
    %1260 = vmatpush1.msra.mxu0 0.0
    %1261 = vmatprep.subr.mxu0 0.0
    %1262 = vmatpush1.msra.mxu0 0.0
    %1263 = vmatprep.subr.mxu0 0.0
    %1264 = vmatpush1.msra.mxu0 0.0
    %1265 = vmatprep.subr.mxu0 0.0
    %1266 = vmatpush1.msra.mxu0 0.0
    %1267 = vmatprep.subr.mxu0 0.0
    %1268 = vmatpush1.msra.mxu0 0.0
    %1269 = vmatprep.subr.mxu0 0.0
    %1270 = vmatpush1.msra.mxu0 0.0
    %1271 = vmatprep.subr.mxu0 0.0
    %1272 = vmatpush1.msra.mxu0 0.0
    %1273 = vmatprep.subr.mxu0 0.0
    %1274 = vmatpush1.msra.mxu0 0.0
    %1275 = vmatprep.subr.mxu0 0.0
    %1276 = vmatpush1.msra.mxu0 0.0
    %1277 = vmatprep.subr.mxu0 0.0
    %1278 = vmatpush1.msra.mxu0 0.0
    %1279 = vmatprep.subr.mxu0 0.0
    %1280 = vmatpush1.msra.mxu0 0.0
    %1281 = vmatprep.subr.mxu0 0.0
    %1282 = vmatpush1.msra.mxu0 0.0
    %1283 = vmatprep.subr.mxu0 0.0
    %1284 = vmatpush1.msra.mxu0 0.0
    %1285 = vmatprep.subr.mxu0 0.0
    %1286 = vmatpush1.msra.mxu0 0.0
    %1287 = vmatprep.subr.mxu0 0.0
    %1288 = vmatpush1.msra.mxu0 0.0
    %1289 = vmatprep.mubr.f32.mxu0 0.0
    %1290 = vmatmul.mubr.f32.gmra.mrb[0].mxu0 %v1178
    %v1291 = vpop.f32.mrb[0].mxu0
    %v1292 = vadd.f32 0.0, %v1291
    %v1293 = vpop.f32.mrb[0].mxu0
    %1294 = vmatprep.mubr.f32.mxu0 0.0
    %1295 = vmatmul.mubr.f32.gmra.mrb[0].mxu0 %v1181
    %v1296 = vpop.f32.mrb[0].mxu0
    %v1297 = vadd.f32 0.0, %v1296
    %v1298 = vpop.f32.mrb[0].mxu0
    %1299 = vmatprep.mubr.f32.mxu0 0.0
    %1300 = vmatmul.mubr.f32.gmra.mrb[0].mxu0 %v1184
    %v1301 = vpop.f32.mrb[0].mxu0
    %v1302 = vadd.f32 0.0, %v1301
    %v1303 = vpop.f32.mrb[0].mxu0
    %1304 = vmatprep.mubr.f32.mxu0 0.0
    %1305 = vmatmul.mubr.f32.gmra.mrb[0].mxu0 %v1187
    %v1306 = vpop.f32.mrb[0].mxu0
    %v1307 = vadd.f32 0.0, %v1306
    %v1308 = vpop.f32.mrb[0].mxu0
    %1309 = vmatprep.mubr.f32.mxu0 0.0
    %1310 = vmatmul.mubr.f32.gmra.mrb[0].mxu0 %v1190
    %v1311 = vpop.f32.mrb[0].mxu0
    %v1312 = vadd.f32 0.0, %v1311
    %v1313 = vpop.f32.mrb[0].mxu0
    %1314 = vmatprep.mubr.f32.mxu0 0.0
    %1315 = vmatmul.mubr.f32.gmra.mrb[0].mxu0 %v1193
    %v1316 = vpop.f32.mrb[0].mxu0
    %v1317 = vadd.f32 0.0, %v1316
    %v1318 = vpop.f32.mrb[0].mxu0
    %1319 = vmatprep.mubr.f32.mxu0 0.0
    %1320 = vmatmul.mubr.f32.gmra.mrb[0].mxu0 %v1196
    %v1321 = vpop.f32.mrb[0].mxu0
    %v1322 = vadd.f32 0.0, %v1321
    %v1323 = vpop.f32.mrb[0].mxu0
    %1324 = vmatprep.mubr.f32.mxu0 0.0
    %1325 = vmatmul.mubr.f32.gmra.mrb[0].mxu0 %v1199
    %v1326 = vpop.f32.mrb[0].mxu0
    %v1327 = vadd.f32 0.0, %v1326
    %v1328 = vpop.f32.mrb[0].mxu0
    %1329 = vmatprep.mubr.f32.mxu0 0.0
    %1330 = vmatmul.mubr.f32.gmra.mrb[0].mxu0 %v1202
    %v1331 = vpop.f32.mrb[0].mxu0
    %v1332 = vadd.f32 0.0, %v1331
    %v1333 = vpop.f32.mrb[0].mxu0
    %1334 = vmatprep.mubr.f32.mxu0 0.0
    %1335 = vmatmul.mubr.f32.gmra.mrb[0].mxu0 %v1205
    %v1336 = vpop.f32.mrb[0].mxu0
    %v1337 = vadd.f32 0.0, %v1336
    %v1338 = vpop.f32.mrb[0].mxu0
    %1339 = vmatprep.mubr.f32.mxu0 0.0
    %1340 = vmatmul.mubr.f32.gmra.mrb[0].mxu0 %v1208
    %v1341 = vpop.f32.mrb[0].mxu0
    %v1342 = vadd.f32 0.0, %v1341
    %v1343 = vpop.f32.mrb[0].mxu0
    %1344 = vmatprep.mubr.f32.mxu0 0.0
    %1345 = vmatmul.mubr.f32.gmra.mrb[0].mxu0 %v1211
    %v1346 = vpop.f32.mrb[0].mxu0
    %v1347 = vadd.f32 0.0, %v1346
    %v1348 = vpop.f32.mrb[0].mxu0
    %1349 = vmatprep.mubr.f32.mxu0 0.0
    %1350 = vmatmul.mubr.f32.gmra.mrb[0].mxu0 %v1214
    %v1351 = vpop.f32.mrb[0].mxu0
    %v1352 = vadd.f32 0.0, %v1351
    %v1353 = vpop.f32.mrb[0].mxu0
    %1354 = vmatprep.mubr.f32.mxu0 0.0
    %1355 = vmatmul.mubr.f32.gmra.mrb[0].mxu0 %v1217
    %v1356 = vpop.f32.mrb[0].mxu0
    %v1357 = vadd.f32 0.0, %v1356
    %v1358 = vpop.f32.mrb[0].mxu0
    %1359 = vmatprep.mubr.f32.mxu0 0.0
    %1360 = vmatmul.mubr.f32.gmra.mrb[0].mxu0 %v1220
    %v1361 = vpop.f32.mrb[0].mxu0
    %v1362 = vadd.f32 0.0, %v1361
    %v1363 = vpop.f32.mrb[0].mxu0
    %1364 = vmatprep.mubr.f32.mxu0 0.0
    %1365 = vmatmul.mubr.f32.gmra.mrb[0].mxu0 %v1223
    %v1366 = vpop.f32.mrb[0].mxu0
    %v1367 = vadd.f32 0.0, %v1366
    %v1368 = vpop.f32.mrb[0].mxu0
    %1369 = vdwg.mxu0
    %v1370 = vmul.f32 %v1292, %v12
    %v1371 = vmul.f32 %v1297, %v13
    %v1372 = vmul.f32 %v1302, %v14
    %v1373 = vmul.f32 %v1307, %v15
    %v1374 = vmul.f32 %v1312, %v16
    %v1375 = vmul.f32 %v1317, %v17
    %v1376 = vmul.f32 %v1322, %v18
    %v1377 = vmul.f32 %v1327, %v19
    %v1378 = vmul.f32 %v1332, %v20
    %v1379 = vmul.f32 %v1337, %v21
    %v1380 = vmul.f32 %v1342, %v22
    %v1381 = vmul.f32 %v1347, %v23
    %v1382 = vmul.f32 %v1352, %v24
    %v1383 = vmul.f32 %v1357, %v25
    %v1384 = vmul.f32 %v1362, %v26
    %v1385 = vmul.f32 %v1367, %v27
    %v1386 = vadd.f32 %v1370, %v1372
    %v1387 = vadd.f32 %v1371, %v1373
    %v1388 = vadd.f32 %v1374, %v1376
    %v1389 = vadd.f32 %v1375, %v1377
    %v1390 = vadd.f32 %v1386, %v1388
    %v1391 = vadd.f32 %v1387, %v1389
    %v1392 = vadd.f32 %v1378, %v1380
    %v1393 = vadd.f32 %v1379, %v1381
    %v1394 = vadd.f32 %v1382, %v1384
    %v1395 = vadd.f32 %v1383, %v1385
    %v1396 = vadd.f32 %v1392, %v1394
    %v1397 = vadd.f32 %v1393, %v1395
    %v1398 = vadd.f32 %v1390, %v1396
    %v1399 = vadd.f32 %v1391, %v1397
    %v1401 = vsel %vm549, %v1398, 0
    %v1404 = vsel %vm549, %v1399, 0
    %1406 = vmatprep.subr.mxu0 0.0
    %1407 = vmatpush1.msra.mxu0 %v531
    %1408 = vmatprep.subr.mxu0 0.0
    %1409 = vmatpush1.msra.mxu0 %v532
    %1410 = vmatprep.subr.mxu0 0.0
    %1411 = vmatpush1.msra.mxu0 %v533
    %1412 = vmatprep.subr.mxu0 0.0
    %1413 = vmatpush1.msra.mxu0 %v534
    %1414 = vmatprep.subr.mxu0 0.0
    %1415 = vmatpush1.msra.mxu0 0.0
    %1416 = vmatprep.subr.mxu0 0.0
    %1417 = vmatpush1.msra.mxu0 0.0
    %1418 = vmatprep.subr.mxu0 0.0
    %1419 = vmatpush1.msra.mxu0 0.0
    %1420 = vmatprep.subr.mxu0 0.0
    %1421 = vmatpush1.msra.mxu0 0.0
    %1422 = vmatprep.subr.mxu0 0.0
    %1423 = vmatpush1.msra.mxu0 0.0
    %1424 = vmatprep.subr.mxu0 0.0
    %1425 = vmatpush1.msra.mxu0 0.0
    %1426 = vmatprep.subr.mxu0 0.0
    %1427 = vmatpush1.msra.mxu0 0.0
    %1428 = vmatprep.subr.mxu0 0.0
    %1429 = vmatpush1.msra.mxu0 0.0
    %1430 = vmatprep.subr.mxu0 0.0
    %1431 = vmatpush1.msra.mxu0 0.0
    %1432 = vmatprep.subr.mxu0 0.0
    %1433 = vmatpush1.msra.mxu0 0.0
    %1434 = vmatprep.subr.mxu0 0.0
    %1435 = vmatpush1.msra.mxu0 0.0
    %1436 = vmatprep.subr.mxu0 0.0
    %1437 = vmatpush1.msra.mxu0 0.0
    %1438 = vmatprep.subr.mxu0 0.0
    %1439 = vmatpush1.msra.mxu0 0.0
    %1440 = vmatprep.subr.mxu0 0.0
    %1441 = vmatpush1.msra.mxu0 0.0
    %1442 = vmatprep.subr.mxu0 0.0
    %1443 = vmatpush1.msra.mxu0 0.0
    %1444 = vmatprep.subr.mxu0 0.0
    %1445 = vmatpush1.msra.mxu0 0.0
    %1446 = vmatprep.subr.mxu0 0.0
    %1447 = vmatpush1.msra.mxu0 0.0
    %1448 = vmatprep.subr.mxu0 0.0
    %1449 = vmatpush1.msra.mxu0 0.0
    %1450 = vmatprep.subr.mxu0 0.0
    %1451 = vmatpush1.msra.mxu0 0.0
    %1452 = vmatprep.subr.mxu0 0.0
    %1453 = vmatpush1.msra.mxu0 0.0
    %1454 = vmatprep.subr.mxu0 0.0
    %1455 = vmatpush1.msra.mxu0 0.0
    %1456 = vmatprep.subr.mxu0 0.0
    %1457 = vmatpush1.msra.mxu0 0.0
    %1458 = vmatprep.subr.mxu0 0.0
    %1459 = vmatpush1.msra.mxu0 0.0
    %1460 = vmatprep.subr.mxu0 0.0
    %1461 = vmatpush1.msra.mxu0 0.0
    %1462 = vmatprep.subr.mxu0 0.0
    %1463 = vmatpush1.msra.mxu0 0.0
    %1464 = vmatprep.subr.mxu0 0.0
    %1465 = vmatpush1.msra.mxu0 0.0
    %1466 = vmatprep.subr.mxu0 0.0
    %1467 = vmatpush1.msra.mxu0 0.0
    %1468 = vmatprep.subr.mxu0 0.0
    %1469 = vmatpush1.msra.mxu0 0.0
    %1470 = vmatprep.mubr.f32.mxu0 0.0
    %1471 = vmatmul.mubr.f32.gmra.mrb[0].mxu0 %v1401
    %v1472 = vpop.f32.mrb[0].mxu0
    %v1473 = vadd.f32 0.0, %v1472
    %v1474 = vpop.f32.mrb[0].mxu0
    %1475 = vmatprep.mubr.f32.mxu0 0.0
    %1476 = vmatmul.mubr.f32.gmra.mrb[0].mxu0 %v1404
    %v1477 = vpop.f32.mrb[0].mxu0
    %v1478 = vadd.f32 0.0, %v1477
    %v1479 = vpop.f32.mrb[0].mxu0
    %1480 = vdwg.mxu0
    %v1481 = vadd.f32 %v519, %v1473
    %v1482 = vadd.f32 %v524, %v1478
    %v1483 = vlaneseq
    %v1484 = vshrl.u32 %v1483, 7
    %v1485 = vsub.s32 1, %v1484
    %v1486 = vrot.slane %v535, %v1485
    %v1487 = vadd.f32 %v1481, %v1486
    %v1488 = vadd.f32 %v1482, %v1486
    %v1489 = vsel %vm549, %v1487, 0.0
    %1490 = vadd.xlane.f32.xlu0 %v1489
    %v1491 = vpop.xlane.xlu0 %1490
    %v1492 = vsel %vm549, %v1488, 0.0
    %1493 = vadd.xlane.f32.xlu0 %v1492
    %v1494 = vpop.xlane.xlu0 %1493
    %v1495 = vrcp.pop 32.0
    %v1496 = vmul.f32 %v1491, %v1495
    %v1497 = vmul.f32 %v1494, %v1495
    %v1498 = vmul.f32 %v1487, %v1487
    %v1499 = vmul.f32 %v1488, %v1488
    %v1500 = vsel %vm549, %v1498, 0.0
    %1501 = vadd.xlane.f32.xlu0 %v1500
    %v1502 = vpop.xlane.xlu0 %1501
    %v1503 = vsel %vm549, %v1499, 0.0
    %1504 = vadd.xlane.f32.xlu0 %v1503
    %v1505 = vpop.xlane.xlu0 %1504
    %v1506 = vmul.f32 %v1502, %v1495
    %v1507 = vmul.f32 %v1505, %v1495
    %v1508 = vsub.f32 %v1487, %v1496
    %v1509 = vsub.f32 %v1488, %v1497
    %v1510 = vmul.f32 %v1496, %v1496
    %v1511 = vmul.f32 %v1497, %v1497
    %v1512 = vsub.f32 %v1506, %v1510
    %v1513 = vsub.f32 %v1507, %v1511
    %v1514 = vadd.f32 %v1512, 1e-05
    %v1515 = vadd.f32 %v1513, 1e-05
    %v1516 = vrsqrt.pop %v1514
    %v1517 = vrsqrt.pop %v1515
    %v1518 = vmul.f32 %v1508, %v1516
    %v1519 = vmul.f32 %v1509, %v1517
    %v1520 = vlaneseq
    %v1521 = vshrl.u32 %v1520, 7
    %v1522 = vsub.s32 2, %v1521
    %v1523 = vrot.slane %v535, %v1522
    %v1524 = vmul.f32 %v1518, %v1523
    %v1525 = vmul.f32 %v1519, %v1523
    %1527 = vrot.lane.b32.xlu0 %v1523, 96
    %v1528 = vpop.permute.xlu0 %1527
    %v1530 = vadd.f32 %v1524, %v1528
    %v1531 = vadd.f32 %v1525, %v1528
    %1536 = vrot.lane.b32.xlu0 %v531, 96
    %v1537 = vpop.permute.xlu0 %1536
    %1538 = vrot.lane.b32.xlu0 %v532, 96
    %v1539 = vpop.permute.xlu0 %1538
    %1540 = vrot.lane.b32.xlu0 %v533, 96
    %v1541 = vpop.permute.xlu0 %1540
    %1542 = vrot.lane.b32.xlu0 %v534, 96
    %v1543 = vpop.permute.xlu0 %1542
    %1549 = vrot.lane.b32.xlu0 %v1486, 96
    %v1550 = vpop.permute.xlu0 %1549
    %v1553 = vsel %vm549, %v1530, 0
    %v1556 = vsel %vm549, %v1531, 0
    %1558 = vmatprep.subr.mxu0 0.0
    %1559 = vmatpush1.msra.mxu0 %v1537
    %1560 = vmatprep.subr.mxu0 0.0
    %1561 = vmatpush1.msra.mxu0 %v1539
    %1562 = vmatprep.subr.mxu0 0.0
    %1563 = vmatpush1.msra.mxu0 %v1541
    %1564 = vmatprep.subr.mxu0 0.0
    %1565 = vmatpush1.msra.mxu0 %v1543
    %1566 = vmatprep.subr.mxu0 0.0
    %1567 = vmatpush1.msra.mxu0 0.0
    %1568 = vmatprep.subr.mxu0 0.0
    %1569 = vmatpush1.msra.mxu0 0.0
    %1570 = vmatprep.subr.mxu0 0.0
    %1571 = vmatpush1.msra.mxu0 0.0
    %1572 = vmatprep.subr.mxu0 0.0
    %1573 = vmatpush1.msra.mxu0 0.0
    %1574 = vmatprep.subr.mxu0 0.0
    %1575 = vmatpush1.msra.mxu0 0.0
    %1576 = vmatprep.subr.mxu0 0.0
    %1577 = vmatpush1.msra.mxu0 0.0
    %1578 = vmatprep.subr.mxu0 0.0
    %1579 = vmatpush1.msra.mxu0 0.0
    %1580 = vmatprep.subr.mxu0 0.0
    %1581 = vmatpush1.msra.mxu0 0.0
    %1582 = vmatprep.subr.mxu0 0.0
    %1583 = vmatpush1.msra.mxu0 0.0
    %1584 = vmatprep.subr.mxu0 0.0
    %1585 = vmatpush1.msra.mxu0 0.0
    %1586 = vmatprep.subr.mxu0 0.0
    %1587 = vmatpush1.msra.mxu0 0.0
    %1588 = vmatprep.subr.mxu0 0.0
    %1589 = vmatpush1.msra.mxu0 0.0
    %1590 = vmatprep.subr.mxu0 0.0
    %1591 = vmatpush1.msra.mxu0 0.0
    %1592 = vmatprep.subr.mxu0 0.0
    %1593 = vmatpush1.msra.mxu0 0.0
    %1594 = vmatprep.subr.mxu0 0.0
    %1595 = vmatpush1.msra.mxu0 0.0
    %1596 = vmatprep.subr.mxu0 0.0
    %1597 = vmatpush1.msra.mxu0 0.0
    %1598 = vmatprep.subr.mxu0 0.0
    %1599 = vmatpush1.msra.mxu0 0.0
    %1600 = vmatprep.subr.mxu0 0.0
    %1601 = vmatpush1.msra.mxu0 0.0
    %1602 = vmatprep.subr.mxu0 0.0
    %1603 = vmatpush1.msra.mxu0 0.0
    %1604 = vmatprep.subr.mxu0 0.0
    %1605 = vmatpush1.msra.mxu0 0.0
    %1606 = vmatprep.subr.mxu0 0.0
    %1607 = vmatpush1.msra.mxu0 0.0
    %1608 = vmatprep.subr.mxu0 0.0
    %1609 = vmatpush1.msra.mxu0 0.0
    %1610 = vmatprep.subr.mxu0 0.0
    %1611 = vmatpush1.msra.mxu0 0.0
    %1612 = vmatprep.subr.mxu0 0.0
    %1613 = vmatpush1.msra.mxu0 0.0
    %1614 = vmatprep.subr.mxu0 0.0
    %1615 = vmatpush1.msra.mxu0 0.0
    %1616 = vmatprep.subr.mxu0 0.0
    %1617 = vmatpush1.msra.mxu0 0.0
    %1618 = vmatprep.subr.mxu0 0.0
    %1619 = vmatpush1.msra.mxu0 0.0
    %1620 = vmatprep.subr.mxu0 0.0
    %1621 = vmatpush1.msra.mxu0 0.0
    %1622 = vmatprep.mubr.f32.mxu0 0.0
    %1623 = vmatmul.mubr.f32.gmra.mrb[0].mxu0 %v1553
    %v1624 = vpop.f32.mrb[0].mxu0
    %v1625 = vadd.f32 %v1550, %v1624
    %v1626 = vpop.f32.mrb[0].mxu0
    %1627 = vmatprep.mubr.f32.mxu0 0.0
    %1628 = vmatmul.mubr.f32.gmra.mrb[0].mxu0 %v1556
    %v1629 = vpop.f32.mrb[0].mxu0
    %v1630 = vadd.f32 %v1550, %v1629
    %v1631 = vpop.f32.mrb[0].mxu0
    %1632 = vdwg.mxu0
    %v1633 = vmax.f32 %v1625, 0.0
    %v1634 = vmax.f32 %v1630, 0.0
    %1635 = vrot.lane.b32.xlu0 %v531, 64
    %v1636 = vpop.permute.xlu0 %1635
    %1637 = vrot.lane.b32.xlu0 %v532, 64
    %v1638 = vpop.permute.xlu0 %1637
    %1639 = vrot.lane.b32.xlu0 %v533, 64
    %v1640 = vpop.permute.xlu0 %1639
    %1641 = vrot.lane.b32.xlu0 %v534, 64
    %v1642 = vpop.permute.xlu0 %1641
    %v1648 = vsel %vm549, %v1633, 0
    %v1651 = vsel %vm549, %v1634, 0
    %1653 = vmatprep.subr.mxu0 0.0
    %1654 = vmatpush1.msra.mxu0 %v1636
    %1655 = vmatprep.subr.mxu0 0.0
    %1656 = vmatpush1.msra.mxu0 %v1638
    %1657 = vmatprep.subr.mxu0 0.0
    %1658 = vmatpush1.msra.mxu0 %v1640
    %1659 = vmatprep.subr.mxu0 0.0
    %1660 = vmatpush1.msra.mxu0 %v1642
    %1661 = vmatprep.subr.mxu0 0.0
    %1662 = vmatpush1.msra.mxu0 0.0
    %1663 = vmatprep.subr.mxu0 0.0
    %1664 = vmatpush1.msra.mxu0 0.0
    %1665 = vmatprep.subr.mxu0 0.0
    %1666 = vmatpush1.msra.mxu0 0.0
    %1667 = vmatprep.subr.mxu0 0.0
    %1668 = vmatpush1.msra.mxu0 0.0
    %1669 = vmatprep.subr.mxu0 0.0
    %1670 = vmatpush1.msra.mxu0 0.0
    %1671 = vmatprep.subr.mxu0 0.0
    %1672 = vmatpush1.msra.mxu0 0.0
    %1673 = vmatprep.subr.mxu0 0.0
    %1674 = vmatpush1.msra.mxu0 0.0
    %1675 = vmatprep.subr.mxu0 0.0
    %1676 = vmatpush1.msra.mxu0 0.0
    %1677 = vmatprep.subr.mxu0 0.0
    %1678 = vmatpush1.msra.mxu0 0.0
    %1679 = vmatprep.subr.mxu0 0.0
    %1680 = vmatpush1.msra.mxu0 0.0
    %1681 = vmatprep.subr.mxu0 0.0
    %1682 = vmatpush1.msra.mxu0 0.0
    %1683 = vmatprep.subr.mxu0 0.0
    %1684 = vmatpush1.msra.mxu0 0.0
    %1685 = vmatprep.subr.mxu0 0.0
    %1686 = vmatpush1.msra.mxu0 0.0
    %1687 = vmatprep.subr.mxu0 0.0
    %1688 = vmatpush1.msra.mxu0 0.0
    %1689 = vmatprep.subr.mxu0 0.0
    %1690 = vmatpush1.msra.mxu0 0.0
    %1691 = vmatprep.subr.mxu0 0.0
    %1692 = vmatpush1.msra.mxu0 0.0
    %1693 = vmatprep.subr.mxu0 0.0
    %1694 = vmatpush1.msra.mxu0 0.0
    %1695 = vmatprep.subr.mxu0 0.0
    %1696 = vmatpush1.msra.mxu0 0.0
    %1697 = vmatprep.subr.mxu0 0.0
    %1698 = vmatpush1.msra.mxu0 0.0
    %1699 = vmatprep.subr.mxu0 0.0
    %1700 = vmatpush1.msra.mxu0 0.0
    %1701 = vmatprep.subr.mxu0 0.0
    %1702 = vmatpush1.msra.mxu0 0.0
    %1703 = vmatprep.subr.mxu0 0.0
    %1704 = vmatpush1.msra.mxu0 0.0
    %1705 = vmatprep.subr.mxu0 0.0
    %1706 = vmatpush1.msra.mxu0 0.0
    %1707 = vmatprep.subr.mxu0 0.0
    %1708 = vmatpush1.msra.mxu0 0.0
    %1709 = vmatprep.subr.mxu0 0.0
    %1710 = vmatpush1.msra.mxu0 0.0
    %1711 = vmatprep.subr.mxu0 0.0
    %1712 = vmatpush1.msra.mxu0 0.0
    %1713 = vmatprep.subr.mxu0 0.0
    %1714 = vmatpush1.msra.mxu0 0.0
    %1715 = vmatprep.subr.mxu0 0.0
    %1716 = vmatpush1.msra.mxu0 0.0
    %1717 = vmatprep.mubr.f32.mxu0 0.0
    %1718 = vmatmul.mubr.f32.gmra.mrb[0].mxu0 %v1648
    %v1719 = vpop.f32.mrb[0].mxu0
    %v1720 = vadd.f32 0.0, %v1719
    %v1721 = vpop.f32.mrb[0].mxu0
    %1722 = vmatprep.mubr.f32.mxu0 0.0
    %1723 = vmatmul.mubr.f32.gmra.mrb[0].mxu0 %v1651
    %v1724 = vpop.f32.mrb[0].mxu0
    %v1725 = vadd.f32 0.0, %v1724
    %v1726 = vpop.f32.mrb[0].mxu0
    %1727 = vdwg.mxu0
    %v1728 = vadd.f32 %v1530, %v1720
    %v1729 = vadd.f32 %v1531, %v1725
    %1730 = vrot.lane.b32.xlu0 %v1486, 64
    %v1731 = vpop.permute.xlu0 %1730
    %v1733 = vadd.f32 %v1728, %v1731
    %v1734 = vadd.f32 %v1729, %v1731
    %v1735 = vsel %vm549, %v1733, 0.0
    %1736 = vadd.xlane.f32.xlu0 %v1735
    %v1737 = vpop.xlane.xlu0 %1736
    %v1738 = vsel %vm549, %v1734, 0.0
    %1739 = vadd.xlane.f32.xlu0 %v1738
    %v1740 = vpop.xlane.xlu0 %1739
    %v1741 = vmul.f32 %v1737, %v1495
    %v1742 = vmul.f32 %v1740, %v1495
    %v1743 = vmul.f32 %v1733, %v1733
    %v1744 = vmul.f32 %v1734, %v1734
    %v1745 = vsel %vm549, %v1743, 0.0
    %1746 = vadd.xlane.f32.xlu0 %v1745
    %v1747 = vpop.xlane.xlu0 %1746
    %v1748 = vsel %vm549, %v1744, 0.0
    %1749 = vadd.xlane.f32.xlu0 %v1748
    %v1750 = vpop.xlane.xlu0 %1749
    %v1751 = vmul.f32 %v1747, %v1495
    %v1752 = vmul.f32 %v1750, %v1495
    %v1753 = vsub.f32 %v1733, %v1741
    %v1754 = vsub.f32 %v1734, %v1742
    %v1755 = vmul.f32 %v1741, %v1741
    %v1756 = vmul.f32 %v1742, %v1742
    %v1757 = vsub.f32 %v1751, %v1755
    %v1758 = vsub.f32 %v1752, %v1756
    %v1759 = vadd.f32 %v1757, 1e-05
    %v1760 = vadd.f32 %v1758, 1e-05
    %v1761 = vrsqrt.pop %v1759
    %v1762 = vrsqrt.pop %v1760
    %v1763 = vmul.f32 %v1753, %v1761
    %v1764 = vmul.f32 %v1754, %v1762
    %1765 = vrot.lane.b32.xlu0 %v1523, 64
    %v1766 = vpop.permute.xlu0 %1765
    %v1768 = vmul.f32 %v1763, %v1766
    %v1769 = vmul.f32 %v1764, %v1766
    %v1770 = vlaneseq
    %v1771 = vshrl.u32 %v1770, 7
    %v1772 = vsub.s32 3, %v1771
    %v1773 = vrot.slane %v535, %v1772
    %v1774 = vadd.f32 %v1768, %v1773
    %v1775 = vadd.f32 %v1769, %v1773
    %v1776 = vlaneseq
    %v1777 = vshrl.u32 %v1776, 7
    %v1778 = vsub.s32 0, %v1777
    %v1779 = vrot.slane %v544, %v1778
    %v1781 = vsel %vm549, %v1774, 0
    %v1784 = vsel %vm549, %v1775, 0
    %1786 = vmatprep.subr.mxu0 0.0
    %1787 = vmatpush1.msra.mxu0 %v536
    %1788 = vmatprep.subr.mxu0 0.0
    %1789 = vmatpush1.msra.mxu0 %v537
    %1790 = vmatprep.subr.mxu0 0.0
    %1791 = vmatpush1.msra.mxu0 %v538
    %1792 = vmatprep.subr.mxu0 0.0
    %1793 = vmatpush1.msra.mxu0 %v539
    %1794 = vmatprep.subr.mxu0 0.0
    %1795 = vmatpush1.msra.mxu0 0.0
    %1796 = vmatprep.subr.mxu0 0.0
    %1797 = vmatpush1.msra.mxu0 0.0
    %1798 = vmatprep.subr.mxu0 0.0
    %1799 = vmatpush1.msra.mxu0 0.0
    %1800 = vmatprep.subr.mxu0 0.0
    %1801 = vmatpush1.msra.mxu0 0.0
    %1802 = vmatprep.subr.mxu0 0.0
    %1803 = vmatpush1.msra.mxu0 0.0
    %1804 = vmatprep.subr.mxu0 0.0
    %1805 = vmatpush1.msra.mxu0 0.0
    %1806 = vmatprep.subr.mxu0 0.0
    %1807 = vmatpush1.msra.mxu0 0.0
    %1808 = vmatprep.subr.mxu0 0.0
    %1809 = vmatpush1.msra.mxu0 0.0
    %1810 = vmatprep.subr.mxu0 0.0
    %1811 = vmatpush1.msra.mxu0 0.0
    %1812 = vmatprep.subr.mxu0 0.0
    %1813 = vmatpush1.msra.mxu0 0.0
    %1814 = vmatprep.subr.mxu0 0.0
    %1815 = vmatpush1.msra.mxu0 0.0
    %1816 = vmatprep.subr.mxu0 0.0
    %1817 = vmatpush1.msra.mxu0 0.0
    %1818 = vmatprep.subr.mxu0 0.0
    %1819 = vmatpush1.msra.mxu0 0.0
    %1820 = vmatprep.subr.mxu0 0.0
    %1821 = vmatpush1.msra.mxu0 0.0
    %1822 = vmatprep.subr.mxu0 0.0
    %1823 = vmatpush1.msra.mxu0 0.0
    %1824 = vmatprep.subr.mxu0 0.0
    %1825 = vmatpush1.msra.mxu0 0.0
    %1826 = vmatprep.subr.mxu0 0.0
    %1827 = vmatpush1.msra.mxu0 0.0
    %1828 = vmatprep.subr.mxu0 0.0
    %1829 = vmatpush1.msra.mxu0 0.0
    %1830 = vmatprep.subr.mxu0 0.0
    %1831 = vmatpush1.msra.mxu0 0.0
    %1832 = vmatprep.subr.mxu0 0.0
    %1833 = vmatpush1.msra.mxu0 0.0
    %1834 = vmatprep.subr.mxu0 0.0
    %1835 = vmatpush1.msra.mxu0 0.0
    %1836 = vmatprep.subr.mxu0 0.0
    %1837 = vmatpush1.msra.mxu0 0.0
    %1838 = vmatprep.subr.mxu0 0.0
    %1839 = vmatpush1.msra.mxu0 0.0
    %1840 = vmatprep.subr.mxu0 0.0
    %1841 = vmatpush1.msra.mxu0 0.0
    %1842 = vmatprep.subr.mxu0 0.0
    %1843 = vmatpush1.msra.mxu0 0.0
    %1844 = vmatprep.subr.mxu0 0.0
    %1845 = vmatpush1.msra.mxu0 0.0
    %1846 = vmatprep.subr.mxu0 0.0
    %1847 = vmatpush1.msra.mxu0 0.0
    %1848 = vmatprep.subr.mxu0 0.0
    %1849 = vmatpush1.msra.mxu0 0.0
    %1850 = vmatprep.mubr.f32.mxu0 0.0
    %1851 = vmatmul.mubr.f32.gmra.mrb[0].mxu0 %v1781
    %v1852 = vpop.f32.mrb[0].mxu0
    %v1853 = vadd.f32 %v1779, %v1852
    %v1854 = vpop.f32.mrb[0].mxu0
    %1855 = vmatprep.mubr.f32.mxu0 0.0
    %1856 = vmatmul.mubr.f32.gmra.mrb[0].mxu0 %v1784
    %v1857 = vpop.f32.mrb[0].mxu0
    %v1858 = vadd.f32 %v1779, %v1857
    %v1859 = vpop.f32.mrb[0].mxu0
    %1860 = vdwg.mxu0
    %1861 = vmatprep.subr.mxu0 0.0
    %1862 = vmatpush1.msra.mxu0 %v1853
    %1863 = vmatprep.subr.mxu0 0.0
    %1864 = vmatpush1.msra.mxu0 %v1858
    %1865 = vmatprep.subr.mxu0 0.0
    %1866 = vmatpush1.msra.mxu0 0.0
    %1867 = vmatprep.subr.mxu0 0.0
    %1868 = vmatpush1.msra.mxu0 0.0
    %1869 = vmatprep.subr.mxu0 0.0
    %1870 = vmatpush1.msra.mxu0 0.0
    %1871 = vmatprep.subr.mxu0 0.0
    %1872 = vmatpush1.msra.mxu0 0.0
    %1873 = vmatprep.subr.mxu0 0.0
    %1874 = vmatpush1.msra.mxu0 0.0
    %1875 = vmatprep.subr.mxu0 0.0
    %1876 = vmatpush1.msra.mxu0 0.0
    %1877 = vmatprep.subr.mxu0 0.0
    %1878 = vmatpush1.msra.mxu0 0.0
    %1879 = vmatprep.subr.mxu0 0.0
    %1880 = vmatpush1.msra.mxu0 0.0
    %1881 = vmatprep.subr.mxu0 0.0
    %1882 = vmatpush1.msra.mxu0 0.0
    %1883 = vmatprep.subr.mxu0 0.0
    %1884 = vmatpush1.msra.mxu0 0.0
    %1885 = vmatprep.subr.mxu0 0.0
    %1886 = vmatpush1.msra.mxu0 0.0
    %1887 = vmatprep.subr.mxu0 0.0
    %1888 = vmatpush1.msra.mxu0 0.0
    %1889 = vmatprep.subr.mxu0 0.0
    %1890 = vmatpush1.msra.mxu0 0.0
    %1891 = vmatprep.subr.mxu0 0.0
    %1892 = vmatpush1.msra.mxu0 0.0
    %1893 = vmatprep.subr.mxu0 0.0
    %1894 = vmatpush1.msra.mxu0 0.0
    %1895 = vmatprep.subr.mxu0 0.0
    %1896 = vmatpush1.msra.mxu0 0.0
    %1897 = vmatprep.subr.mxu0 0.0
    %1898 = vmatpush1.msra.mxu0 0.0
    %1899 = vmatprep.subr.mxu0 0.0
    %1900 = vmatpush1.msra.mxu0 0.0
    %1901 = vmatprep.subr.mxu0 0.0
    %1902 = vmatpush1.msra.mxu0 0.0
    %1903 = vmatprep.subr.mxu0 0.0
    %1904 = vmatpush1.msra.mxu0 0.0
    %1905 = vmatprep.subr.mxu0 0.0
    %1906 = vmatpush1.msra.mxu0 0.0
    %1907 = vmatprep.subr.mxu0 0.0
    %1908 = vmatpush1.msra.mxu0 0.0
    %1909 = vmatprep.subr.mxu0 0.0
    %1910 = vmatpush1.msra.mxu0 0.0
    %1911 = vmatprep.subr.mxu0 0.0
    %1912 = vmatpush1.msra.mxu0 0.0
    %1913 = vmatprep.subr.mxu0 0.0
    %1914 = vmatpush1.msra.mxu0 0.0
    %1915 = vmatprep.subr.mxu0 0.0
    %1916 = vmatpush1.msra.mxu0 0.0
    %1917 = vmatprep.subr.mxu0 0.0
    %1918 = vmatpush1.msra.mxu0 0.0
    %1919 = vmatprep.subr.mxu0 0.0
    %1920 = vmatpush1.msra.mxu0 0.0
    %1921 = vmatprep.subr.mxu0 0.0
    %1922 = vmatpush1.msra.mxu0 0.0
    %1923 = vmatprep.subr.mxu0 0.0
    %1924 = vmatpush1.msra.mxu0 0.0
    %1925 = vmatprep.mubr.f32.mxu0 0.0
    %1926 = vmatmul.mubr.f32.gmra.mrb[0].mxu0 %v214
    %v1927 = vpop.f32.mrb[0].mxu0
    %v1928 = vadd.f32 0.0, %v1927
    %v1929 = vpop.f32.mrb[0].mxu0
    %1930 = vmatprep.mubr.f32.mxu0 0.0
    %1931 = vmatmul.mubr.f32.gmra.mrb[0].mxu0 %v216
    %v1932 = vpop.f32.mrb[0].mxu0
    %v1933 = vadd.f32 0.0, %v1932
    %v1934 = vpop.f32.mrb[0].mxu0
    %1935 = vmatprep.mubr.f32.mxu0 0.0
    %1936 = vmatmul.mubr.f32.gmra.mrb[0].mxu0 %v218
    %v1937 = vpop.f32.mrb[0].mxu0
    %v1938 = vadd.f32 0.0, %v1937
    %v1939 = vpop.f32.mrb[0].mxu0
    %1940 = vmatprep.mubr.f32.mxu0 0.0
    %1941 = vmatmul.mubr.f32.gmra.mrb[0].mxu0 %v220
    %v1942 = vpop.f32.mrb[0].mxu0
    %v1943 = vadd.f32 0.0, %v1942
    %v1944 = vpop.f32.mrb[0].mxu0
    %1945 = vmatprep.mubr.f32.mxu0 0.0
    %1946 = vmatmul.mubr.f32.gmra.mrb[0].mxu0 %v222
    %v1947 = vpop.f32.mrb[0].mxu0
    %v1948 = vadd.f32 0.0, %v1947
    %v1949 = vpop.f32.mrb[0].mxu0
    %1950 = vmatprep.mubr.f32.mxu0 0.0
    %1951 = vmatmul.mubr.f32.gmra.mrb[0].mxu0 %v224
    %v1952 = vpop.f32.mrb[0].mxu0
    %v1953 = vadd.f32 0.0, %v1952
    %v1954 = vpop.f32.mrb[0].mxu0
    %1955 = vmatprep.mubr.f32.mxu0 0.0
    %1956 = vmatmul.mubr.f32.gmra.mrb[0].mxu0 %v226
    %v1957 = vpop.f32.mrb[0].mxu0
    %v1958 = vadd.f32 0.0, %v1957
    %v1959 = vpop.f32.mrb[0].mxu0
    %1960 = vmatprep.mubr.f32.mxu0 0.0
    %1961 = vmatmul.mubr.f32.gmra.mrb[0].mxu0 %v228
    %v1962 = vpop.f32.mrb[0].mxu0
    %v1963 = vadd.f32 0.0, %v1962
    %v1964 = vpop.f32.mrb[0].mxu0
    %1965 = vmatprep.mubr.f32.mxu0 0.0
    %1966 = vmatmul.mubr.f32.gmra.mrb[0].mxu0 %v230
    %v1967 = vpop.f32.mrb[0].mxu0
    %v1968 = vadd.f32 0.0, %v1967
    %v1969 = vpop.f32.mrb[0].mxu0
    %1970 = vmatprep.mubr.f32.mxu0 0.0
    %1971 = vmatmul.mubr.f32.gmra.mrb[0].mxu0 %v232
    %v1972 = vpop.f32.mrb[0].mxu0
    %v1973 = vadd.f32 0.0, %v1972
    %v1974 = vpop.f32.mrb[0].mxu0
    %1975 = vmatprep.mubr.f32.mxu0 0.0
    %1976 = vmatmul.mubr.f32.gmra.mrb[0].mxu0 %v234
    %v1977 = vpop.f32.mrb[0].mxu0
    %v1978 = vadd.f32 0.0, %v1977
    %v1979 = vpop.f32.mrb[0].mxu0
    %1980 = vmatprep.mubr.f32.mxu0 0.0
    %1981 = vmatmul.mubr.f32.gmra.mrb[0].mxu0 %v236
    %v1982 = vpop.f32.mrb[0].mxu0
    %v1983 = vadd.f32 0.0, %v1982
    %v1984 = vpop.f32.mrb[0].mxu0
    %1985 = vmatprep.mubr.f32.mxu0 0.0
    %1986 = vmatmul.mubr.f32.gmra.mrb[0].mxu0 %v238
    %v1987 = vpop.f32.mrb[0].mxu0
    %v1988 = vadd.f32 0.0, %v1987
    %v1989 = vpop.f32.mrb[0].mxu0
    %1990 = vmatprep.mubr.f32.mxu0 0.0
    %1991 = vmatmul.mubr.f32.gmra.mrb[0].mxu0 %v240
    %v1992 = vpop.f32.mrb[0].mxu0
    %v1993 = vadd.f32 0.0, %v1992
    %v1994 = vpop.f32.mrb[0].mxu0
    %1995 = vmatprep.mubr.f32.mxu0 0.0
    %1996 = vmatmul.mubr.f32.gmra.mrb[0].mxu0 %v242
    %v1997 = vpop.f32.mrb[0].mxu0
    %v1998 = vadd.f32 0.0, %v1997
    %v1999 = vpop.f32.mrb[0].mxu0
    %2000 = vmatprep.mubr.f32.mxu0 0.0
    %2001 = vmatmul.mubr.f32.gmra.mrb[0].mxu0 %v244
    %v2002 = vpop.f32.mrb[0].mxu0
    %v2003 = vadd.f32 0.0, %v2002
    %v2004 = vpop.f32.mrb[0].mxu0
    %2005 = vdwg.mxu0
    %v2006 = vmul.f32 %v1928, %v12
    %v2007 = vmul.f32 %v1933, %v13
    %v2008 = vmul.f32 %v1938, %v14
    %v2009 = vmul.f32 %v1943, %v15
    %v2010 = vmul.f32 %v1948, %v16
    %v2011 = vmul.f32 %v1953, %v17
    %v2012 = vmul.f32 %v1958, %v18
    %v2013 = vmul.f32 %v1963, %v19
    %v2014 = vmul.f32 %v1968, %v20
    %v2015 = vmul.f32 %v1973, %v21
    %v2016 = vmul.f32 %v1978, %v22
    %v2017 = vmul.f32 %v1983, %v23
    %v2018 = vmul.f32 %v1988, %v24
    %v2019 = vmul.f32 %v1993, %v25
    %v2020 = vmul.f32 %v1998, %v26
    %v2021 = vmul.f32 %v2003, %v27
    %2024 = vrot.lane.b32.xlu0 %v1853, 96
    %v2025 = vpop.permute.xlu0 %2024
    %2026 = vrot.lane.b32.xlu0 %v1858, 96
    %v2027 = vpop.permute.xlu0 %2026
    %v2029 = vsel %vm549, %v2006, 0
    %v2032 = vsel %vm549, %v2007, 0
    %v2035 = vsel %vm549, %v2008, 0
    %v2038 = vsel %vm549, %v2009, 0
    %v2041 = vsel %vm549, %v2010, 0
    %v2044 = vsel %vm549, %v2011, 0
    %v2047 = vsel %vm549, %v2012, 0
    %v2050 = vsel %vm549, %v2013, 0
    %v2053 = vsel %vm549, %v2014, 0
    %v2056 = vsel %vm549, %v2015, 0
    %v2059 = vsel %vm549, %v2016, 0
    %v2062 = vsel %vm549, %v2017, 0
    %v2065 = vsel %vm549, %v2018, 0
    %v2068 = vsel %vm549, %v2019, 0
    %v2071 = vsel %vm549, %v2020, 0
    %v2074 = vsel %vm549, %v2021, 0
    %v2076 = vsel %vm549, %v2025, 0
    %v2078 = vsel %vm549, %v2027, 0
    %2080 = vmatprep.subr.mxu0 0.0
    %2081 = vmatpush1.xpose.msra.mxu0 %v2076
    %2082 = vmatprep.subr.mxu0 0.0
    %2083 = vmatpush1.xpose.msra.mxu0 %v2078
    %2084 = vmatprep.subr.mxu0 0.0
    %2085 = vmatpush1.xpose.msra.mxu0 0.0
    %2086 = vmatprep.subr.mxu0 0.0
    %2087 = vmatpush1.xpose.msra.mxu0 0.0
    %2088 = vmatprep.subr.mxu0 0.0
    %2089 = vmatpush1.xpose.msra.mxu0 0.0
    %2090 = vmatprep.subr.mxu0 0.0
    %2091 = vmatpush1.xpose.msra.mxu0 0.0
    %2092 = vmatprep.subr.mxu0 0.0
    %2093 = vmatpush1.xpose.msra.mxu0 0.0
    %2094 = vmatprep.subr.mxu0 0.0
    %2095 = vmatpush1.xpose.msra.mxu0 0.0
    %2096 = vmatprep.subr.mxu0 0.0
    %2097 = vmatpush1.xpose.msra.mxu0 0.0
    %2098 = vmatprep.subr.mxu0 0.0
    %2099 = vmatpush1.xpose.msra.mxu0 0.0
    %2100 = vmatprep.subr.mxu0 0.0
    %2101 = vmatpush1.xpose.msra.mxu0 0.0
    %2102 = vmatprep.subr.mxu0 0.0
    %2103 = vmatpush1.xpose.msra.mxu0 0.0
    %2104 = vmatprep.subr.mxu0 0.0
    %2105 = vmatpush1.xpose.msra.mxu0 0.0
    %2106 = vmatprep.subr.mxu0 0.0
    %2107 = vmatpush1.xpose.msra.mxu0 0.0
    %2108 = vmatprep.subr.mxu0 0.0
    %2109 = vmatpush1.xpose.msra.mxu0 0.0
    %2110 = vmatprep.subr.mxu0 0.0
    %2111 = vmatpush1.xpose.msra.mxu0 0.0
    %2112 = vmatprep.subr.mxu0 0.0
    %2113 = vmatpush1.xpose.msra.mxu0 0.0
    %2114 = vmatprep.subr.mxu0 0.0
    %2115 = vmatpush1.xpose.msra.mxu0 0.0
    %2116 = vmatprep.subr.mxu0 0.0
    %2117 = vmatpush1.xpose.msra.mxu0 0.0
    %2118 = vmatprep.subr.mxu0 0.0
    %2119 = vmatpush1.xpose.msra.mxu0 0.0
    %2120 = vmatprep.subr.mxu0 0.0
    %2121 = vmatpush1.xpose.msra.mxu0 0.0
    %2122 = vmatprep.subr.mxu0 0.0
    %2123 = vmatpush1.xpose.msra.mxu0 0.0
    %2124 = vmatprep.subr.mxu0 0.0
    %2125 = vmatpush1.xpose.msra.mxu0 0.0
    %2126 = vmatprep.subr.mxu0 0.0
    %2127 = vmatpush1.xpose.msra.mxu0 0.0
    %2128 = vmatprep.subr.mxu0 0.0
    %2129 = vmatpush1.xpose.msra.mxu0 0.0
    %2130 = vmatprep.subr.mxu0 0.0
    %2131 = vmatpush1.xpose.msra.mxu0 0.0
    %2132 = vmatprep.subr.mxu0 0.0
    %2133 = vmatpush1.xpose.msra.mxu0 0.0
    %2134 = vmatprep.subr.mxu0 0.0
    %2135 = vmatpush1.xpose.msra.mxu0 0.0
    %2136 = vmatprep.subr.mxu0 0.0
    %2137 = vmatpush1.xpose.msra.mxu0 0.0
    %2138 = vmatprep.subr.mxu0 0.0
    %2139 = vmatpush1.xpose.msra.mxu0 0.0
    %2140 = vmatprep.subr.mxu0 0.0
    %2141 = vmatpush1.xpose.msra.mxu0 0.0
    %2142 = vmatprep.subr.mxu0 0.0
    %2143 = vmatpush1.xpose.msra.mxu0 0.0
    %2144 = vmatprep.mubr.f32.mxu0 0.0
    %2145 = vmatmul.mubr.f32.gmra.mrb[0].mxu0 %v2029
    %v2146 = vpop.f32.mrb[0].mxu0
    %v2147 = vadd.f32 %v313, %v2146
    %v2148 = vpop.f32.mrb[0].mxu0
    %2149 = vmatprep.mubr.f32.mxu0 0.0
    %2150 = vmatmul.mubr.f32.gmra.mrb[0].mxu0 %v2032
    %v2151 = vpop.f32.mrb[0].mxu0
    %v2152 = vadd.f32 %v318, %v2151
    %v2153 = vpop.f32.mrb[0].mxu0
    %2154 = vmatprep.mubr.f32.mxu0 0.0
    %2155 = vmatmul.mubr.f32.gmra.mrb[0].mxu0 %v2035
    %v2156 = vpop.f32.mrb[0].mxu0
    %v2157 = vadd.f32 %v323, %v2156
    %v2158 = vpop.f32.mrb[0].mxu0
    %2159 = vmatprep.mubr.f32.mxu0 0.0
    %2160 = vmatmul.mubr.f32.gmra.mrb[0].mxu0 %v2038
    %v2161 = vpop.f32.mrb[0].mxu0
    %v2162 = vadd.f32 %v328, %v2161
    %v2163 = vpop.f32.mrb[0].mxu0
    %2164 = vmatprep.mubr.f32.mxu0 0.0
    %2165 = vmatmul.mubr.f32.gmra.mrb[0].mxu0 %v2041
    %v2166 = vpop.f32.mrb[0].mxu0
    %v2167 = vadd.f32 %v333, %v2166
    %v2168 = vpop.f32.mrb[0].mxu0
    %2169 = vmatprep.mubr.f32.mxu0 0.0
    %2170 = vmatmul.mubr.f32.gmra.mrb[0].mxu0 %v2044
    %v2171 = vpop.f32.mrb[0].mxu0
    %v2172 = vadd.f32 %v338, %v2171
    %v2173 = vpop.f32.mrb[0].mxu0
    %2174 = vmatprep.mubr.f32.mxu0 0.0
    %2175 = vmatmul.mubr.f32.gmra.mrb[0].mxu0 %v2047
    %v2176 = vpop.f32.mrb[0].mxu0
    %v2177 = vadd.f32 %v343, %v2176
    %v2178 = vpop.f32.mrb[0].mxu0
    %2179 = vmatprep.mubr.f32.mxu0 0.0
    %2180 = vmatmul.mubr.f32.gmra.mrb[0].mxu0 %v2050
    %v2181 = vpop.f32.mrb[0].mxu0
    %v2182 = vadd.f32 %v348, %v2181
    %v2183 = vpop.f32.mrb[0].mxu0
    %2184 = vmatprep.mubr.f32.mxu0 0.0
    %2185 = vmatmul.mubr.f32.gmra.mrb[0].mxu0 %v2053
    %v2186 = vpop.f32.mrb[0].mxu0
    %v2187 = vadd.f32 %v353, %v2186
    %v2188 = vpop.f32.mrb[0].mxu0
    %2189 = vmatprep.mubr.f32.mxu0 0.0
    %2190 = vmatmul.mubr.f32.gmra.mrb[0].mxu0 %v2056
    %v2191 = vpop.f32.mrb[0].mxu0
    %v2192 = vadd.f32 %v358, %v2191
    %v2193 = vpop.f32.mrb[0].mxu0
    %2194 = vmatprep.mubr.f32.mxu0 0.0
    %2195 = vmatmul.mubr.f32.gmra.mrb[0].mxu0 %v2059
    %v2196 = vpop.f32.mrb[0].mxu0
    %v2197 = vadd.f32 %v363, %v2196
    %v2198 = vpop.f32.mrb[0].mxu0
    %2199 = vmatprep.mubr.f32.mxu0 0.0
    %2200 = vmatmul.mubr.f32.gmra.mrb[0].mxu0 %v2062
    %v2201 = vpop.f32.mrb[0].mxu0
    %v2202 = vadd.f32 %v368, %v2201
    %v2203 = vpop.f32.mrb[0].mxu0
    %2204 = vmatprep.mubr.f32.mxu0 0.0
    %2205 = vmatmul.mubr.f32.gmra.mrb[0].mxu0 %v2065
    %v2206 = vpop.f32.mrb[0].mxu0
    %v2207 = vadd.f32 %v373, %v2206
    %v2208 = vpop.f32.mrb[0].mxu0
    %2209 = vmatprep.mubr.f32.mxu0 0.0
    %2210 = vmatmul.mubr.f32.gmra.mrb[0].mxu0 %v2068
    %v2211 = vpop.f32.mrb[0].mxu0
    %v2212 = vadd.f32 %v378, %v2211
    %v2213 = vpop.f32.mrb[0].mxu0
    %2214 = vmatprep.mubr.f32.mxu0 0.0
    %2215 = vmatmul.mubr.f32.gmra.mrb[0].mxu0 %v2071
    %v2216 = vpop.f32.mrb[0].mxu0
    %v2217 = vadd.f32 %v383, %v2216
    %v2218 = vpop.f32.mrb[0].mxu0
    %2219 = vmatprep.mubr.f32.mxu0 0.0
    %2220 = vmatmul.mubr.f32.gmra.mrb[0].mxu0 %v2074
    %v2221 = vpop.f32.mrb[0].mxu0
    %v2222 = vadd.f32 %v388, %v2221
    %v2223 = vpop.f32.mrb[0].mxu0
    %2224 = vdwg.mxu0
    %v2225 = vsel %vm56, %v2147, -inf
    %2226 = vmax.xlane.f32.xlu0 %v2225
    %v2227 = vpop.xlane.xlu0 %2226
    %v2228 = vsel %vm56, %v2152, -inf
    %2229 = vmax.xlane.f32.xlu0 %v2228
    %v2230 = vpop.xlane.xlu0 %2229
    %v2231 = vsel %vm56, %v2157, -inf
    %2232 = vmax.xlane.f32.xlu0 %v2231
    %v2233 = vpop.xlane.xlu0 %2232
    %v2234 = vsel %vm56, %v2162, -inf
    %2235 = vmax.xlane.f32.xlu0 %v2234
    %v2236 = vpop.xlane.xlu0 %2235
    %v2237 = vsel %vm56, %v2167, -inf
    %2238 = vmax.xlane.f32.xlu0 %v2237
    %v2239 = vpop.xlane.xlu0 %2238
    %v2240 = vsel %vm56, %v2172, -inf
    %2241 = vmax.xlane.f32.xlu0 %v2240
    %v2242 = vpop.xlane.xlu0 %2241
    %v2243 = vsel %vm56, %v2177, -inf
    %2244 = vmax.xlane.f32.xlu0 %v2243
    %v2245 = vpop.xlane.xlu0 %2244
    %v2246 = vsel %vm56, %v2182, -inf
    %2247 = vmax.xlane.f32.xlu0 %v2246
    %v2248 = vpop.xlane.xlu0 %2247
    %v2249 = vsel %vm56, %v2187, -inf
    %2250 = vmax.xlane.f32.xlu0 %v2249
    %v2251 = vpop.xlane.xlu0 %2250
    %v2252 = vsel %vm56, %v2192, -inf
    %2253 = vmax.xlane.f32.xlu0 %v2252
    %v2254 = vpop.xlane.xlu0 %2253
    %v2255 = vsel %vm56, %v2197, -inf
    %2256 = vmax.xlane.f32.xlu0 %v2255
    %v2257 = vpop.xlane.xlu0 %2256
    %v2258 = vsel %vm56, %v2202, -inf
    %2259 = vmax.xlane.f32.xlu0 %v2258
    %v2260 = vpop.xlane.xlu0 %2259
    %v2261 = vsel %vm56, %v2207, -inf
    %2262 = vmax.xlane.f32.xlu0 %v2261
    %v2263 = vpop.xlane.xlu0 %2262
    %v2264 = vsel %vm56, %v2212, -inf
    %2265 = vmax.xlane.f32.xlu0 %v2264
    %v2266 = vpop.xlane.xlu0 %2265
    %v2267 = vsel %vm56, %v2217, -inf
    %2268 = vmax.xlane.f32.xlu0 %v2267
    %v2269 = vpop.xlane.xlu0 %2268
    %v2270 = vsel %vm56, %v2222, -inf
    %2271 = vmax.xlane.f32.xlu0 %v2270
    %v2272 = vpop.xlane.xlu0 %2271
    %v2273 = vsub.f32 %v2147, %v2227
    %v2274 = vsub.f32 %v2152, %v2230
    %v2275 = vsub.f32 %v2157, %v2233
    %v2276 = vsub.f32 %v2162, %v2236
    %v2277 = vsub.f32 %v2167, %v2239
    %v2278 = vsub.f32 %v2172, %v2242
    %v2279 = vsub.f32 %v2177, %v2245
    %v2280 = vsub.f32 %v2182, %v2248
    %v2281 = vsub.f32 %v2187, %v2251
    %v2282 = vsub.f32 %v2192, %v2254
    %v2283 = vsub.f32 %v2197, %v2257
    %v2284 = vsub.f32 %v2202, %v2260
    %v2285 = vsub.f32 %v2207, %v2263
    %v2286 = vsub.f32 %v2212, %v2266
    %v2287 = vsub.f32 %v2217, %v2269
    %v2288 = vsub.f32 %v2222, %v2272
    %v2289 = vmul.f32 %v2273, 1.442695
    %v2290 = vpow.pop %v2289
    %v2291 = vmul.f32 %v2274, 1.442695
    %v2292 = vpow.pop %v2291
    %v2293 = vmul.f32 %v2275, 1.442695
    %v2294 = vpow.pop %v2293
    %v2295 = vmul.f32 %v2276, 1.442695
    %v2296 = vpow.pop %v2295
    %v2297 = vmul.f32 %v2277, 1.442695
    %v2298 = vpow.pop %v2297
    %v2299 = vmul.f32 %v2278, 1.442695
    %v2300 = vpow.pop %v2299
    %v2301 = vmul.f32 %v2279, 1.442695
    %v2302 = vpow.pop %v2301
    %v2303 = vmul.f32 %v2280, 1.442695
    %v2304 = vpow.pop %v2303
    %v2305 = vmul.f32 %v2281, 1.442695
    %v2306 = vpow.pop %v2305
    %v2307 = vmul.f32 %v2282, 1.442695
    %v2308 = vpow.pop %v2307
    %v2309 = vmul.f32 %v2283, 1.442695
    %v2310 = vpow.pop %v2309
    %v2311 = vmul.f32 %v2284, 1.442695
    %v2312 = vpow.pop %v2311
    %v2313 = vmul.f32 %v2285, 1.442695
    %v2314 = vpow.pop %v2313
    %v2315 = vmul.f32 %v2286, 1.442695
    %v2316 = vpow.pop %v2315
    %v2317 = vmul.f32 %v2287, 1.442695
    %v2318 = vpow.pop %v2317
    %v2319 = vmul.f32 %v2288, 1.442695
    %v2320 = vpow.pop %v2319
    %v2321 = vsel %vm56, %v2290, 0.0
    %2322 = vadd.xlane.f32.xlu0 %v2321
    %v2323 = vpop.xlane.xlu0 %2322
    %v2324 = vsel %vm56, %v2292, 0.0
    %2325 = vadd.xlane.f32.xlu0 %v2324
    %v2326 = vpop.xlane.xlu0 %2325
    %v2327 = vsel %vm56, %v2294, 0.0
    %2328 = vadd.xlane.f32.xlu0 %v2327
    %v2329 = vpop.xlane.xlu0 %2328
    %v2330 = vsel %vm56, %v2296, 0.0
    %2331 = vadd.xlane.f32.xlu0 %v2330
    %v2332 = vpop.xlane.xlu0 %2331
    %v2333 = vsel %vm56, %v2298, 0.0
    %2334 = vadd.xlane.f32.xlu0 %v2333
    %v2335 = vpop.xlane.xlu0 %2334
    %v2336 = vsel %vm56, %v2300, 0.0
    %2337 = vadd.xlane.f32.xlu0 %v2336
    %v2338 = vpop.xlane.xlu0 %2337
    %v2339 = vsel %vm56, %v2302, 0.0
    %2340 = vadd.xlane.f32.xlu0 %v2339
    %v2341 = vpop.xlane.xlu0 %2340
    %v2342 = vsel %vm56, %v2304, 0.0
    %2343 = vadd.xlane.f32.xlu0 %v2342
    %v2344 = vpop.xlane.xlu0 %2343
    %v2345 = vsel %vm56, %v2306, 0.0
    %2346 = vadd.xlane.f32.xlu0 %v2345
    %v2347 = vpop.xlane.xlu0 %2346
    %v2348 = vsel %vm56, %v2308, 0.0
    %2349 = vadd.xlane.f32.xlu0 %v2348
    %v2350 = vpop.xlane.xlu0 %2349
    %v2351 = vsel %vm56, %v2310, 0.0
    %2352 = vadd.xlane.f32.xlu0 %v2351
    %v2353 = vpop.xlane.xlu0 %2352
    %v2354 = vsel %vm56, %v2312, 0.0
    %2355 = vadd.xlane.f32.xlu0 %v2354
    %v2356 = vpop.xlane.xlu0 %2355
    %v2357 = vsel %vm56, %v2314, 0.0
    %2358 = vadd.xlane.f32.xlu0 %v2357
    %v2359 = vpop.xlane.xlu0 %2358
    %v2360 = vsel %vm56, %v2316, 0.0
    %2361 = vadd.xlane.f32.xlu0 %v2360
    %v2362 = vpop.xlane.xlu0 %2361
    %v2363 = vsel %vm56, %v2318, 0.0
    %2364 = vadd.xlane.f32.xlu0 %v2363
    %v2365 = vpop.xlane.xlu0 %2364
    %v2366 = vsel %vm56, %v2320, 0.0
    %2367 = vadd.xlane.f32.xlu0 %v2366
    %v2368 = vpop.xlane.xlu0 %2367
    %v2369 = vrcp.pop %v2323
    %v2370 = vrcp.pop %v2326
    %v2371 = vrcp.pop %v2329
    %v2372 = vrcp.pop %v2332
    %v2373 = vrcp.pop %v2335
    %v2374 = vrcp.pop %v2338
    %v2375 = vrcp.pop %v2341
    %v2376 = vrcp.pop %v2344
    %v2377 = vrcp.pop %v2347
    %v2378 = vrcp.pop %v2350
    %v2379 = vrcp.pop %v2353
    %v2380 = vrcp.pop %v2356
    %v2381 = vrcp.pop %v2359
    %v2382 = vrcp.pop %v2362
    %v2383 = vrcp.pop %v2365
    %v2384 = vrcp.pop %v2368
    %v2385 = vmul.f32 %v2290, %v2369
    %v2386 = vmul.f32 %v2292, %v2370
    %v2387 = vmul.f32 %v2294, %v2371
    %v2388 = vmul.f32 %v2296, %v2372
    %v2389 = vmul.f32 %v2298, %v2373
    %v2390 = vmul.f32 %v2300, %v2374
    %v2391 = vmul.f32 %v2302, %v2375
    %v2392 = vmul.f32 %v2304, %v2376
    %v2393 = vmul.f32 %v2306, %v2377
    %v2394 = vmul.f32 %v2308, %v2378
    %v2395 = vmul.f32 %v2310, %v2379
    %v2396 = vmul.f32 %v2312, %v2380
    %v2397 = vmul.f32 %v2314, %v2381
    %v2398 = vmul.f32 %v2316, %v2382
    %v2399 = vmul.f32 %v2318, %v2383
    %v2400 = vmul.f32 %v2320, %v2384
    %2401 = vrot.lane.b32.xlu0 %v1853, 64
    %v2402 = vpop.permute.xlu0 %2401
    %2403 = vrot.lane.b32.xlu0 %v1858, 64
    %v2404 = vpop.permute.xlu0 %2403
    %v2408 = vsel %vm56, %v2385, 0
    %v2411 = vsel %vm56, %v2386, 0
    %v2414 = vsel %vm56, %v2387, 0
    %v2417 = vsel %vm56, %v2388, 0
    %v2420 = vsel %vm56, %v2389, 0
    %v2423 = vsel %vm56, %v2390, 0
    %v2426 = vsel %vm56, %v2391, 0
    %v2429 = vsel %vm56, %v2392, 0
    %v2432 = vsel %vm56, %v2393, 0
    %v2435 = vsel %vm56, %v2394, 0
    %v2438 = vsel %vm56, %v2395, 0
    %v2441 = vsel %vm56, %v2396, 0
    %v2444 = vsel %vm56, %v2397, 0
    %v2447 = vsel %vm56, %v2398, 0
    %v2450 = vsel %vm56, %v2399, 0
    %v2453 = vsel %vm56, %v2400, 0
    %2455 = vmatprep.subr.mxu0 0.0
    %2456 = vmatpush1.msra.mxu0 %v2402
    %2457 = vmatprep.subr.mxu0 0.0
    %2458 = vmatpush1.msra.mxu0 %v2404
    %2459 = vmatprep.subr.mxu0 0.0
    %2460 = vmatpush1.msra.mxu0 0.0
    %2461 = vmatprep.subr.mxu0 0.0
    %2462 = vmatpush1.msra.mxu0 0.0
    %2463 = vmatprep.subr.mxu0 0.0
    %2464 = vmatpush1.msra.mxu0 0.0
    %2465 = vmatprep.subr.mxu0 0.0
    %2466 = vmatpush1.msra.mxu0 0.0
    %2467 = vmatprep.subr.mxu0 0.0
    %2468 = vmatpush1.msra.mxu0 0.0
    %2469 = vmatprep.subr.mxu0 0.0
    %2470 = vmatpush1.msra.mxu0 0.0
    %2471 = vmatprep.subr.mxu0 0.0
    %2472 = vmatpush1.msra.mxu0 0.0
    %2473 = vmatprep.subr.mxu0 0.0
    %2474 = vmatpush1.msra.mxu0 0.0
    %2475 = vmatprep.subr.mxu0 0.0
    %2476 = vmatpush1.msra.mxu0 0.0
    %2477 = vmatprep.subr.mxu0 0.0
    %2478 = vmatpush1.msra.mxu0 0.0
    %2479 = vmatprep.subr.mxu0 0.0
    %2480 = vmatpush1.msra.mxu0 0.0
    %2481 = vmatprep.subr.mxu0 0.0
    %2482 = vmatpush1.msra.mxu0 0.0
    %2483 = vmatprep.subr.mxu0 0.0
    %2484 = vmatpush1.msra.mxu0 0.0
    %2485 = vmatprep.subr.mxu0 0.0
    %2486 = vmatpush1.msra.mxu0 0.0
    %2487 = vmatprep.subr.mxu0 0.0
    %2488 = vmatpush1.msra.mxu0 0.0
    %2489 = vmatprep.subr.mxu0 0.0
    %2490 = vmatpush1.msra.mxu0 0.0
    %2491 = vmatprep.subr.mxu0 0.0
    %2492 = vmatpush1.msra.mxu0 0.0
    %2493 = vmatprep.subr.mxu0 0.0
    %2494 = vmatpush1.msra.mxu0 0.0
    %2495 = vmatprep.subr.mxu0 0.0
    %2496 = vmatpush1.msra.mxu0 0.0
    %2497 = vmatprep.subr.mxu0 0.0
    %2498 = vmatpush1.msra.mxu0 0.0
    %2499 = vmatprep.subr.mxu0 0.0
    %2500 = vmatpush1.msra.mxu0 0.0
    %2501 = vmatprep.subr.mxu0 0.0
    %2502 = vmatpush1.msra.mxu0 0.0
    %2503 = vmatprep.subr.mxu0 0.0
    %2504 = vmatpush1.msra.mxu0 0.0
    %2505 = vmatprep.subr.mxu0 0.0
    %2506 = vmatpush1.msra.mxu0 0.0
    %2507 = vmatprep.subr.mxu0 0.0
    %2508 = vmatpush1.msra.mxu0 0.0
    %2509 = vmatprep.subr.mxu0 0.0
    %2510 = vmatpush1.msra.mxu0 0.0
    %2511 = vmatprep.subr.mxu0 0.0
    %2512 = vmatpush1.msra.mxu0 0.0
    %2513 = vmatprep.subr.mxu0 0.0
    %2514 = vmatpush1.msra.mxu0 0.0
    %2515 = vmatprep.subr.mxu0 0.0
    %2516 = vmatpush1.msra.mxu0 0.0
    %2517 = vmatprep.subr.mxu0 0.0
    %2518 = vmatpush1.msra.mxu0 0.0
    %2519 = vmatprep.mubr.f32.mxu0 0.0
    %2520 = vmatmul.mubr.f32.gmra.mrb[0].mxu0 %v2408
    %v2521 = vpop.f32.mrb[0].mxu0
    %v2522 = vadd.f32 0.0, %v2521
    %v2523 = vpop.f32.mrb[0].mxu0
    %2524 = vmatprep.mubr.f32.mxu0 0.0
    %2525 = vmatmul.mubr.f32.gmra.mrb[0].mxu0 %v2411
    %v2526 = vpop.f32.mrb[0].mxu0
    %v2527 = vadd.f32 0.0, %v2526
    %v2528 = vpop.f32.mrb[0].mxu0
    %2529 = vmatprep.mubr.f32.mxu0 0.0
    %2530 = vmatmul.mubr.f32.gmra.mrb[0].mxu0 %v2414
    %v2531 = vpop.f32.mrb[0].mxu0
    %v2532 = vadd.f32 0.0, %v2531
    %v2533 = vpop.f32.mrb[0].mxu0
    %2534 = vmatprep.mubr.f32.mxu0 0.0
    %2535 = vmatmul.mubr.f32.gmra.mrb[0].mxu0 %v2417
    %v2536 = vpop.f32.mrb[0].mxu0
    %v2537 = vadd.f32 0.0, %v2536
    %v2538 = vpop.f32.mrb[0].mxu0
    %2539 = vmatprep.mubr.f32.mxu0 0.0
    %2540 = vmatmul.mubr.f32.gmra.mrb[0].mxu0 %v2420
    %v2541 = vpop.f32.mrb[0].mxu0
    %v2542 = vadd.f32 0.0, %v2541
    %v2543 = vpop.f32.mrb[0].mxu0
    %2544 = vmatprep.mubr.f32.mxu0 0.0
    %2545 = vmatmul.mubr.f32.gmra.mrb[0].mxu0 %v2423
    %v2546 = vpop.f32.mrb[0].mxu0
    %v2547 = vadd.f32 0.0, %v2546
    %v2548 = vpop.f32.mrb[0].mxu0
    %2549 = vmatprep.mubr.f32.mxu0 0.0
    %2550 = vmatmul.mubr.f32.gmra.mrb[0].mxu0 %v2426
    %v2551 = vpop.f32.mrb[0].mxu0
    %v2552 = vadd.f32 0.0, %v2551
    %v2553 = vpop.f32.mrb[0].mxu0
    %2554 = vmatprep.mubr.f32.mxu0 0.0
    %2555 = vmatmul.mubr.f32.gmra.mrb[0].mxu0 %v2429
    %v2556 = vpop.f32.mrb[0].mxu0
    %v2557 = vadd.f32 0.0, %v2556
    %v2558 = vpop.f32.mrb[0].mxu0
    %2559 = vmatprep.mubr.f32.mxu0 0.0
    %2560 = vmatmul.mubr.f32.gmra.mrb[0].mxu0 %v2432
    %v2561 = vpop.f32.mrb[0].mxu0
    %v2562 = vadd.f32 0.0, %v2561
    %v2563 = vpop.f32.mrb[0].mxu0
    %2564 = vmatprep.mubr.f32.mxu0 0.0
    %2565 = vmatmul.mubr.f32.gmra.mrb[0].mxu0 %v2435
    %v2566 = vpop.f32.mrb[0].mxu0
    %v2567 = vadd.f32 0.0, %v2566
    %v2568 = vpop.f32.mrb[0].mxu0
    %2569 = vmatprep.mubr.f32.mxu0 0.0
    %2570 = vmatmul.mubr.f32.gmra.mrb[0].mxu0 %v2438
    %v2571 = vpop.f32.mrb[0].mxu0
    %v2572 = vadd.f32 0.0, %v2571
    %v2573 = vpop.f32.mrb[0].mxu0
    %2574 = vmatprep.mubr.f32.mxu0 0.0
    %2575 = vmatmul.mubr.f32.gmra.mrb[0].mxu0 %v2441
    %v2576 = vpop.f32.mrb[0].mxu0
    %v2577 = vadd.f32 0.0, %v2576
    %v2578 = vpop.f32.mrb[0].mxu0
    %2579 = vmatprep.mubr.f32.mxu0 0.0
    %2580 = vmatmul.mubr.f32.gmra.mrb[0].mxu0 %v2444
    %v2581 = vpop.f32.mrb[0].mxu0
    %v2582 = vadd.f32 0.0, %v2581
    %v2583 = vpop.f32.mrb[0].mxu0
    %2584 = vmatprep.mubr.f32.mxu0 0.0
    %2585 = vmatmul.mubr.f32.gmra.mrb[0].mxu0 %v2447
    %v2586 = vpop.f32.mrb[0].mxu0
    %v2587 = vadd.f32 0.0, %v2586
    %v2588 = vpop.f32.mrb[0].mxu0
    %2589 = vmatprep.mubr.f32.mxu0 0.0
    %2590 = vmatmul.mubr.f32.gmra.mrb[0].mxu0 %v2450
    %v2591 = vpop.f32.mrb[0].mxu0
    %v2592 = vadd.f32 0.0, %v2591
    %v2593 = vpop.f32.mrb[0].mxu0
    %2594 = vmatprep.mubr.f32.mxu0 0.0
    %2595 = vmatmul.mubr.f32.gmra.mrb[0].mxu0 %v2453
    %v2596 = vpop.f32.mrb[0].mxu0
    %v2597 = vadd.f32 0.0, %v2596
    %v2598 = vpop.f32.mrb[0].mxu0
    %2599 = vdwg.mxu0
    %v2600 = vmul.f32 %v2522, %v12
    %v2601 = vmul.f32 %v2527, %v13
    %v2602 = vmul.f32 %v2532, %v14
    %v2603 = vmul.f32 %v2537, %v15
    %v2604 = vmul.f32 %v2542, %v16
    %v2605 = vmul.f32 %v2547, %v17
    %v2606 = vmul.f32 %v2552, %v18
    %v2607 = vmul.f32 %v2557, %v19
    %v2608 = vmul.f32 %v2562, %v20
    %v2609 = vmul.f32 %v2567, %v21
    %v2610 = vmul.f32 %v2572, %v22
    %v2611 = vmul.f32 %v2577, %v23
    %v2612 = vmul.f32 %v2582, %v24
    %v2613 = vmul.f32 %v2587, %v25
    %v2614 = vmul.f32 %v2592, %v26
    %v2615 = vmul.f32 %v2597, %v27
    %v2616 = vadd.f32 %v2600, %v2602
    %v2617 = vadd.f32 %v2601, %v2603
    %v2618 = vadd.f32 %v2604, %v2606
    %v2619 = vadd.f32 %v2605, %v2607
    %v2620 = vadd.f32 %v2616, %v2618
    %v2621 = vadd.f32 %v2617, %v2619
    %v2622 = vadd.f32 %v2608, %v2610
    %v2623 = vadd.f32 %v2609, %v2611
    %v2624 = vadd.f32 %v2612, %v2614
    %v2625 = vadd.f32 %v2613, %v2615
    %v2626 = vadd.f32 %v2622, %v2624
    %v2627 = vadd.f32 %v2623, %v2625
    %v2628 = vadd.f32 %v2620, %v2626
    %v2629 = vadd.f32 %v2621, %v2627
    %v2631 = vsel %vm549, %v2628, 0
    %v2634 = vsel %vm549, %v2629, 0
    %2636 = vmatprep.subr.mxu0 0.0
    %2637 = vmatpush1.msra.mxu0 %v540
    %2638 = vmatprep.subr.mxu0 0.0
    %2639 = vmatpush1.msra.mxu0 %v541
    %2640 = vmatprep.subr.mxu0 0.0
    %2641 = vmatpush1.msra.mxu0 %v542
    %2642 = vmatprep.subr.mxu0 0.0
    %2643 = vmatpush1.msra.mxu0 %v543
    %2644 = vmatprep.subr.mxu0 0.0
    %2645 = vmatpush1.msra.mxu0 0.0
    %2646 = vmatprep.subr.mxu0 0.0
    %2647 = vmatpush1.msra.mxu0 0.0
    %2648 = vmatprep.subr.mxu0 0.0
    %2649 = vmatpush1.msra.mxu0 0.0
    %2650 = vmatprep.subr.mxu0 0.0
    %2651 = vmatpush1.msra.mxu0 0.0
    %2652 = vmatprep.subr.mxu0 0.0
    %2653 = vmatpush1.msra.mxu0 0.0
    %2654 = vmatprep.subr.mxu0 0.0
    %2655 = vmatpush1.msra.mxu0 0.0
    %2656 = vmatprep.subr.mxu0 0.0
    %2657 = vmatpush1.msra.mxu0 0.0
    %2658 = vmatprep.subr.mxu0 0.0
    %2659 = vmatpush1.msra.mxu0 0.0
    %2660 = vmatprep.subr.mxu0 0.0
    %2661 = vmatpush1.msra.mxu0 0.0
    %2662 = vmatprep.subr.mxu0 0.0
    %2663 = vmatpush1.msra.mxu0 0.0
    %2664 = vmatprep.subr.mxu0 0.0
    %2665 = vmatpush1.msra.mxu0 0.0
    %2666 = vmatprep.subr.mxu0 0.0
    %2667 = vmatpush1.msra.mxu0 0.0
    %2668 = vmatprep.subr.mxu0 0.0
    %2669 = vmatpush1.msra.mxu0 0.0
    %2670 = vmatprep.subr.mxu0 0.0
    %2671 = vmatpush1.msra.mxu0 0.0
    %2672 = vmatprep.subr.mxu0 0.0
    %2673 = vmatpush1.msra.mxu0 0.0
    %2674 = vmatprep.subr.mxu0 0.0
    %2675 = vmatpush1.msra.mxu0 0.0
    %2676 = vmatprep.subr.mxu0 0.0
    %2677 = vmatpush1.msra.mxu0 0.0
    %2678 = vmatprep.subr.mxu0 0.0
    %2679 = vmatpush1.msra.mxu0 0.0
    %2680 = vmatprep.subr.mxu0 0.0
    %2681 = vmatpush1.msra.mxu0 0.0
    %2682 = vmatprep.subr.mxu0 0.0
    %2683 = vmatpush1.msra.mxu0 0.0
    %2684 = vmatprep.subr.mxu0 0.0
    %2685 = vmatpush1.msra.mxu0 0.0
    %2686 = vmatprep.subr.mxu0 0.0
    %2687 = vmatpush1.msra.mxu0 0.0
    %2688 = vmatprep.subr.mxu0 0.0
    %2689 = vmatpush1.msra.mxu0 0.0
    %2690 = vmatprep.subr.mxu0 0.0
    %2691 = vmatpush1.msra.mxu0 0.0
    %2692 = vmatprep.subr.mxu0 0.0
    %2693 = vmatpush1.msra.mxu0 0.0
    %2694 = vmatprep.subr.mxu0 0.0
    %2695 = vmatpush1.msra.mxu0 0.0
    %2696 = vmatprep.subr.mxu0 0.0
    %2697 = vmatpush1.msra.mxu0 0.0
    %2698 = vmatprep.subr.mxu0 0.0
    %2699 = vmatpush1.msra.mxu0 0.0
    %2700 = vmatprep.mubr.f32.mxu0 0.0
    %2701 = vmatmul.mubr.f32.gmra.mrb[0].mxu0 %v2631
    %v2702 = vpop.f32.mrb[0].mxu0
    %v2703 = vadd.f32 0.0, %v2702
    %v2704 = vpop.f32.mrb[0].mxu0
    %2705 = vmatprep.mubr.f32.mxu0 0.0
    %2706 = vmatmul.mubr.f32.gmra.mrb[0].mxu0 %v2634
    %v2707 = vpop.f32.mrb[0].mxu0
    %v2708 = vadd.f32 0.0, %v2707
    %v2709 = vpop.f32.mrb[0].mxu0
    %2710 = vdwg.mxu0
    %v2711 = vadd.f32 %v1774, %v2703
    %v2712 = vadd.f32 %v1775, %v2708
    %v2713 = vlaneseq
    %v2714 = vshrl.u32 %v2713, 7
    %v2715 = vsub.s32 1, %v2714
    %v2716 = vrot.slane %v544, %v2715
    %v2717 = vadd.f32 %v2711, %v2716
    %v2718 = vadd.f32 %v2712, %v2716
    %v2719 = vsel %vm549, %v2717, 0.0
    %2720 = vadd.xlane.f32.xlu0 %v2719
    %v2721 = vpop.xlane.xlu0 %2720
    %v2722 = vsel %vm549, %v2718, 0.0
    %2723 = vadd.xlane.f32.xlu0 %v2722
    %v2724 = vpop.xlane.xlu0 %2723
    %v2725 = vmul.f32 %v2721, %v1495
    %v2726 = vmul.f32 %v2724, %v1495
    %v2727 = vmul.f32 %v2717, %v2717
    %v2728 = vmul.f32 %v2718, %v2718
    %v2729 = vsel %vm549, %v2727, 0.0
    %2730 = vadd.xlane.f32.xlu0 %v2729
    %v2731 = vpop.xlane.xlu0 %2730
    %v2732 = vsel %vm549, %v2728, 0.0
    %2733 = vadd.xlane.f32.xlu0 %v2732
    %v2734 = vpop.xlane.xlu0 %2733
    %v2735 = vmul.f32 %v2731, %v1495
    %v2736 = vmul.f32 %v2734, %v1495
    %v2737 = vsub.f32 %v2717, %v2725
    %v2738 = vsub.f32 %v2718, %v2726
    %v2739 = vmul.f32 %v2725, %v2725
    %v2740 = vmul.f32 %v2726, %v2726
    %v2741 = vsub.f32 %v2735, %v2739
    %v2742 = vsub.f32 %v2736, %v2740
    %v2743 = vadd.f32 %v2741, 1e-05
    %v2744 = vadd.f32 %v2742, 1e-05
    %v2745 = vrsqrt.pop %v2743
    %v2746 = vrsqrt.pop %v2744
    %v2747 = vmul.f32 %v2737, %v2745
    %v2748 = vmul.f32 %v2738, %v2746
    %v2749 = vlaneseq
    %v2750 = vshrl.u32 %v2749, 7
    %v2751 = vsub.s32 2, %v2750
    %v2752 = vrot.slane %v544, %v2751
    %v2753 = vmul.f32 %v2747, %v2752
    %v2754 = vmul.f32 %v2748, %v2752
    %2756 = vrot.lane.b32.xlu0 %v2752, 96
    %v2757 = vpop.permute.xlu0 %2756
    %v2759 = vadd.f32 %v2753, %v2757
    %v2760 = vadd.f32 %v2754, %v2757
    %2765 = vrot.lane.b32.xlu0 %v540, 96
    %v2766 = vpop.permute.xlu0 %2765
    %2767 = vrot.lane.b32.xlu0 %v541, 96
    %v2768 = vpop.permute.xlu0 %2767
    %2769 = vrot.lane.b32.xlu0 %v542, 96
    %v2770 = vpop.permute.xlu0 %2769
    %2771 = vrot.lane.b32.xlu0 %v543, 96
    %v2772 = vpop.permute.xlu0 %2771
    %2778 = vrot.lane.b32.xlu0 %v2716, 96
    %v2779 = vpop.permute.xlu0 %2778
    %v2782 = vsel %vm549, %v2759, 0
    %v2785 = vsel %vm549, %v2760, 0
    %2787 = vmatprep.subr.mxu0 0.0
    %2788 = vmatpush1.msra.mxu0 %v2766
    %2789 = vmatprep.subr.mxu0 0.0
    %2790 = vmatpush1.msra.mxu0 %v2768
    %2791 = vmatprep.subr.mxu0 0.0
    %2792 = vmatpush1.msra.mxu0 %v2770
    %2793 = vmatprep.subr.mxu0 0.0
    %2794 = vmatpush1.msra.mxu0 %v2772
    %2795 = vmatprep.subr.mxu0 0.0
    %2796 = vmatpush1.msra.mxu0 0.0
    %2797 = vmatprep.subr.mxu0 0.0
    %2798 = vmatpush1.msra.mxu0 0.0
    %2799 = vmatprep.subr.mxu0 0.0
    %2800 = vmatpush1.msra.mxu0 0.0
    %2801 = vmatprep.subr.mxu0 0.0
    %2802 = vmatpush1.msra.mxu0 0.0
    %2803 = vmatprep.subr.mxu0 0.0
    %2804 = vmatpush1.msra.mxu0 0.0
    %2805 = vmatprep.subr.mxu0 0.0
    %2806 = vmatpush1.msra.mxu0 0.0
    %2807 = vmatprep.subr.mxu0 0.0
    %2808 = vmatpush1.msra.mxu0 0.0
    %2809 = vmatprep.subr.mxu0 0.0
    %2810 = vmatpush1.msra.mxu0 0.0
    %2811 = vmatprep.subr.mxu0 0.0
    %2812 = vmatpush1.msra.mxu0 0.0
    %2813 = vmatprep.subr.mxu0 0.0
    %2814 = vmatpush1.msra.mxu0 0.0
    %2815 = vmatprep.subr.mxu0 0.0
    %2816 = vmatpush1.msra.mxu0 0.0
    %2817 = vmatprep.subr.mxu0 0.0
    %2818 = vmatpush1.msra.mxu0 0.0
    %2819 = vmatprep.subr.mxu0 0.0
    %2820 = vmatpush1.msra.mxu0 0.0
    %2821 = vmatprep.subr.mxu0 0.0
    %2822 = vmatpush1.msra.mxu0 0.0
    %2823 = vmatprep.subr.mxu0 0.0
    %2824 = vmatpush1.msra.mxu0 0.0
    %2825 = vmatprep.subr.mxu0 0.0
    %2826 = vmatpush1.msra.mxu0 0.0
    %2827 = vmatprep.subr.mxu0 0.0
    %2828 = vmatpush1.msra.mxu0 0.0
    %2829 = vmatprep.subr.mxu0 0.0
    %2830 = vmatpush1.msra.mxu0 0.0
    %2831 = vmatprep.subr.mxu0 0.0
    %2832 = vmatpush1.msra.mxu0 0.0
    %2833 = vmatprep.subr.mxu0 0.0
    %2834 = vmatpush1.msra.mxu0 0.0
    %2835 = vmatprep.subr.mxu0 0.0
    %2836 = vmatpush1.msra.mxu0 0.0
    %2837 = vmatprep.subr.mxu0 0.0
    %2838 = vmatpush1.msra.mxu0 0.0
    %2839 = vmatprep.subr.mxu0 0.0
    %2840 = vmatpush1.msra.mxu0 0.0
    %2841 = vmatprep.subr.mxu0 0.0
    %2842 = vmatpush1.msra.mxu0 0.0
    %2843 = vmatprep.subr.mxu0 0.0
    %2844 = vmatpush1.msra.mxu0 0.0
    %2845 = vmatprep.subr.mxu0 0.0
    %2846 = vmatpush1.msra.mxu0 0.0
    %2847 = vmatprep.subr.mxu0 0.0
    %2848 = vmatpush1.msra.mxu0 0.0
    %2849 = vmatprep.subr.mxu0 0.0
    %2850 = vmatpush1.msra.mxu0 0.0
    %2851 = vmatprep.mubr.f32.mxu0 0.0
    %2852 = vmatmul.mubr.f32.gmra.mrb[0].mxu0 %v2782
    %v2853 = vpop.f32.mrb[0].mxu0
    %v2854 = vadd.f32 %v2779, %v2853
    %v2855 = vpop.f32.mrb[0].mxu0
    %2856 = vmatprep.mubr.f32.mxu0 0.0
    %2857 = vmatmul.mubr.f32.gmra.mrb[0].mxu0 %v2785
    %v2858 = vpop.f32.mrb[0].mxu0
    %v2859 = vadd.f32 %v2779, %v2858
    %v2860 = vpop.f32.mrb[0].mxu0
    %2861 = vdwg.mxu0
    %v2862 = vmax.f32 %v2854, 0.0
    %v2863 = vmax.f32 %v2859, 0.0
    %2864 = vrot.lane.b32.xlu0 %v540, 64
    %v2865 = vpop.permute.xlu0 %2864
    %2866 = vrot.lane.b32.xlu0 %v541, 64
    %v2867 = vpop.permute.xlu0 %2866
    %2868 = vrot.lane.b32.xlu0 %v542, 64
    %v2869 = vpop.permute.xlu0 %2868
    %2870 = vrot.lane.b32.xlu0 %v543, 64
    %v2871 = vpop.permute.xlu0 %2870
    %v2877 = vsel %vm549, %v2862, 0
    %v2880 = vsel %vm549, %v2863, 0
    %2882 = vmatprep.subr.mxu0 0.0
    %2883 = vmatpush1.msra.mxu0 %v2865
    %2884 = vmatprep.subr.mxu0 0.0
    %2885 = vmatpush1.msra.mxu0 %v2867
    %2886 = vmatprep.subr.mxu0 0.0
    %2887 = vmatpush1.msra.mxu0 %v2869
    %2888 = vmatprep.subr.mxu0 0.0
    %2889 = vmatpush1.msra.mxu0 %v2871
    %2890 = vmatprep.subr.mxu0 0.0
    %2891 = vmatpush1.msra.mxu0 0.0
    %2892 = vmatprep.subr.mxu0 0.0
    %2893 = vmatpush1.msra.mxu0 0.0
    %2894 = vmatprep.subr.mxu0 0.0
    %2895 = vmatpush1.msra.mxu0 0.0
    %2896 = vmatprep.subr.mxu0 0.0
    %2897 = vmatpush1.msra.mxu0 0.0
    %2898 = vmatprep.subr.mxu0 0.0
    %2899 = vmatpush1.msra.mxu0 0.0
    %2900 = vmatprep.subr.mxu0 0.0
    %2901 = vmatpush1.msra.mxu0 0.0
    %2902 = vmatprep.subr.mxu0 0.0
    %2903 = vmatpush1.msra.mxu0 0.0
    %2904 = vmatprep.subr.mxu0 0.0
    %2905 = vmatpush1.msra.mxu0 0.0
    %2906 = vmatprep.subr.mxu0 0.0
    %2907 = vmatpush1.msra.mxu0 0.0
    %2908 = vmatprep.subr.mxu0 0.0
    %2909 = vmatpush1.msra.mxu0 0.0
    %2910 = vmatprep.subr.mxu0 0.0
    %2911 = vmatpush1.msra.mxu0 0.0
    %2912 = vmatprep.subr.mxu0 0.0
    %2913 = vmatpush1.msra.mxu0 0.0
    %2914 = vmatprep.subr.mxu0 0.0
    %2915 = vmatpush1.msra.mxu0 0.0
    %2916 = vmatprep.subr.mxu0 0.0
    %2917 = vmatpush1.msra.mxu0 0.0
    %2918 = vmatprep.subr.mxu0 0.0
    %2919 = vmatpush1.msra.mxu0 0.0
    %2920 = vmatprep.subr.mxu0 0.0
    %2921 = vmatpush1.msra.mxu0 0.0
    %2922 = vmatprep.subr.mxu0 0.0
    %2923 = vmatpush1.msra.mxu0 0.0
    %2924 = vmatprep.subr.mxu0 0.0
    %2925 = vmatpush1.msra.mxu0 0.0
    %2926 = vmatprep.subr.mxu0 0.0
    %2927 = vmatpush1.msra.mxu0 0.0
    %2928 = vmatprep.subr.mxu0 0.0
    %2929 = vmatpush1.msra.mxu0 0.0
    %2930 = vmatprep.subr.mxu0 0.0
    %2931 = vmatpush1.msra.mxu0 0.0
    %2932 = vmatprep.subr.mxu0 0.0
    %2933 = vmatpush1.msra.mxu0 0.0
    %2934 = vmatprep.subr.mxu0 0.0
    %2935 = vmatpush1.msra.mxu0 0.0
    %2936 = vmatprep.subr.mxu0 0.0
    %2937 = vmatpush1.msra.mxu0 0.0
    %2938 = vmatprep.subr.mxu0 0.0
    %2939 = vmatpush1.msra.mxu0 0.0
    %2940 = vmatprep.subr.mxu0 0.0
    %2941 = vmatpush1.msra.mxu0 0.0
    %2942 = vmatprep.subr.mxu0 0.0
    %2943 = vmatpush1.msra.mxu0 0.0
    %2944 = vmatprep.subr.mxu0 0.0
    %2945 = vmatpush1.msra.mxu0 0.0
    %2946 = vmatprep.mubr.f32.mxu0 0.0
    %2947 = vmatmul.mubr.f32.gmra.mrb[0].mxu0 %v2877
    %v2948 = vpop.f32.mrb[0].mxu0
    %v2949 = vadd.f32 0.0, %v2948
    %v2950 = vpop.f32.mrb[0].mxu0
    %2951 = vmatprep.mubr.f32.mxu0 0.0
    %2952 = vmatmul.mubr.f32.gmra.mrb[0].mxu0 %v2880
    %v2953 = vpop.f32.mrb[0].mxu0
    %v2954 = vadd.f32 0.0, %v2953
    %v2955 = vpop.f32.mrb[0].mxu0
    %2956 = vdwg.mxu0
    %v2957 = vadd.f32 %v2759, %v2949
    %v2958 = vadd.f32 %v2760, %v2954
    %2959 = vrot.lane.b32.xlu0 %v2716, 64
    %v2960 = vpop.permute.xlu0 %2959
    %v2962 = vadd.f32 %v2957, %v2960
    %v2963 = vadd.f32 %v2958, %v2960
    %v2964 = vsel %vm549, %v2962, 0.0
    %2965 = vadd.xlane.f32.xlu0 %v2964
    %v2966 = vpop.xlane.xlu0 %2965
    %v2967 = vsel %vm549, %v2963, 0.0
    %2968 = vadd.xlane.f32.xlu0 %v2967
    %v2969 = vpop.xlane.xlu0 %2968
    %v2970 = vmul.f32 %v2966, %v1495
    %v2971 = vmul.f32 %v2969, %v1495
    %v2972 = vmul.f32 %v2962, %v2962
    %v2973 = vmul.f32 %v2963, %v2963
    %v2974 = vsel %vm549, %v2972, 0.0
    %2975 = vadd.xlane.f32.xlu0 %v2974
    %v2976 = vpop.xlane.xlu0 %2975
    %v2977 = vsel %vm549, %v2973, 0.0
    %2978 = vadd.xlane.f32.xlu0 %v2977
    %v2979 = vpop.xlane.xlu0 %2978
    %v2980 = vmul.f32 %v2976, %v1495
    %v2981 = vmul.f32 %v2979, %v1495
    %v2982 = vsub.f32 %v2962, %v2970
    %v2983 = vsub.f32 %v2963, %v2971
    %v2984 = vmul.f32 %v2970, %v2970
    %v2985 = vmul.f32 %v2971, %v2971
    %v2986 = vsub.f32 %v2980, %v2984
    %v2987 = vsub.f32 %v2981, %v2985
    %v2988 = vadd.f32 %v2986, 1e-05
    %v2989 = vadd.f32 %v2987, 1e-05
    %v2990 = vrsqrt.pop %v2988
    %v2991 = vrsqrt.pop %v2989
    %v2992 = vmul.f32 %v2982, %v2990
    %v2993 = vmul.f32 %v2983, %v2991
    %2994 = vrot.lane.b32.xlu0 %v2752, 64
    %v2995 = vpop.permute.xlu0 %2994
    %v2997 = vmul.f32 %v2992, %v2995
    %v2998 = vmul.f32 %v2993, %v2995
    %v2999 = vlaneseq
    %v3000 = vshrl.u32 %v2999, 7
    %v3001 = vsub.s32 3, %v3000
    %v3002 = vrot.slane %v544, %v3001
    %v3003 = vadd.f32 %v2997, %v3002
    %v3004 = vadd.f32 %v2998, %v3002
    %3005 = vst.msk [vmem:[#allocation2] sm:$0xff] %vm549, %v3003
    %3006 = vst.msk [vmem:[#allocation2 + $0x8] sm:$0xff] %vm549, %v3004
    // Predicated region
    $region10: #{tpu_custom_call.1} parent=1 // pred_check
      _
    $region11: #{tpu_custom_call.1} parent=1 // pred_check_branch
      %3008 = sbr.rel (0) target = $region13
    $region12: #{tpu_custom_call.1} parent=1 // pred_region
      %s3010 = ssub.s32 256, 256
      %3011 = vsyncadd [#allocation3], %s3010
      %s3012 = sshll.u32 [#allocation2], 4
      %s3013 = int_to_ptr.vmem [resolvable:$true] %s3012
      %3018 = dma.vmem_to_hbm [thread:$0]  %s3013, 256, %s2, [#allocation3], 128, 128, 8
    $region13: #{tpu_custom_call.1} parent=1 // pred_fallthru
      _
    // Predicated region
    $region14: #{tpu_custom_call.1} parent=1 // pred_check
      _
    $region15: #{tpu_custom_call.1} parent=1 // pred_check_branch
      %3020 = sbr.rel (0) target = $region17
    $region16: #{tpu_custom_call.1} parent=1 // pred_region
      %3021 = dma.done [#allocation3], 256
    $region17: #{tpu_custom_call.1} parent=1 // pred_fallthru
      _
    %3022 = vsyncpa [#allocation3], 1

</llo_original>
